<compile_context>
chip_gen: v7x
topology: tpu7x:2x2x1
jax: 0.10.0
libtpu: 0.0.40
codegen_flags: <defaults>
</compile_context>

<pallas_src>
import functools
import math

import jax
import jax.numpy as jnp
from jax import lax
from jax.experimental import pallas as pl
from jax.experimental.pallas import tpu as pltpu


_GELU_C = 0.7978845608028654  # sqrt(2/pi)


# ---------------------------------------------------------------------------
# Fused kernel: GN1 + pool mixer + residual, then GN2 + 1x1-conv MLP + residual
# ---------------------------------------------------------------------------
def _fused_block_kernel(x_ref, g1_ref, b1_ref, ls1_ref, g2_ref, b2_ref,
                        w1_ref, bb1_ref, w2_ref, bb2_ref, ls2_ref,
                        o_ref, *, eps, pool_size, row_tile):
    r = pool_size // 2
    x = x_ref[0]                                     # (H, W, C) f32
    h, w, c = x.shape
    inv_n = 1.0 / float(h * w * c)

    def _gn_scale_shift(v, g, b):
        # One sweep: sum & sum-of-squares, reduced H (VPU) -> W (sublane) -> C (lane).
        s1 = jnp.sum(v, axis=0)                      # (W, C)   pure vreg adds
        s2 = jnp.sum(v * v, axis=0)                  # (W, C)
        s1 = jnp.sum(s1, axis=0, keepdims=True)      # (1, C)   sublane reduce
        s2 = jnp.sum(s2, axis=0, keepdims=True)      # (1, C)
        tot = jnp.sum(s1, axis=1, keepdims=True)     # (1, 1)   lane reduce (tiny)
        tot2 = jnp.sum(s2, axis=1, keepdims=True)    # (1, 1)
        mean = tot * inv_n
        var = tot2 * inv_n - mean * mean             # E[x^2] - mean^2, f32 accumulation
        scale = g * lax.rsqrt(var + eps)             # (1, C)
        shift = b - mean * scale                     # (1, C)
        return scale, shift

    # ---------------- GroupNorm #1 + folded affine -----------------------------
    s1c, t1c = _gn_scale_shift(x, g1_ref[...], b1_ref[...])
    xn = x * s1c + t1c                               # (H, W, C)

    # ---------------- 3x3 avg-pool, stride 1, count_include_pad=False ---------
    # Separable window sum in registers: W axis first, then H axis.
    sw = xn
    for d in range(1, r + 1):
        zc = jnp.zeros((h, d, c), xn.dtype)
        sw = sw + jnp.concatenate([zc, xn[:, :w - d, :]], axis=1)   # left taps
        sw = sw + jnp.concatenate([xn[:, d:, :], zc], axis=1)       # right taps
    ps = sw
    for d in range(1, r + 1):
        zr = jnp.zeros((d, w, c), sw.dtype)
        ps = ps + jnp.concatenate([zr, sw[:h - d, :, :]], axis=0)   # top taps
        ps = ps + jnp.concatenate([sw[d:, :, :], zr], axis=0)       # bottom taps

    # Divisor: scalar 1/k^2 everywhere, then rescale border rows/cols
    # (corners compose automatically).
    pool = ps * (1.0 / float(pool_size * pool_size))
    row = lax.broadcasted_iota(jnp.int32, (h, w, c), 0)
    col = lax.broadcasted_iota(jnp.int32, (h, w, c), 1)
    for d in range(r):
        f = float(pool_size) / float(pool_size - r + d)
        pool = jnp.where((row == d) | (row == h - 1 - d), pool * f, pool)
        pool = jnp.where((col == d) | (col == w - 1 - d), pool * f, pool)

    # Token mixer + layer scale + residual. Stage x1 in the output VMEM block
    # (it is also the residual input of the MLP branch).
    x1 = x + ls1_ref[...] * (pool - xn)
    o_ref[0] = x1.astype(o_ref.dtype)

    # ---------------- GroupNorm #2 stats on the mixer output ------------------
    s2c, t2c = _gn_scale_shift(x1, g2_ref[...], b2_ref[...])
    ls2 = ls2_ref[...]
    w1 = w1_ref[...]
    w2 = w2_ref[...]
    bb1 = bb1_ref[...]
    bb2 = bb2_ref[...]

    # ---------------- 1x1-conv MLP, row-tiled over H chunks -------------------
    def mlp_tile(t, carry):
        rs = pl.multiple_of(t * row_tile, row_tile)
        xt = o_ref[0, pl.ds(rs, row_tile)]           # (row_tile, W, C) = x1 chunk
        rows2d = xt.reshape(row_tile * w, c)
        xn2 = rows2d * s2c + t2c
        hid = jnp.dot(xn2.astype(jnp.bfloat16), w1,
                      preferred_element_type=jnp.float32) + bb1
        # GELU (tanh approximation of nn.GELU).
        # TODO(synk): use exact erf-based GELU once erf lowering is guaranteed in Mosaic.
        hid = 0.5 * hid * (1.0 + jnp.tanh(_GELU_C * (hid + 0.044715 * hid * hid * hid)))
        y = jnp.dot(hid.astype(jnp.bfloat16), w2,
                    preferred_element_type=jnp.float32) + bb2
        out_rows = rows2d + ls2 * y
        o_ref[0, pl.ds(rs, row_tile)] = out_rows.reshape(row_tile, w, c).astype(o_ref.dtype)
        return carry

    lax.fori_loop(0, h // row_tile, mlp_tile, 0)


# ---------------------------------------------------------------------------
# Host-side wrapper
# ---------------------------------------------------------------------------
def _pick_row_tile(h, w, target_rows=512):
    """Largest divisor of H whose chunk (rows = th*W) stays near target_rows."""
    best = 1
    for th in range(1, h + 1):
        if h % th == 0 and th * w <= max(target_rows, w):
            best = th
    return best


def poolformer_block_forward(x_nhwc, g1, b1, ls1, g2, b2, w1, bb1, w2, bb2, ls2,
                             *, pool_size, eps):
    n, h, w, c = x_nhwc.shape
    assert h >= pool_size and w >= pool_size, "spatial dims must cover the pool window"
    hidden = w1.shape[1]
    row_tile = _pick_row_tile(h, w)

    # VMEM budget: double-buffered in/out blocks + elementwise intermediates +
    # resident weights + the row-tiled MLP intermediate.
    blk_bytes = h * w * c * 4
    weight_bytes = (c * hidden + hidden * c) * 2 + (hidden + 5 * c) * 4
    mlp_bytes = row_tile * w * hidden * 4
    vmem_limit = int(min(128 * 2**20,
                         max(32 * 2**20,
                             14 * blk_bytes + 4 * weight_bytes + 6 * mlp_bytes)))

    kernel = functools.partial(_fused_block_kernel, eps=eps,
                               pool_size=pool_size, row_tile=row_tile)
    cvec = lambda a: a.reshape(1, -1)

    return pl.pallas_call(
        kernel,
        out_shape=jax.ShapeDtypeStruct((n, h, w, c), jnp.float32),
        grid_spec=pltpu.PrefetchScalarGridSpec(
            num_scalar_prefetch=0,
            grid=(n,),
            in_specs=[
                pl.BlockSpec((1, h, w, c), lambda i: (i, 0, 0, 0)),   # x
                pl.BlockSpec((1, c), lambda i: (0, 0)),               # GN1 gamma
                pl.BlockSpec((1, c), lambda i: (0, 0)),               # GN1 beta
                pl.BlockSpec((1, c), lambda i: (0, 0)),               # layer_scale_1
                pl.BlockSpec((1, c), lambda i: (0, 0)),               # GN2 gamma
                pl.BlockSpec((1, c), lambda i: (0, 0)),               # GN2 beta
                pl.BlockSpec((c, hidden), lambda i: (0, 0)),          # fc1 weight (bf16)
                pl.BlockSpec((1, hidden), lambda i: (0, 0)),          # fc1 bias
                pl.BlockSpec((hidden, c), lambda i: (0, 0)),          # fc2 weight (bf16)
                pl.BlockSpec((1, c), lambda i: (0, 0)),               # fc2 bias
                pl.BlockSpec((1, c), lambda i: (0, 0)),               # layer_scale_2
            ],
            out_specs=pl.BlockSpec((1, h, w, c), lambda i: (i, 0, 0, 0)),
        ),
        compiler_params=pltpu.CompilerParams(
            dimension_semantics=("parallel",),
            vmem_limit_bytes=vmem_limit),
    )(x_nhwc, cvec(g1), cvec(b1), cvec(ls1), cvec(g2), cvec(b2),
      w1, cvec(bb1), w2, cvec(bb2), cvec(ls2))


# ---------------------------------------------------------------------------
# PoolFormerBlock module (parameters + forward)
# ---------------------------------------------------------------------------
class PoolFormerBlockPallas:
    def __init__(self, key, dim, pool_size=3, mlp_ratio=4.0,
                 layer_scale_init_value=1e-5, eps=1e-5):
        assert pool_size % 2 == 1, "odd pool_size expected (default 3)"
        hidden = int(dim * mlp_ratio)
        self.dim, self.hidden = dim, hidden
        self.pool_size, self.eps = pool_size, eps

        k1, k2, k3, k4 = jax.random.split(key, 4)
        bound1 = 1.0 / math.sqrt(dim)       # fan_in of 1x1 conv fc1
        bound2 = 1.0 / math.sqrt(hidden)    # fan_in of 1x1 conv fc2

        # GroupNorm(1, dim) affine params (PyTorch default init).
        self.g1 = jnp.ones((dim,), jnp.float32)
        self.b1 = jnp.zeros((dim,), jnp.float32)
        self.g2 = jnp.ones((dim,), jnp.float32)
        self.b2 = jnp.zeros((dim,), jnp.float32)

        # Mlp: fc1 = Conv2d(dim, hidden, 1), fc2 = Conv2d(hidden, dim, 1).
        # Weights stored pre-transposed to (in, out) and pre-cast to bf16 for MXU.
        self.w1 = jax.random.uniform(k1, (dim, hidden), jnp.float32,
                                     -bound1, bound1).astype(jnp.bfloat16)
        self.bb1 = jax.random.uniform(k2, (hidden,), jnp.float32, -bound1, bound1)
        self.w2 = jax.random.uniform(k3, (hidden, dim), jnp.float32,
                                     -bound2, bound2).astype(jnp.bfloat16)
        self.bb2 = jax.random.uniform(k4, (dim,), jnp.float32, -bound2, bound2)

        self.ls1 = jnp.full((dim,), layer_scale_init_value, jnp.float32)
        self.ls2 = jnp.full((dim,), layer_scale_init_value, jnp.float32)
        # Dropout(drop=0) and DropPath(drop_path=0) are identities -> omitted.

    def forward_nhwc(self, x_nhwc):
        # In a full network keep NHWC across consecutive blocks and call this
        # directly, paying the NCHW<->NHWC transposes once per model.
        return poolformer_block_forward(
            x_nhwc.astype(jnp.float32), self.g1, self.b1, self.ls1,
            self.g2, self.b2, self.w1, self.bb1, self.w2, self.bb2, self.ls2,
            pool_size=self.pool_size, eps=self.eps)

    def __call__(self, x_nchw):
        x = jnp.transpose(x_nchw, (0, 2, 3, 1)).astype(jnp.float32)  # NCHW -> NHWC
        x = self.forward_nhwc(x)
        return jnp.transpose(x, (0, 3, 1, 2))                        # NHWC -> NCHW


# ---------------------------------------------------------------------------
# Pure-JAX reference (PyTorch semantics) for validation
# ---------------------------------------------------------------------------
def poolformer_reference(x, blk):
    eps = blk.eps

    def gn(v, g, b):
        m = jnp.mean(v, axis=(1, 2, 3), keepdims=True)
        va = jnp.mean((v - m) ** 2, axis=(1, 2, 3), keepdims=True)
        return ((v - m) / jnp.sqrt(va + eps)) * g[None, :, None, None] \
            + b[None, :, None, None]

    def avgpool(v, k):
        r = k // 2
        n, c, hh, ww = v.shape
        vp = jnp.pad(v, ((0, 0), (0, 0), (r, r), (r, r)))
        s = jnp.zeros_like(v)
        for dh in range(k):
            for dw in range(k):
                s = s + vp[:, :, dh:dh + hh, dw:dw + ww]
        hi = jnp.arange(hh, dtype=v.dtype)[:, None]
        wi = jnp.arange(ww, dtype=v.dtype)[None, :]
        ch = jnp.minimum(hi + r, hh - 1) - jnp.maximum(hi - r, 0) + 1
        cw = jnp.minimum(wi + r, ww - 1) - jnp.maximum(wi - r, 0) + 1
        return s / (ch * cw)

    xn1 = gn(x, blk.g1, blk.b1)
    mix = avgpool(xn1, blk.pool_size) - xn1
    x1 = x + blk.ls1[None, :, None, None] * mix

    xn2 = gn(x1, blk.g2, blk.b2)
    w1 = blk.w1.astype(jnp.float32)
    w2 = blk.w2.astype(jnp.float32)
    hid = jnp.einsum('nchw,cd->ndhw', xn2, w1) + blk.bb1[None, :, None, None]
    hid = 0.5 * hid * (1.0 + lax.erf(hid / math.sqrt(2.0)))     # exact GELU
    y = jnp.einsum('ndhw,dc->nchw', hid, w2) + blk.bb2[None, :, None, None]
    return x1 + blk.ls2[None, :, None, None] * y


# ---------------------------------------------------------------------------
if __name__ == "__main__":
    key = jax.random.PRNGKey(0)
    k_param, k_input = jax.random.split(key)

    N, dim, H, W = 2, 64, 16, 16            # small PoolFormer-like config
    blk = PoolFormerBlockPallas(k_param, dim=dim, pool_size=3, mlp_ratio=4.0)

    x = jax.random.normal(k_input, (N, dim, H, W), jnp.float32)  # NCHW
    out = jax.block_until_ready(jax.jit(blk.__call__)(x))

    assert out.shape == (N, dim, H, W), out.shape
    assert bool(jnp.all(jnp.isfinite(out)))

    ref = poolformer_reference(x, blk)
    err = float(jnp.max(jnp.abs(out - ref)))
    assert err < 2e-3, f"max abs err vs reference: {err}"

    print("KERNEL_OK")
</pallas_src>

<mosaic_0001>
module attributes {stable_mosaic.version = 11 : i64} {
  func.func @_fused_block_kernel(%arg0: i32, %arg1: memref<1x16x16x64xf32, #tpu.memory_space<vmem>>, %arg2: memref<1x64xf32, #tpu.memory_space<vmem>>, %arg3: memref<1x64xf32, #tpu.memory_space<vmem>>, %arg4: memref<1x64xf32, #tpu.memory_space<vmem>>, %arg5: memref<1x64xf32, #tpu.memory_space<vmem>>, %arg6: memref<1x64xf32, #tpu.memory_space<vmem>>, %arg7: memref<64x256xbf16, #tpu.memory_space<vmem>>, %arg8: memref<1x256xf32, #tpu.memory_space<vmem>>, %arg9: memref<256x64xbf16, #tpu.memory_space<vmem>>, %arg10: memref<1x64xf32, #tpu.memory_space<vmem>>, %arg11: memref<1x64xf32, #tpu.memory_space<vmem>>, %arg12: memref<1x16x16x64xf32, #tpu.memory_space<vmem>>) attributes {dimension_semantics = [#tpu.dimension_semantics<parallel>], iteration_bounds = array<i64: 2>, scalar_prefetch = 0 : i64, scratch_operands = 0 : i64, tpu.core_type = #tpu.core_type<tc>, window_params = [{transform_indices = @transform_0, window_bounds = array<i64: 1, 16, 16, 64>}, {pipeline_mode = #tpu.pipeline_mode<synchronous>, transform_indices = @transform_1, window_bounds = array<i64: 1, 64>}, {pipeline_mode = #tpu.pipeline_mode<synchronous>, transform_indices = @transform_2, window_bounds = array<i64: 1, 64>}, {pipeline_mode = #tpu.pipeline_mode<synchronous>, transform_indices = @transform_3, window_bounds = array<i64: 1, 64>}, {pipeline_mode = #tpu.pipeline_mode<synchronous>, transform_indices = @transform_4, window_bounds = array<i64: 1, 64>}, {pipeline_mode = #tpu.pipeline_mode<synchronous>, transform_indices = @transform_5, window_bounds = array<i64: 1, 64>}, {pipeline_mode = #tpu.pipeline_mode<synchronous>, transform_indices = @transform_6, window_bounds = array<i64: 64, 256>}, {pipeline_mode = #tpu.pipeline_mode<synchronous>, transform_indices = @transform_7, window_bounds = array<i64: 1, 256>}, {pipeline_mode = #tpu.pipeline_mode<synchronous>, transform_indices = @transform_8, window_bounds = array<i64: 256, 64>}, {pipeline_mode = #tpu.pipeline_mode<synchronous>, transform_indices = @transform_9, window_bounds = array<i64: 1, 64>}, {pipeline_mode = #tpu.pipeline_mode<synchronous>, transform_indices = @transform_10, window_bounds = array<i64: 1, 64>}, {transform_indices = @transform_11, window_bounds = array<i64: 1, 16, 16, 64>}]} {
    %c0 = arith.constant 0 : index
    %c0_0 = arith.constant 0 : index
    %c0_1 = arith.constant 0 : index
    %c0_2 = arith.constant 0 : index
    %0 = vector.load %arg1[%c0, %c0_0, %c0_1, %c0_2] : memref<1x16x16x64xf32, #tpu.memory_space<vmem>>, vector<1x16x16x64xf32>
    %1 = vector.shape_cast %0 : vector<1x16x16x64xf32> to vector<16x16x64xf32>
    %c0_3 = arith.constant 0 : index
    %c0_4 = arith.constant 0 : index
    %2 = vector.load %arg2[%c0_3, %c0_4] : memref<1x64xf32, #tpu.memory_space<vmem>>, vector<1x64xf32>
    %c0_5 = arith.constant 0 : index
    %c0_6 = arith.constant 0 : index
    %3 = vector.load %arg3[%c0_5, %c0_6] : memref<1x64xf32, #tpu.memory_space<vmem>>, vector<1x64xf32>
    %cst = arith.constant dense<0.000000e+00> : vector<16x64xf32>
    %4 = vector.multi_reduction <add>, %1, %cst [0] : vector<16x16x64xf32> to vector<16x64xf32>
    %5 = arith.mulf %1, %1 : vector<16x16x64xf32>
    %cst_7 = arith.constant dense<0.000000e+00> : vector<16x64xf32>
    %6 = vector.multi_reduction <add>, %5, %cst_7 [0] : vector<16x16x64xf32> to vector<16x64xf32>
    %cst_8 = arith.constant dense<0.000000e+00> : vector<64xf32>
    %7 = vector.multi_reduction <add>, %4, %cst_8 [0] : vector<16x64xf32> to vector<64xf32>
    %8 = vector.shape_cast %7 : vector<64xf32> to vector<1x64xf32>
    %cst_9 = arith.constant dense<0.000000e+00> : vector<64xf32>
    %9 = vector.multi_reduction <add>, %6, %cst_9 [0] : vector<16x64xf32> to vector<64xf32>
    %10 = vector.shape_cast %9 : vector<64xf32> to vector<1x64xf32>
    %cst_10 = arith.constant dense<0.000000e+00> : vector<1xf32>
    %11 = vector.multi_reduction <add>, %8, %cst_10 [1] : vector<1x64xf32> to vector<1xf32>
    %12 = vector.shape_cast %11 : vector<1xf32> to vector<1x1xf32>
    %cst_11 = arith.constant dense<0.000000e+00> : vector<1xf32>
    %13 = vector.multi_reduction <add>, %10, %cst_11 [1] : vector<1x64xf32> to vector<1xf32>
    %14 = vector.shape_cast %13 : vector<1xf32> to vector<1x1xf32>
    %cst_12 = arith.constant 6.10351563E-5 : f32
    %15 = vector.broadcast %cst_12 : f32 to vector<1x1xf32>
    %16 = arith.mulf %12, %15 : vector<1x1xf32>
    %cst_13 = arith.constant 6.10351563E-5 : f32
    %17 = vector.broadcast %cst_13 : f32 to vector<1x1xf32>
    %18 = arith.mulf %14, %17 : vector<1x1xf32>
    %19 = arith.mulf %16, %16 : vector<1x1xf32>
    %20 = arith.subf %18, %19 : vector<1x1xf32>
    %cst_14 = arith.constant 9.99999974E-6 : f32
    %21 = vector.broadcast %cst_14 : f32 to vector<1x1xf32>
    %22 = arith.addf %20, %21 : vector<1x1xf32>
    %23 = math.rsqrt %22 : vector<1x1xf32>
    %24 = vector.broadcast %23 : vector<1x1xf32> to vector<1x64xf32>
    %25 = arith.mulf %2, %24 : vector<1x64xf32>
    %26 = vector.broadcast %16 : vector<1x1xf32> to vector<1x64xf32>
    %27 = arith.mulf %26, %25 : vector<1x64xf32>
    %28 = arith.subf %3, %27 : vector<1x64xf32>
    %29 = vector.shape_cast %25 : vector<1x64xf32> to vector<1x1x64xf32>
    %30 = vector.broadcast %29 : vector<1x1x64xf32> to vector<16x16x64xf32>
    %31 = arith.mulf %1, %30 : vector<16x16x64xf32>
    %32 = vector.shape_cast %28 : vector<1x64xf32> to vector<1x1x64xf32>
    %33 = vector.broadcast %32 : vector<1x1x64xf32> to vector<16x16x64xf32>
    %34 = arith.addf %31, %33 : vector<16x16x64xf32>
    %cst_15 = arith.constant 0.000000e+00 : f32
    %35 = vector.broadcast %cst_15 : f32 to vector<16x1x64xf32>
    %36 = vector.extract_strided_slice %34 {offsets = [0, 0, 0], sizes = [16, 15, 64], strides = [1, 1, 1]} : vector<16x16x64xf32> to vector<16x15x64xf32>
    %37 = tpu.concatenate %35, %36 in 1 : vector<16x1x64xf32>, vector<16x15x64xf32> -> vector<16x16x64xf32>
    %38 = arith.addf %34, %37 : vector<16x16x64xf32>
    %39 = vector.extract_strided_slice %34 {offsets = [0, 1, 0], sizes = [16, 15, 64], strides = [1, 1, 1]} : vector<16x16x64xf32> to vector<16x15x64xf32>
    %40 = tpu.concatenate %39, %35 in 1 : vector<16x15x64xf32>, vector<16x1x64xf32> -> vector<16x16x64xf32>
    %41 = arith.addf %38, %40 : vector<16x16x64xf32>
    %cst_16 = arith.constant 0.000000e+00 : f32
    %42 = vector.broadcast %cst_16 : f32 to vector<1x16x64xf32>
    %43 = vector.extract_strided_slice %41 {offsets = [0, 0, 0], sizes = [15, 16, 64], strides = [1, 1, 1]} : vector<16x16x64xf32> to vector<15x16x64xf32>
    %44 = tpu.concatenate %42, %43 in 0 : vector<1x16x64xf32>, vector<15x16x64xf32> -> vector<16x16x64xf32>
    %45 = arith.addf %41, %44 : vector<16x16x64xf32>
    %46 = vector.extract_strided_slice %41 {offsets = [1, 0, 0], sizes = [15, 16, 64], strides = [1, 1, 1]} : vector<16x16x64xf32> to vector<15x16x64xf32>
    %47 = tpu.concatenate %46, %42 in 0 : vector<15x16x64xf32>, vector<1x16x64xf32> -> vector<16x16x64xf32>
    %48 = arith.addf %45, %47 : vector<16x16x64xf32>
    %cst_17 = arith.constant 0.111111112 : f32
    %49 = vector.broadcast %cst_17 : f32 to vector<16x16x64xf32>
    %50 = arith.mulf %48, %49 : vector<16x16x64xf32>
    %51 = tpu.iota {dimensions = array<i32: 0>} : vector<16x16x64xi32>
    %52 = tpu.iota {dimensions = array<i32: 1>} : vector<16x16x64xi32>
    %c0_i32 = arith.constant 0 : i32
    %53 = vector.broadcast %c0_i32 : i32 to vector<16x16x64xi32>
    %54 = arith.cmpi eq, %51, %53 : vector<16x16x64xi32>
    %c15_i32 = arith.constant 15 : i32
    %55 = vector.broadcast %c15_i32 : i32 to vector<16x16x64xi32>
    %56 = arith.cmpi eq, %51, %55 : vector<16x16x64xi32>
    %57 = arith.ori %54, %56 : vector<16x16x64xi1>
    %cst_18 = arith.constant 1.500000e+00 : f32
    %58 = vector.broadcast %cst_18 : f32 to vector<16x16x64xf32>
    %59 = arith.mulf %50, %58 : vector<16x16x64xf32>
    %60 = arith.select %57, %59, %50 : vector<16x16x64xi1>, vector<16x16x64xf32>
    %c0_i32_19 = arith.constant 0 : i32
    %61 = vector.broadcast %c0_i32_19 : i32 to vector<16x16x64xi32>
    %62 = arith.cmpi eq, %52, %61 : vector<16x16x64xi32>
    %c15_i32_20 = arith.constant 15 : i32
    %63 = vector.broadcast %c15_i32_20 : i32 to vector<16x16x64xi32>
    %64 = arith.cmpi eq, %52, %63 : vector<16x16x64xi32>
    %65 = arith.ori %62, %64 : vector<16x16x64xi1>
    %cst_21 = arith.constant 1.500000e+00 : f32
    %66 = vector.broadcast %cst_21 : f32 to vector<16x16x64xf32>
    %67 = arith.mulf %60, %66 : vector<16x16x64xf32>
    %68 = arith.select %65, %67, %60 : vector<16x16x64xi1>, vector<16x16x64xf32>
    %c0_22 = arith.constant 0 : index
    %c0_23 = arith.constant 0 : index
    %69 = vector.load %arg4[%c0_22, %c0_23] : memref<1x64xf32, #tpu.memory_space<vmem>>, vector<1x64xf32>
    %70 = arith.subf %68, %34 : vector<16x16x64xf32>
    %71 = vector.shape_cast %69 : vector<1x64xf32> to vector<1x1x64xf32>
    %72 = vector.broadcast %71 : vector<1x1x64xf32> to vector<16x16x64xf32>
    %73 = arith.mulf %72, %70 : vector<16x16x64xf32>
    %74 = arith.addf %1, %73 : vector<16x16x64xf32>
    %c0_24 = arith.constant 0 : index
    %c0_25 = arith.constant 0 : index
    %c0_26 = arith.constant 0 : index
    %c0_27 = arith.constant 0 : index
    %75 = vector.load %arg12[%c0_24, %c0_25, %c0_26, %c0_27] : memref<1x16x16x64xf32, #tpu.memory_space<vmem>>, vector<1x16x16x64xf32>
    %76 = vector.shape_cast %75 : vector<1x16x16x64xf32> to vector<16x16x64xf32>
    %77 = vector.shape_cast %74 : vector<16x16x64xf32> to vector<1x16x16x64xf32>
    tpu.vector_store %arg12[%c0_24, %c0_25, %c0_26, %c0_27], %77 {strides = array<i32>} : memref<1x16x16x64xf32, #tpu.memory_space<vmem>>, vector<1x16x16x64xf32>,
    %c0_28 = arith.constant 0 : index
    %c0_29 = arith.constant 0 : index
    %78 = vector.load %arg5[%c0_28, %c0_29] : memref<1x64xf32, #tpu.memory_space<vmem>>, vector<1x64xf32>
    %c0_30 = arith.constant 0 : index
    %c0_31 = arith.constant 0 : index
    %79 = vector.load %arg6[%c0_30, %c0_31] : memref<1x64xf32, #tpu.memory_space<vmem>>, vector<1x64xf32>
    %cst_32 = arith.constant dense<0.000000e+00> : vector<16x64xf32>
    %80 = vector.multi_reduction <add>, %74, %cst_32 [0] : vector<16x16x64xf32> to vector<16x64xf32>
    %81 = arith.mulf %74, %74 : vector<16x16x64xf32>
    %cst_33 = arith.constant dense<0.000000e+00> : vector<16x64xf32>
    %82 = vector.multi_reduction <add>, %81, %cst_33 [0] : vector<16x16x64xf32> to vector<16x64xf32>
    %cst_34 = arith.constant dense<0.000000e+00> : vector<64xf32>
    %83 = vector.multi_reduction <add>, %80, %cst_34 [0] : vector<16x64xf32> to vector<64xf32>
    %84 = vector.shape_cast %83 : vector<64xf32> to vector<1x64xf32>
    %cst_35 = arith.constant dense<0.000000e+00> : vector<64xf32>
    %85 = vector.multi_reduction <add>, %82, %cst_35 [0] : vector<16x64xf32> to vector<64xf32>
    %86 = vector.shape_cast %85 : vector<64xf32> to vector<1x64xf32>
    %cst_36 = arith.constant dense<0.000000e+00> : vector<1xf32>
    %87 = vector.multi_reduction <add>, %84, %cst_36 [1] : vector<1x64xf32> to vector<1xf32>
    %88 = vector.shape_cast %87 : vector<1xf32> to vector<1x1xf32>
    %cst_37 = arith.constant dense<0.000000e+00> : vector<1xf32>
    %89 = vector.multi_reduction <add>, %86, %cst_37 [1] : vector<1x64xf32> to vector<1xf32>
    %90 = vector.shape_cast %89 : vector<1xf32> to vector<1x1xf32>
    %cst_38 = arith.constant 6.10351563E-5 : f32
    %91 = vector.broadcast %cst_38 : f32 to vector<1x1xf32>
    %92 = arith.mulf %88, %91 : vector<1x1xf32>
    %cst_39 = arith.constant 6.10351563E-5 : f32
    %93 = vector.broadcast %cst_39 : f32 to vector<1x1xf32>
    %94 = arith.mulf %90, %93 : vector<1x1xf32>
    %95 = arith.mulf %92, %92 : vector<1x1xf32>
    %96 = arith.subf %94, %95 : vector<1x1xf32>
    %cst_40 = arith.constant 9.99999974E-6 : f32
    %97 = vector.broadcast %cst_40 : f32 to vector<1x1xf32>
    %98 = arith.addf %96, %97 : vector<1x1xf32>
    %99 = math.rsqrt %98 : vector<1x1xf32>
    %100 = vector.broadcast %99 : vector<1x1xf32> to vector<1x64xf32>
    %101 = arith.mulf %78, %100 : vector<1x64xf32>
    %102 = vector.broadcast %92 : vector<1x1xf32> to vector<1x64xf32>
    %103 = arith.mulf %102, %101 : vector<1x64xf32>
    %104 = arith.subf %79, %103 : vector<1x64xf32>
    %c0_41 = arith.constant 0 : index
    %c0_42 = arith.constant 0 : index
    %105 = vector.load %arg11[%c0_41, %c0_42] : memref<1x64xf32, #tpu.memory_space<vmem>>, vector<1x64xf32>
    %c0_43 = arith.constant 0 : index
    %c0_44 = arith.constant 0 : index
    %106 = vector.load %arg7[%c0_43, %c0_44] : memref<64x256xbf16, #tpu.memory_space<vmem>>, vector<64x256xbf16>
    %c0_45 = arith.constant 0 : index
    %c0_46 = arith.constant 0 : index
    %107 = vector.load %arg9[%c0_45, %c0_46] : memref<256x64xbf16, #tpu.memory_space<vmem>>, vector<256x64xbf16>
    %c0_47 = arith.constant 0 : index
    %c0_48 = arith.constant 0 : index
    %108 = vector.load %arg8[%c0_47, %c0_48] : memref<1x256xf32, #tpu.memory_space<vmem>>, vector<1x256xf32>
    %c0_49 = arith.constant 0 : index
    %c0_50 = arith.constant 0 : index
    %109 = vector.load %arg10[%c0_49, %c0_50] : memref<1x64xf32, #tpu.memory_space<vmem>>, vector<1x64xf32>
    %c0_i32_51 = arith.constant 0 : i32
    %c16_i32 = arith.constant 16 : i32
    %110 = arith.muli %c0_i32_51, %c16_i32 : i32
    %111 = tpu.assume_multiple %110, 16 : i32
    %c0_52 = arith.constant 0 : index
    %112 = arith.index_cast %111 : i32 to index
    %c0_53 = arith.constant 0 : index
    %c0_54 = arith.constant 0 : index
    %113 = vector.load %arg12[%c0_52, %112, %c0_53, %c0_54] : memref<1x16x16x64xf32, #tpu.memory_space<vmem>>, vector<1x16x16x64xf32>
    %114 = vector.shape_cast %113 : vector<1x16x16x64xf32> to vector<16x16x64xf32>
    %115 = vector.shape_cast %114 : vector<16x16x64xf32> to vector<256x64xf32>
    %116 = vector.broadcast %101 : vector<1x64xf32> to vector<256x64xf32>
    %117 = arith.mulf %115, %116 : vector<256x64xf32>
    %118 = vector.broadcast %104 : vector<1x64xf32> to vector<256x64xf32>
    %119 = arith.addf %117, %118 : vector<256x64xf32>
    %120 = arith.truncf %119 : vector<256x64xf32> to vector<256x64xbf16>
    %cst_55 = arith.constant dense<0.000000e+00> : vector<256x256xf32>
    %121 = tpu.matmul %120, %106, %cst_55 {dimension_numbers = #tpu.dot_dimension_numbers<[1], [0], [0], [1], [0, 0, 1, 1], [], []>} : vector<256x64xbf16>, vector<64x256xbf16>, vector<256x256xf32> -> vector<256x256xf32>
    %122 = vector.broadcast %108 : vector<1x256xf32> to vector<256x256xf32>
    %123 = arith.addf %121, %122 : vector<256x256xf32>
    %cst_56 = arith.constant 5.000000e-01 : f32
    %124 = vector.broadcast %cst_56 : f32 to vector<256x256xf32>
    %125 = arith.mulf %124, %123 : vector<256x256xf32>
    %cst_57 = arith.constant 4.471500e-02 : f32
    %126 = vector.broadcast %cst_57 : f32 to vector<256x256xf32>
    %127 = arith.mulf %126, %123 : vector<256x256xf32>
    %128 = arith.mulf %127, %123 : vector<256x256xf32>
    %129 = arith.mulf %128, %123 : vector<256x256xf32>
    %130 = arith.addf %123, %129 : vector<256x256xf32>
    %cst_58 = arith.constant 0.797884583 : f32
    %131 = vector.broadcast %cst_58 : f32 to vector<256x256xf32>
    %132 = arith.mulf %131, %130 : vector<256x256xf32>
    %133 = math.tanh %132 : vector<256x256xf32>
    %cst_59 = arith.constant 1.000000e+00 : f32
    %134 = vector.broadcast %cst_59 : f32 to vector<256x256xf32>
    %135 = arith.addf %134, %133 : vector<256x256xf32>
    %136 = arith.mulf %125, %135 : vector<256x256xf32>
    %137 = arith.truncf %136 : vector<256x256xf32> to vector<256x256xbf16>
    %cst_60 = arith.constant dense<0.000000e+00> : vector<256x64xf32>
    %138 = tpu.matmul %137, %107, %cst_60 {dimension_numbers = #tpu.dot_dimension_numbers<[1], [0], [0], [1], [0, 0, 1, 1], [], []>} : vector<256x256xbf16>, vector<256x64xbf16>, vector<256x64xf32> -> vector<256x64xf32>
    %139 = vector.broadcast %109 : vector<1x64xf32> to vector<256x64xf32>
    %140 = arith.addf %138, %139 : vector<256x64xf32>
    %141 = vector.broadcast %105 : vector<1x64xf32> to vector<256x64xf32>
    %142 = arith.mulf %141, %140 : vector<256x64xf32>
    %143 = arith.addf %115, %142 : vector<256x64xf32>
    %144 = vector.shape_cast %143 : vector<256x64xf32> to vector<16x16x64xf32>
    %c0_61 = arith.constant 0 : index
    %145 = arith.index_cast %111 : i32 to index
    %c0_62 = arith.constant 0 : index
    %c0_63 = arith.constant 0 : index
    %146 = vector.load %arg12[%c0_61, %145, %c0_62, %c0_63] : memref<1x16x16x64xf32, #tpu.memory_space<vmem>>, vector<1x16x16x64xf32>
    %147 = vector.shape_cast %146 : vector<1x16x16x64xf32> to vector<16x16x64xf32>
    %148 = vector.shape_cast %144 : vector<16x16x64xf32> to vector<1x16x16x64xf32>
    tpu.vector_store %arg12[%c0_61, %145, %c0_62, %c0_63], %148 {strides = array<i32>} : memref<1x16x16x64xf32, #tpu.memory_space<vmem>>, vector<1x16x16x64xf32>,
    %c1_i32 = arith.constant 1 : i32
    return
  }
  func.func @transform_0(%arg0: i32) -> (i32, i32, i32, i32) {
    %c0_i32 = arith.constant 0 : i32
    %c0_i32_0 = arith.constant 0 : i32
    %c0_i32_1 = arith.constant 0 : i32
    %c0_i32_2 = arith.constant 0 : i32
    return %arg0, %c0_i32, %c0_i32_0, %c0_i32_1 : i32, i32, i32, i32
  }
  func.func @transform_1(%arg0: i32) -> (i32, i32) {
    %c0_i32 = arith.constant 0 : i32
    %c0_i32_0 = arith.constant 0 : i32
    %c0_i32_1 = arith.constant 0 : i32
    return %c0_i32, %c0_i32_0 : i32, i32
  }
  func.func @transform_2(%arg0: i32) -> (i32, i32) {
    %c0_i32 = arith.constant 0 : i32
    %c0_i32_0 = arith.constant 0 : i32
    %c0_i32_1 = arith.constant 0 : i32
    return %c0_i32, %c0_i32_0 : i32, i32
  }
  func.func @transform_3(%arg0: i32) -> (i32, i32) {
    %c0_i32 = arith.constant 0 : i32
    %c0_i32_0 = arith.constant 0 : i32
    %c0_i32_1 = arith.constant 0 : i32
    return %c0_i32, %c0_i32_0 : i32, i32
  }
  func.func @transform_4(%arg0: i32) -> (i32, i32) {
    %c0_i32 = arith.constant 0 : i32
    %c0_i32_0 = arith.constant 0 : i32
    %c0_i32_1 = arith.constant 0 : i32
    return %c0_i32, %c0_i32_0 : i32, i32
  }
  func.func @transform_5(%arg0: i32) -> (i32, i32) {
    %c0_i32 = arith.constant 0 : i32
    %c0_i32_0 = arith.constant 0 : i32
    %c0_i32_1 = arith.constant 0 : i32
    return %c0_i32, %c0_i32_0 : i32, i32
  }
  func.func @transform_6(%arg0: i32) -> (i32, i32) {
    %c0_i32 = arith.constant 0 : i32
    %c0_i32_0 = arith.constant 0 : i32
    %c0_i32_1 = arith.constant 0 : i32
    return %c0_i32, %c0_i32_0 : i32, i32
  }
  func.func @transform_7(%arg0: i32) -> (i32, i32) {
    %c0_i32 = arith.constant 0 : i32
    %c0_i32_0 = arith.constant 0 : i32
    %c0_i32_1 = arith.constant 0 : i32
    return %c0_i32, %c0_i32_0 : i32, i32
  }
  func.func @transform_8(%arg0: i32) -> (i32, i32) {
    %c0_i32 = arith.constant 0 : i32
    %c0_i32_0 = arith.constant 0 : i32
    %c0_i32_1 = arith.constant 0 : i32
    return %c0_i32, %c0_i32_0 : i32, i32
  }
  func.func @transform_9(%arg0: i32) -> (i32, i32) {
    %c0_i32 = arith.constant 0 : i32
    %c0_i32_0 = arith.constant 0 : i32
    %c0_i32_1 = arith.constant 0 : i32
    return %c0_i32, %c0_i32_0 : i32, i32
  }
  func.func @transform_10(%arg0: i32) -> (i32, i32) {
    %c0_i32 = arith.constant 0 : i32
    %c0_i32_0 = arith.constant 0 : i32
    %c0_i32_1 = arith.constant 0 : i32
    return %c0_i32, %c0_i32_0 : i32, i32
  }
  func.func @transform_11(%arg0: i32) -> (i32, i32, i32, i32) {
    %c0_i32 = arith.constant 0 : i32
    %c0_i32_0 = arith.constant 0 : i32
    %c0_i32_1 = arith.constant 0 : i32
    %c0_i32_2 = arith.constant 0 : i32
    return %arg0, %c0_i32, %c0_i32_0, %c0_i32_1 : i32, i32, i32, i32
  }
}

</mosaic_0001>

<llo_original>
// kernel: a_call__.1
$region0: #{a_call__.1}
  #allocation0 [shape = 'u32[]', space=smem, size = 0x4, offset = 0x4, fixed_abs, tag = 'smem constant byte address 0x4 - core index']
  #allocation1 [shape = 'u32[144,128]{1,0:T(1,128)}', space=vmem, size = 0x12000, scoped, tag = 'internal scratch']
  %s0 = inlined_call_operand.hbm [shape: f32[2,16,16,64], index: 0, kind: input, shape index: {}]
  %s1 = inlined_call_operand.vmem [shape: f32[1,64], index: 1, kind: input, shape index: {}, may-alias: {1,4}]
  %s2 = inlined_call_operand.vmem [shape: f32[1,64], index: 2, kind: input, shape index: {}, may-alias: {2,5}]
  %s3 = inlined_call_operand.vmem [shape: f32[1,64], index: 3, kind: input, shape index: {}, may-alias: {3,10}]
  %s4 = inlined_call_operand.vmem [shape: f32[1,64], index: 4, kind: input, shape index: {}, may-alias: {1,4}]
  %s5 = inlined_call_operand.vmem [shape: f32[1,64], index: 5, kind: input, shape index: {}, may-alias: {2,5}]
  %s6 = inlined_call_operand.vmem [shape: bf16[64,256], index: 6, kind: input, shape index: {}]
  %s7 = inlined_call_operand.vmem [shape: f32[1,256], index: 7, kind: input, shape index: {}]
  %s8 = inlined_call_operand.vmem [shape: bf16[256,64], index: 8, kind: input, shape index: {}]
  %s9 = inlined_call_operand.vmem [shape: f32[1,64], index: 9, kind: input, shape index: {}]
  %s10 = inlined_call_operand.vmem [shape: f32[1,64], index: 10, kind: input, shape index: {}, may-alias: {3,10}]
  %s11 = inlined_call_operand.hbm [shape: f32[2,16,16,64], index: 11, kind: output, shape index: {}]
  %s12 = sld [smem:[#allocation0]]
  $region81: #{a_call__.1} parent=0
    _
  %s14 = ssub.s32 1, %s12
  %s15 = scalar_select 0, %s14, %s12
  $region1: #{a_call__.1} parent=0
    #allocation2 [shape = 'u8[262144]{0}', space=vmem, size = 0x40000, scoped, tag = 'input window, operand 0']
    #allocation3 [shape = 's32[2]{0}', space=sflag, size = 0x8, scoped, tag = 'scoped memory for a_call__.1']
    #allocation4 [shape = 's32[2]{0}', space=sflag, size = 0x8, scoped, tag = 'scoped memory for a_call__.1']
    #allocation5 [shape = 'u8[262144]{0}', space=vmem, size = 0x40000, scoped, tag = 'output window, operand 0']
    %16 = vsyncpa [#allocation3], 0
    %s17 = scalar_lea.sflag [#allocation3], 1
    %18 = vsyncpa %s17, 0
    %19 = vsyncpa [#allocation4], 0
    %s20 = scalar_lea.sflag [#allocation4], 1
    %21 = vsyncpa %s20, 0
    loop: start=0, step=1, limit=4
    $region2: #{a_call__.1} parent=1 // loop_pre_header
      _
    $region3: #{a_call__.1} parent=1 // loop_header
      %s23 = sphi 0, %s27
      %p24 = scmp.ge.s32.totalorder %s23, 4
      %s33 = sphi 0, %s35
      %s36 = sphi 0, %s33
      %s37 = sphi 0, %s36
      %s53 = sphi 0, %s37
      %s57 = sphi 0, %s57
      %s59 = sphi 0, %s57
      %s60 = sphi 0, %s59
      %s74 = sphi 0, %s60
      %s78 = sphi 0, %s78
      %s80 = sphi 0, %s78
      %s81 = sphi 0, %s80
      %s95 = sphi 0, %s81
      %s99 = sphi 0, %s99
      %s101 = sphi 0, %s99
      %s102 = sphi 0, %s101
      %s116 = sphi 0, %s102
      %s120 = sphi 0, %s120
      %s122 = sphi 0, %s120
      %s123 = sphi 0, %s122
      %s137 = sphi 0, %s123
      %s141 = sphi 0, %s141
      %s143 = sphi 0, %s141
      %s144 = sphi 0, %s143
      %s158 = sphi 0, %s144
      %s162 = sphi 0, %s162
      %s164 = sphi 0, %s162
      %s165 = sphi 0, %s164
      %s179 = sphi 0, %s165
      %s183 = sphi 0, %s183
      %s185 = sphi 0, %s183
      %s186 = sphi 0, %s185
      %s200 = sphi 0, %s186
      %s204 = sphi 0, %s204
      %s206 = sphi 0, %s204
      %s207 = sphi 0, %s206
      %s221 = sphi 0, %s207
      %s225 = sphi 0, %s225
      %s227 = sphi 0, %s225
      %s228 = sphi 0, %s227
      %s242 = sphi 0, %s228
      %s246 = sphi 0, %s246
      %s248 = sphi 0, %s246
      %s249 = sphi 0, %s248
      %s263 = sphi 0, %s249
      %s269 = sphi 0, %s271
      %s272 = sphi 0, %s269
      %s273 = sphi 0, %s272
      %s289 = sphi 0, %s273
    $region4: #{a_call__.1} parent=1 // loop_header_branch
      %26 = sbr.rel (%p24) target = $region8
    $region5: #{a_call__.1} parent=1 // loop_body
      %s28 = ssub.s32 %s23, 1
      %s29 = ssub.s32 %s23, 2
      %s30 = sadd.s32 %s23, 1
      %s31 = ssub.s32 %s23, %s30
      %p32 = scmp.eq.s32.totalorder %s31, 0
      %s34 = sadd.s32 %s33, 1
      %s35 = scalar_select %p32, %s33, %s34
      %p38 = pneg %p32
      %p39 = scmp.eq.s32.totalorder %s23, 1
      %p40 = por %p38, %p39
      %p41 = scmp.ne.s32.totalorder %s33, %s36
      %p42 = scmp.eq.s32.totalorder %s23, 0
      %p43 = por %p41, %p42
      %p44 = scmp.ne.s32.totalorder %s33, %s36
      %p45 = scmp.eq.s32.totalorder %s28, 1
      %p46 = por %p44, %p45
      %p47 = scmp.ne.s32.totalorder %s36, %s37
      %p48 = scmp.eq.s32.totalorder %s28, 0
      %p49 = por %p47, %p48
      %p50 = scmp.ne.s32.totalorder %s36, %s37
      %p51 = scmp.eq.s32.totalorder %s29, 1
      %p52 = por %p50, %p51
      %p54 = scmp.ne.s32.totalorder %s37, %s53
      %p55 = scmp.eq.s32.totalorder %s29, 0
      %p56 = por %p54, %p55
      %s58 = sadd.s32 %s57, 1
      %p61 = scmp.eq.s32.totalorder %s23, 1
      %p62 = scmp.ne.s32.totalorder %s57, %s59
      %p63 = scmp.eq.s32.totalorder %s23, 0
      %p64 = por %p62, %p63
      %p65 = scmp.ne.s32.totalorder %s57, %s59
      %p66 = scmp.eq.s32.totalorder %s28, 1
      %p67 = por %p65, %p66
      %p68 = scmp.ne.s32.totalorder %s59, %s60
      %p69 = scmp.eq.s32.totalorder %s28, 0
      %p70 = por %p68, %p69
      %p71 = scmp.ne.s32.totalorder %s59, %s60
      %p72 = scmp.eq.s32.totalorder %s29, 1
      %p73 = por %p71, %p72
      %p75 = scmp.ne.s32.totalorder %s60, %s74
      %p76 = scmp.eq.s32.totalorder %s29, 0
      %p77 = por %p75, %p76
      %s79 = sadd.s32 %s78, 1
      %p82 = scmp.eq.s32.totalorder %s23, 1
      %p83 = scmp.ne.s32.totalorder %s78, %s80
      %p84 = scmp.eq.s32.totalorder %s23, 0
      %p85 = por %p83, %p84
      %p86 = scmp.ne.s32.totalorder %s78, %s80
      %p87 = scmp.eq.s32.totalorder %s28, 1
      %p88 = por %p86, %p87
      %p89 = scmp.ne.s32.totalorder %s80, %s81
      %p90 = scmp.eq.s32.totalorder %s28, 0
      %p91 = por %p89, %p90
      %p92 = scmp.ne.s32.totalorder %s80, %s81
      %p93 = scmp.eq.s32.totalorder %s29, 1
      %p94 = por %p92, %p93
      %p96 = scmp.ne.s32.totalorder %s81, %s95
      %p97 = scmp.eq.s32.totalorder %s29, 0
      %p98 = por %p96, %p97
      %s100 = sadd.s32 %s99, 1
      %p103 = scmp.eq.s32.totalorder %s23, 1
      %p104 = scmp.ne.s32.totalorder %s99, %s101
      %p105 = scmp.eq.s32.totalorder %s23, 0
      %p106 = por %p104, %p105
      %p107 = scmp.ne.s32.totalorder %s99, %s101
      %p108 = scmp.eq.s32.totalorder %s28, 1
      %p109 = por %p107, %p108
      %p110 = scmp.ne.s32.totalorder %s101, %s102
      %p111 = scmp.eq.s32.totalorder %s28, 0
      %p112 = por %p110, %p111
      %p113 = scmp.ne.s32.totalorder %s101, %s102
      %p114 = scmp.eq.s32.totalorder %s29, 1
      %p115 = por %p113, %p114
      %p117 = scmp.ne.s32.totalorder %s102, %s116
      %p118 = scmp.eq.s32.totalorder %s29, 0
      %p119 = por %p117, %p118
      %s121 = sadd.s32 %s120, 1
      %p124 = scmp.eq.s32.totalorder %s23, 1
      %p125 = scmp.ne.s32.totalorder %s120, %s122
      %p126 = scmp.eq.s32.totalorder %s23, 0
      %p127 = por %p125, %p126
      %p128 = scmp.ne.s32.totalorder %s120, %s122
      %p129 = scmp.eq.s32.totalorder %s28, 1
      %p130 = por %p128, %p129
      %p131 = scmp.ne.s32.totalorder %s122, %s123
      %p132 = scmp.eq.s32.totalorder %s28, 0
      %p133 = por %p131, %p132
      %p134 = scmp.ne.s32.totalorder %s122, %s123
      %p135 = scmp.eq.s32.totalorder %s29, 1
      %p136 = por %p134, %p135
      %p138 = scmp.ne.s32.totalorder %s123, %s137
      %p139 = scmp.eq.s32.totalorder %s29, 0
      %p140 = por %p138, %p139
      %s142 = sadd.s32 %s141, 1
      %p145 = scmp.eq.s32.totalorder %s23, 1
      %p146 = scmp.ne.s32.totalorder %s141, %s143
      %p147 = scmp.eq.s32.totalorder %s23, 0
      %p148 = por %p146, %p147
      %p149 = scmp.ne.s32.totalorder %s141, %s143
      %p150 = scmp.eq.s32.totalorder %s28, 1
      %p151 = por %p149, %p150
      %p152 = scmp.ne.s32.totalorder %s143, %s144
      %p153 = scmp.eq.s32.totalorder %s28, 0
      %p154 = por %p152, %p153
      %p155 = scmp.ne.s32.totalorder %s143, %s144
      %p156 = scmp.eq.s32.totalorder %s29, 1
      %p157 = por %p155, %p156
      %p159 = scmp.ne.s32.totalorder %s144, %s158
      %p160 = scmp.eq.s32.totalorder %s29, 0
      %p161 = por %p159, %p160
      %s163 = sadd.s32 %s162, 1
      %p166 = scmp.eq.s32.totalorder %s23, 1
      %p167 = scmp.ne.s32.totalorder %s162, %s164
      %p168 = scmp.eq.s32.totalorder %s23, 0
      %p169 = por %p167, %p168
      %p170 = scmp.ne.s32.totalorder %s162, %s164
      %p171 = scmp.eq.s32.totalorder %s28, 1
      %p172 = por %p170, %p171
      %p173 = scmp.ne.s32.totalorder %s164, %s165
      %p174 = scmp.eq.s32.totalorder %s28, 0
      %p175 = por %p173, %p174
      %p176 = scmp.ne.s32.totalorder %s164, %s165
      %p177 = scmp.eq.s32.totalorder %s29, 1
      %p178 = por %p176, %p177
      %p180 = scmp.ne.s32.totalorder %s165, %s179
      %p181 = scmp.eq.s32.totalorder %s29, 0
      %p182 = por %p180, %p181
      %s184 = sadd.s32 %s183, 1
      %p187 = scmp.eq.s32.totalorder %s23, 1
      %p188 = scmp.ne.s32.totalorder %s183, %s185
      %p189 = scmp.eq.s32.totalorder %s23, 0
      %p190 = por %p188, %p189
      %p191 = scmp.ne.s32.totalorder %s183, %s185
      %p192 = scmp.eq.s32.totalorder %s28, 1
      %p193 = por %p191, %p192
      %p194 = scmp.ne.s32.totalorder %s185, %s186
      %p195 = scmp.eq.s32.totalorder %s28, 0
      %p196 = por %p194, %p195
      %p197 = scmp.ne.s32.totalorder %s185, %s186
      %p198 = scmp.eq.s32.totalorder %s29, 1
      %p199 = por %p197, %p198
      %p201 = scmp.ne.s32.totalorder %s186, %s200
      %p202 = scmp.eq.s32.totalorder %s29, 0
      %p203 = por %p201, %p202
      %s205 = sadd.s32 %s204, 1
      %p208 = scmp.eq.s32.totalorder %s23, 1
      %p209 = scmp.ne.s32.totalorder %s204, %s206
      %p210 = scmp.eq.s32.totalorder %s23, 0
      %p211 = por %p209, %p210
      %p212 = scmp.ne.s32.totalorder %s204, %s206
      %p213 = scmp.eq.s32.totalorder %s28, 1
      %p214 = por %p212, %p213
      %p215 = scmp.ne.s32.totalorder %s206, %s207
      %p216 = scmp.eq.s32.totalorder %s28, 0
      %p217 = por %p215, %p216
      %p218 = scmp.ne.s32.totalorder %s206, %s207
      %p219 = scmp.eq.s32.totalorder %s29, 1
      %p220 = por %p218, %p219
      %p222 = scmp.ne.s32.totalorder %s207, %s221
      %p223 = scmp.eq.s32.totalorder %s29, 0
      %p224 = por %p222, %p223
      %s226 = sadd.s32 %s225, 1
      %p229 = scmp.eq.s32.totalorder %s23, 1
      %p230 = scmp.ne.s32.totalorder %s225, %s227
      %p231 = scmp.eq.s32.totalorder %s23, 0
      %p232 = por %p230, %p231
      %p233 = scmp.ne.s32.totalorder %s225, %s227
      %p234 = scmp.eq.s32.totalorder %s28, 1
      %p235 = por %p233, %p234
      %p236 = scmp.ne.s32.totalorder %s227, %s228
      %p237 = scmp.eq.s32.totalorder %s28, 0
      %p238 = por %p236, %p237
      %p239 = scmp.ne.s32.totalorder %s227, %s228
      %p240 = scmp.eq.s32.totalorder %s29, 1
      %p241 = por %p239, %p240
      %p243 = scmp.ne.s32.totalorder %s228, %s242
      %p244 = scmp.eq.s32.totalorder %s29, 0
      %p245 = por %p243, %p244
      %s247 = sadd.s32 %s246, 1
      %p250 = scmp.eq.s32.totalorder %s23, 1
      %p251 = scmp.ne.s32.totalorder %s246, %s248
      %p252 = scmp.eq.s32.totalorder %s23, 0
      %p253 = por %p251, %p252
      %p254 = scmp.ne.s32.totalorder %s246, %s248
      %p255 = scmp.eq.s32.totalorder %s28, 1
      %p256 = por %p254, %p255
      %p257 = scmp.ne.s32.totalorder %s248, %s249
      %p258 = scmp.eq.s32.totalorder %s28, 0
      %p259 = por %p257, %p258
      %p260 = scmp.ne.s32.totalorder %s248, %s249
      %p261 = scmp.eq.s32.totalorder %s29, 1
      %p262 = por %p260, %p261
      %p264 = scmp.ne.s32.totalorder %s249, %s263
      %p265 = scmp.eq.s32.totalorder %s29, 0
      %p266 = por %p264, %p265
      %s267 = ssub.s32 %s23, %s30
      %p268 = scmp.eq.s32.totalorder %s267, 0
      %s270 = sadd.s32 %s269, 1
      %s271 = scalar_select %p268, %s269, %s270
      %p274 = pneg %p268
      %p275 = scmp.eq.s32.totalorder %s23, 1
      %p276 = por %p274, %p275
      %p277 = scmp.ne.s32.totalorder %s269, %s272
      %p278 = scmp.eq.s32.totalorder %s23, 0
      %p279 = por %p277, %p278
      %p280 = scmp.ne.s32.totalorder %s269, %s272
      %p281 = scmp.eq.s32.totalorder %s28, 1
      %p282 = por %p280, %p281
      %p283 = scmp.ne.s32.totalorder %s272, %s273
      %p284 = scmp.eq.s32.totalorder %s28, 0
      %p285 = por %p283, %p284
      %p286 = scmp.ne.s32.totalorder %s272, %s273
      %p287 = scmp.eq.s32.totalorder %s29, 1
      %p288 = por %p286, %p287
      %p290 = scmp.ne.s32.totalorder %s273, %s289
      %p291 = scmp.eq.s32.totalorder %s29, 0
      %p292 = por %p290, %p291
      %p293 = scmp.le.s32.totalorder 1, %s23
      %p294 = scmp.lt.s32.totalorder %s23, 3
      %p295 = pnand %p293, %p294
      %p296 = pneg %p295
      // Predicated region
      $region9: #{a_call__.1} parent=5 // pred_check
        _
      $region10: #{a_call__.1} parent=5 // pred_check_branch
        %298 = sbr.rel (%p295) target = $region12
      $region11: #{a_call__.1} parent=5 // pred_region
        %s299 = ssub.s32 %s23, 1
        // Predicated region
        $region13: #{a_call__.1} parent=11 // pred_check
          %p300 = pneg %p70
        $region14: #{a_call__.1} parent=11 // pred_check_branch
          %302 = sbr.rel (%p300) target = $region16
        $region15: #{a_call__.1} parent=11 // pred_region
          _
        $region16: #{a_call__.1} parent=11 // pred_fallthru
          _
        // Predicated region
        $region17: #{a_call__.1} parent=11 // pred_check
          %p303 = pneg %p91
        $region18: #{a_call__.1} parent=11 // pred_check_branch
          %305 = sbr.rel (%p303) target = $region20
        $region19: #{a_call__.1} parent=11 // pred_region
          _
        $region20: #{a_call__.1} parent=11 // pred_fallthru
          _
        // Predicated region
        $region21: #{a_call__.1} parent=11 // pred_check
          %p306 = pneg %p112
        $region22: #{a_call__.1} parent=11 // pred_check_branch
          %308 = sbr.rel (%p306) target = $region24
        $region23: #{a_call__.1} parent=11 // pred_region
          _
        $region24: #{a_call__.1} parent=11 // pred_fallthru
          _
        // Predicated region
        $region25: #{a_call__.1} parent=11 // pred_check
          %p309 = pneg %p133
        $region26: #{a_call__.1} parent=11 // pred_check_branch
          %311 = sbr.rel (%p309) target = $region28
        $region27: #{a_call__.1} parent=11 // pred_region
          _
        $region28: #{a_call__.1} parent=11 // pred_fallthru
          _
        // Predicated region
        $region29: #{a_call__.1} parent=11 // pred_check
          %p312 = pneg %p154
        $region30: #{a_call__.1} parent=11 // pred_check_branch
          %314 = sbr.rel (%p312) target = $region32
        $region31: #{a_call__.1} parent=11 // pred_region
          _
        $region32: #{a_call__.1} parent=11 // pred_fallthru
          _
        // Predicated region
        $region33: #{a_call__.1} parent=11 // pred_check
          %p315 = pneg %p175
        $region34: #{a_call__.1} parent=11 // pred_check_branch
          %317 = sbr.rel (%p315) target = $region36
        $region35: #{a_call__.1} parent=11 // pred_region
          _
        $region36: #{a_call__.1} parent=11 // pred_fallthru
          _
        // Predicated region
        $region37: #{a_call__.1} parent=11 // pred_check
          %p318 = pneg %p196
        $region38: #{a_call__.1} parent=11 // pred_check_branch
          %320 = sbr.rel (%p318) target = $region40
        $region39: #{a_call__.1} parent=11 // pred_region
          _
        $region40: #{a_call__.1} parent=11 // pred_fallthru
          _
        // Predicated region
        $region41: #{a_call__.1} parent=11 // pred_check
          %p321 = pneg %p217
        $region42: #{a_call__.1} parent=11 // pred_check_branch
          %323 = sbr.rel (%p321) target = $region44
        $region43: #{a_call__.1} parent=11 // pred_region
          _
        $region44: #{a_call__.1} parent=11 // pred_fallthru
          _
        // Predicated region
        $region45: #{a_call__.1} parent=11 // pred_check
          %p324 = pneg %p238
        $region46: #{a_call__.1} parent=11 // pred_check_branch
          %326 = sbr.rel (%p324) target = $region48
        $region47: #{a_call__.1} parent=11 // pred_region
          _
        $region48: #{a_call__.1} parent=11 // pred_fallthru
          _
        // Predicated region
        $region49: #{a_call__.1} parent=11 // pred_check
          %p327 = pneg %p259
        $region50: #{a_call__.1} parent=11 // pred_check_branch
          %329 = sbr.rel (%p327) target = $region52
        $region51: #{a_call__.1} parent=11 // pred_region
          _
        $region52: #{a_call__.1} parent=11 // pred_fallthru
          _
      $region12: #{a_call__.1} parent=5 // pred_fallthru
        _
      %p330 = scmp.lt.s32.totalorder %s23, 2
      // Predicated region
      $region53: #{a_call__.1} parent=5 // pred_check
        %p331 = pneg %p330
      $region54: #{a_call__.1} parent=5 // pred_check_branch
        %333 = sbr.rel (%p331) target = $region56
      $region55: #{a_call__.1} parent=5 // pred_region
        // Predicated region
        $region57: #{a_call__.1} parent=55 // pred_check
          %p334 = pneg %p43
        $region58: #{a_call__.1} parent=55 // pred_check_branch
          %336 = sbr.rel (%p334) target = $region60
        $region59: #{a_call__.1} parent=55 // pred_region
          %s337 = sand.u32 %s33, 1
          %s338 = scalar_lea.sflag [#allocation3], %s337
          %s339 = sand.u32 %s33, 1
          %s340 = smul.addr %s339, 256
          %s341 = scalar_lea.vmem [#allocation2], %s340
          %s343 = ssub.s32 4096, 4096
          %344 = vsyncadd %s338, %s343
          %s345 = smul.addr %s23, 32
          %s346 = smul.addr %s345, 128
          %s347 = scalar_lea.hbm %s0, %s346
          %s348 = sshll.u32 %s341, 4
          %s349 = int_to_ptr.vmem [resolvable:$true] %s348
          %354 = dma.hbm_to_vmem [thread:$0]  %s347, 4096, %s349, %s338, 128, 128, 8
        $region60: #{a_call__.1} parent=55 // pred_fallthru
          _
      $region56: #{a_call__.1} parent=5 // pred_fallthru
        _
      %p355 = scmp.le.s32.totalorder 1, %s23
      %p356 = scmp.lt.s32.totalorder %s23, 3
      %p357 = pnand %p355, %p356
      %p358 = pneg %p357
      // Predicated region
      $region61: #{a_call__.1} parent=5 // pred_check
        _
      $region62: #{a_call__.1} parent=5 // pred_check_branch
        %360 = sbr.rel (%p357) target = $region64
      $region63: #{a_call__.1} parent=5 // pred_region
        %s361 = ssub.s32 %s23, 1
        %s362 = sand.u32 %s36, 1
        %s363 = scalar_lea.sflag [#allocation3], %s362
        %s364 = sand.u32 %s36, 1
        %s365 = smul.addr %s364, 256
        %s366 = scalar_lea.vmem [#allocation2], %s365
        // Predicated region
        $region65: #{a_call__.1} parent=63 // pred_check
          %p367 = pneg %p49
        $region66: #{a_call__.1} parent=63 // pred_check_branch
          %369 = sbr.rel (%p367) target = $region68
        $region67: #{a_call__.1} parent=63 // pred_region
          %370 = dma.done %s363, 4096
        $region68: #{a_call__.1} parent=63 // pred_fallthru
          _
        %s371 = sand.u32 %s36, 1
        %s372 = scalar_lea.sflag [#allocation3], %s371
        %s373 = sand.u32 %s36, 1
        %s374 = smul.addr %s373, 256
        %s375 = scalar_lea.vmem [#allocation2], %s374
        %p376 = pneg %p49
        %p377 = pneg %p46
        %p378 = pneg %p70
        %p379 = pneg %p67
        %p380 = pneg %p91
        %p381 = pneg %p88
        %p382 = pneg %p112
        %p383 = pneg %p109
        %p384 = pneg %p133
        %p385 = pneg %p130
        %p386 = pneg %p154
        %p387 = pneg %p151
        %p388 = pneg %p175
        %p389 = pneg %p172
        %p390 = pneg %p196
        %p391 = pneg %p193
        %p392 = pneg %p217
        %p393 = pneg %p214
        %p394 = pneg %p238
        %p395 = pneg %p235
        %p396 = pneg %p259
        %p397 = pneg %p256
        %p398 = pneg %p285
        %p399 = pneg %p282
        %s400 = sand.u32 %s272, 1
        %s401 = scalar_lea.sflag [#allocation4], %s400
        %s402 = sand.u32 %s272, 1
        %s403 = smul.addr %s402, 256
        %s404 = scalar_lea.vmem [#allocation5], %s403
        %v406 = vld [vmem:[%s366] sm:$0xff]
        %v407 = vld [vmem:[%s366 + $0x8] sm:$0xff]
        %v408 = vld [vmem:[%s366 + $0x10] sm:$0xff]
        %v409 = vld [vmem:[%s366 + $0x18] sm:$0xff]
        %v410 = vld [vmem:[%s366 + $0x20] sm:$0xff]
        %v411 = vld [vmem:[%s366 + $0x28] sm:$0xff]
        %v412 = vld [vmem:[%s366 + $0x30] sm:$0xff]
        %v413 = vld [vmem:[%s366 + $0x38] sm:$0xff]
        %v414 = vld [vmem:[%s366 + $0x40] sm:$0xff]
        %v415 = vld [vmem:[%s366 + $0x48] sm:$0xff]
        %v416 = vld [vmem:[%s366 + $0x50] sm:$0xff]
        %v417 = vld [vmem:[%s366 + $0x58] sm:$0xff]
        %v418 = vld [vmem:[%s366 + $0x60] sm:$0xff]
        %v419 = vld [vmem:[%s366 + $0x68] sm:$0xff]
        %v420 = vld [vmem:[%s366 + $0x70] sm:$0xff]
        %v421 = vld [vmem:[%s366 + $0x78] sm:$0xff]
        %v422 = vld [vmem:[%s366 + $0x80] sm:$0xff]
        %v423 = vld [vmem:[%s366 + $0x88] sm:$0xff]
        %v424 = vld [vmem:[%s366 + $0x90] sm:$0xff]
        %v425 = vld [vmem:[%s366 + $0x98] sm:$0xff]
        %v426 = vld [vmem:[%s366 + $0xa0] sm:$0xff]
        %v427 = vld [vmem:[%s366 + $0xa8] sm:$0xff]
        %v428 = vld [vmem:[%s366 + $0xb0] sm:$0xff]
        %v429 = vld [vmem:[%s366 + $0xb8] sm:$0xff]
        %v430 = vld [vmem:[%s366 + $0xc0] sm:$0xff]
        %v431 = vld [vmem:[%s366 + $0xc8] sm:$0xff]
        %v432 = vld [vmem:[%s366 + $0xd0] sm:$0xff]
        %v433 = vld [vmem:[%s366 + $0xd8] sm:$0xff]
        %v434 = vld [vmem:[%s366 + $0xe0] sm:$0xff]
        %v435 = vld [vmem:[%s366 + $0xe8] sm:$0xff]
        %v436 = vld [vmem:[%s366 + $0xf0] sm:$0xff]
        %v437 = vld [vmem:[%s366 + $0xf8] sm:$0xff]
        %v438 = vld [vmem:[%s1] sm:$0x1]
        %v439 = vld [vmem:[%s2] sm:$0x1]
        %vm440 = vcmask 523264
        %v441 = vsel %vm440, %v406, 0.0
        %v442 = vsel %vm440, %v408, 0.0
        %v443 = vadd.f32 %v441, %v442
        %v444 = vsel %vm440, %v410, 0.0
        %v445 = vadd.f32 %v443, %v444
        %v446 = vsel %vm440, %v412, 0.0
        %v447 = vadd.f32 %v445, %v446
        %v448 = vsel %vm440, %v414, 0.0
        %v449 = vadd.f32 %v447, %v448
        %v450 = vsel %vm440, %v416, 0.0
        %v451 = vadd.f32 %v449, %v450
        %v452 = vsel %vm440, %v418, 0.0
        %v453 = vadd.f32 %v451, %v452
        %v454 = vsel %vm440, %v420, 0.0
        %v455 = vadd.f32 %v453, %v454
        %v456 = vsel %vm440, %v422, 0.0
        %v457 = vadd.f32 %v455, %v456
        %v458 = vsel %vm440, %v424, 0.0
        %v459 = vadd.f32 %v457, %v458
        %v460 = vsel %vm440, %v426, 0.0
        %v461 = vadd.f32 %v459, %v460
        %v462 = vsel %vm440, %v428, 0.0
        %v463 = vadd.f32 %v461, %v462
        %v464 = vsel %vm440, %v430, 0.0
        %v465 = vadd.f32 %v463, %v464
        %v466 = vsel %vm440, %v432, 0.0
        %v467 = vadd.f32 %v465, %v466
        %v468 = vsel %vm440, %v434, 0.0
        %v469 = vadd.f32 %v467, %v468
        %v470 = vsel %vm440, %v436, 0.0
        %v471 = vadd.f32 %v469, %v470
        %v472 = vsel %vm440, %v407, 0.0
        %v473 = vsel %vm440, %v409, 0.0
        %v474 = vadd.f32 %v472, %v473
        %v475 = vsel %vm440, %v411, 0.0
        %v476 = vadd.f32 %v474, %v475
        %v477 = vsel %vm440, %v413, 0.0
        %v478 = vadd.f32 %v476, %v477
        %v479 = vsel %vm440, %v415, 0.0
        %v480 = vadd.f32 %v478, %v479
        %v481 = vsel %vm440, %v417, 0.0
        %v482 = vadd.f32 %v480, %v481
        %v483 = vsel %vm440, %v419, 0.0
        %v484 = vadd.f32 %v482, %v483
        %v485 = vsel %vm440, %v421, 0.0
        %v486 = vadd.f32 %v484, %v485
        %v487 = vsel %vm440, %v423, 0.0
        %v488 = vadd.f32 %v486, %v487
        %v489 = vsel %vm440, %v425, 0.0
        %v490 = vadd.f32 %v488, %v489
        %v491 = vsel %vm440, %v427, 0.0
        %v492 = vadd.f32 %v490, %v491
        %v493 = vsel %vm440, %v429, 0.0
        %v494 = vadd.f32 %v492, %v493
        %v495 = vsel %vm440, %v431, 0.0
        %v496 = vadd.f32 %v494, %v495
        %v497 = vsel %vm440, %v433, 0.0
        %v498 = vadd.f32 %v496, %v497
        %v499 = vsel %vm440, %v435, 0.0
        %v500 = vadd.f32 %v498, %v499
        %v501 = vsel %vm440, %v437, 0.0
        %v502 = vadd.f32 %v500, %v501
        %v503 = vmul.f32 %v406, %v406
        %v504 = vmul.f32 %v407, %v407
        %v505 = vmul.f32 %v408, %v408
        %v506 = vmul.f32 %v409, %v409
        %v507 = vmul.f32 %v410, %v410
        %v508 = vmul.f32 %v411, %v411
        %v509 = vmul.f32 %v412, %v412
        %v510 = vmul.f32 %v413, %v413
        %v511 = vmul.f32 %v414, %v414
        %v512 = vmul.f32 %v415, %v415
        %v513 = vmul.f32 %v416, %v416
        %v514 = vmul.f32 %v417, %v417
        %v515 = vmul.f32 %v418, %v418
        %v516 = vmul.f32 %v419, %v419
        %v517 = vmul.f32 %v420, %v420
        %v518 = vmul.f32 %v421, %v421
        %v519 = vmul.f32 %v422, %v422
        %v520 = vmul.f32 %v423, %v423
        %v521 = vmul.f32 %v424, %v424
        %v522 = vmul.f32 %v425, %v425
        %v523 = vmul.f32 %v426, %v426
        %v524 = vmul.f32 %v427, %v427
        %v525 = vmul.f32 %v428, %v428
        %v526 = vmul.f32 %v429, %v429
        %v527 = vmul.f32 %v430, %v430
        %v528 = vmul.f32 %v431, %v431
        %v529 = vmul.f32 %v432, %v432
        %v530 = vmul.f32 %v433, %v433
        %v531 = vmul.f32 %v434, %v434
        %v532 = vmul.f32 %v435, %v435
        %v533 = vmul.f32 %v436, %v436
        %v534 = vmul.f32 %v437, %v437
        %v535 = vsel %vm440, %v503, 0.0
        %v536 = vsel %vm440, %v505, 0.0
        %v537 = vadd.f32 %v535, %v536
        %v538 = vsel %vm440, %v507, 0.0
        %v539 = vadd.f32 %v537, %v538
        %v540 = vsel %vm440, %v509, 0.0
        %v541 = vadd.f32 %v539, %v540
        %v542 = vsel %vm440, %v511, 0.0
        %v543 = vadd.f32 %v541, %v542
        %v544 = vsel %vm440, %v513, 0.0
        %v545 = vadd.f32 %v543, %v544
        %v546 = vsel %vm440, %v515, 0.0
        %v547 = vadd.f32 %v545, %v546
        %v548 = vsel %vm440, %v517, 0.0
        %v549 = vadd.f32 %v547, %v548
        %v550 = vsel %vm440, %v519, 0.0
        %v551 = vadd.f32 %v549, %v550
        %v552 = vsel %vm440, %v521, 0.0
        %v553 = vadd.f32 %v551, %v552
        %v554 = vsel %vm440, %v523, 0.0
        %v555 = vadd.f32 %v553, %v554
        %v556 = vsel %vm440, %v525, 0.0
        %v557 = vadd.f32 %v555, %v556
        %v558 = vsel %vm440, %v527, 0.0
        %v559 = vadd.f32 %v557, %v558
        %v560 = vsel %vm440, %v529, 0.0
        %v561 = vadd.f32 %v559, %v560
        %v562 = vsel %vm440, %v531, 0.0
        %v563 = vadd.f32 %v561, %v562
        %v564 = vsel %vm440, %v533, 0.0
        %v565 = vadd.f32 %v563, %v564
        %v566 = vsel %vm440, %v504, 0.0
        %v567 = vsel %vm440, %v506, 0.0
        %v568 = vadd.f32 %v566, %v567
        %v569 = vsel %vm440, %v508, 0.0
        %v570 = vadd.f32 %v568, %v569
        %v571 = vsel %vm440, %v510, 0.0
        %v572 = vadd.f32 %v570, %v571
        %v573 = vsel %vm440, %v512, 0.0
        %v574 = vadd.f32 %v572, %v573
        %v575 = vsel %vm440, %v514, 0.0
        %v576 = vadd.f32 %v574, %v575
        %v577 = vsel %vm440, %v516, 0.0
        %v578 = vadd.f32 %v576, %v577
        %v579 = vsel %vm440, %v518, 0.0
        %v580 = vadd.f32 %v578, %v579
        %v581 = vsel %vm440, %v520, 0.0
        %v582 = vadd.f32 %v580, %v581
        %v583 = vsel %vm440, %v522, 0.0
        %v584 = vadd.f32 %v582, %v583
        %v585 = vsel %vm440, %v524, 0.0
        %v586 = vadd.f32 %v584, %v585
        %v587 = vsel %vm440, %v526, 0.0
        %v588 = vadd.f32 %v586, %v587
        %v589 = vsel %vm440, %v528, 0.0
        %v590 = vadd.f32 %v588, %v589
        %v591 = vsel %vm440, %v530, 0.0
        %v592 = vadd.f32 %v590, %v591
        %v593 = vsel %vm440, %v532, 0.0
        %v594 = vadd.f32 %v592, %v593
        %v595 = vsel %vm440, %v534, 0.0
        %v596 = vadd.f32 %v594, %v595
        %v597 = vsel %vm440, %v471, 0.0
        %v598 = vsel %vm440, %v502, 0.0
        %v599 = vadd.f32 %v597, %v598
        %v600 = vrot.slane %v599, 4
        %v601 = vadd.f32 %v599, %v600
        %v602 = vrot.slane %v601, 2
        %v603 = vadd.f32 %v601, %v602
        %v604 = vrot.slane %v603, 1
        %v605 = vadd.f32 %v603, %v604
        %v606 = vsel %vm440, %v565, 0.0
        %v607 = vsel %vm440, %v596, 0.0
        %v608 = vadd.f32 %v606, %v607
        %v609 = vrot.slane %v608, 4
        %v610 = vadd.f32 %v608, %v609
        %v611 = vrot.slane %v610, 2
        %v612 = vadd.f32 %v610, %v611
        %v613 = vrot.slane %v612, 1
        %v614 = vadd.f32 %v612, %v613
        %v615 = vsel %vm440, %v605, 0.0
        %616 = vadd.xlane.f32.xlu0 %v615
        %v617 = vpop.xlane.xlu0 %616
        %v618 = vsel %vm440, %v614, 0.0
        %619 = vadd.xlane.f32.xlu0 %v618
        %v620 = vpop.xlane.xlu0 %619
        %v621 = vmul.f32 %v617, 6.1035156e-05
        %v622 = vmul.f32 %v620, 6.1035156e-05
        %v623 = vmul.f32 %v621, %v621
        %v624 = vsub.f32 %v622, %v623
        %v625 = vadd.f32 %v624, 1e-05
        %v626 = vrsqrt.pop %v625
        %v627 = vmul.f32 %v438, %v626
        %v628 = vmul.f32 %v621, %v627
        %v629 = vsub.f32 %v439, %v628
        %v631 = vlaneseq
        %v632 = vshrl.u32 %v631, 7
        %v633 = vsub.s32 0, %v632
        %v634 = vrot.slane %v627, %v633
        %v636 = vmul.f32 %v406, %v634
        %v637 = vmul.f32 %v407, %v634
        %v638 = vmul.f32 %v408, %v634
        %v639 = vmul.f32 %v409, %v634
        %v640 = vmul.f32 %v410, %v634
        %v641 = vmul.f32 %v411, %v634
        %v642 = vmul.f32 %v412, %v634
        %v643 = vmul.f32 %v413, %v634
        %v644 = vmul.f32 %v414, %v634
        %v645 = vmul.f32 %v415, %v634
        %v646 = vmul.f32 %v416, %v634
        %v647 = vmul.f32 %v417, %v634
        %v648 = vmul.f32 %v418, %v634
        %v649 = vmul.f32 %v419, %v634
        %v650 = vmul.f32 %v420, %v634
        %v651 = vmul.f32 %v421, %v634
        %v652 = vmul.f32 %v422, %v634
        %v653 = vmul.f32 %v423, %v634
        %v654 = vmul.f32 %v424, %v634
        %v655 = vmul.f32 %v425, %v634
        %v656 = vmul.f32 %v426, %v634
        %v657 = vmul.f32 %v427, %v634
        %v658 = vmul.f32 %v428, %v634
        %v659 = vmul.f32 %v429, %v634
        %v660 = vmul.f32 %v430, %v634
        %v661 = vmul.f32 %v431, %v634
        %v662 = vmul.f32 %v432, %v634
        %v663 = vmul.f32 %v433, %v634
        %v664 = vmul.f32 %v434, %v634
        %v665 = vmul.f32 %v435, %v634
        %v666 = vmul.f32 %v436, %v634
        %v667 = vmul.f32 %v437, %v634
        %v669 = vlaneseq
        %v670 = vshrl.u32 %v669, 7
        %v671 = vsub.s32 0, %v670
        %v672 = vrot.slane %v629, %v671
        %v674 = vadd.f32 %v636, %v672
        %v675 = vadd.f32 %v637, %v672
        %v676 = vadd.f32 %v638, %v672
        %v677 = vadd.f32 %v639, %v672
        %v678 = vadd.f32 %v640, %v672
        %v679 = vadd.f32 %v641, %v672
        %v680 = vadd.f32 %v642, %v672
        %v681 = vadd.f32 %v643, %v672
        %v682 = vadd.f32 %v644, %v672
        %v683 = vadd.f32 %v645, %v672
        %v684 = vadd.f32 %v646, %v672
        %v685 = vadd.f32 %v647, %v672
        %v686 = vadd.f32 %v648, %v672
        %v687 = vadd.f32 %v649, %v672
        %v688 = vadd.f32 %v650, %v672
        %v689 = vadd.f32 %v651, %v672
        %v690 = vadd.f32 %v652, %v672
        %v691 = vadd.f32 %v653, %v672
        %v692 = vadd.f32 %v654, %v672
        %v693 = vadd.f32 %v655, %v672
        %v694 = vadd.f32 %v656, %v672
        %v695 = vadd.f32 %v657, %v672
        %v696 = vadd.f32 %v658, %v672
        %v697 = vadd.f32 %v659, %v672
        %v698 = vadd.f32 %v660, %v672
        %v699 = vadd.f32 %v661, %v672
        %v700 = vadd.f32 %v662, %v672
        %v701 = vadd.f32 %v663, %v672
        %v702 = vadd.f32 %v664, %v672
        %v703 = vadd.f32 %v665, %v672
        %v704 = vadd.f32 %v666, %v672
        %v705 = vadd.f32 %v667, %v672
        %vm738 = vcmask 1040384
        %v739 = vrot.slane %v674, 7
        %v740 = vrot.slane %v675, 7
        %v741 = vsel %vm738, %v739, %v740
        %v742 = vrot.slane %v676, 7
        %v743 = vrot.slane %v677, 7
        %v744 = vsel %vm738, %v742, %v743
        %v745 = vrot.slane %v678, 7
        %v746 = vrot.slane %v679, 7
        %v747 = vsel %vm738, %v745, %v746
        %v748 = vrot.slane %v680, 7
        %v749 = vrot.slane %v681, 7
        %v750 = vsel %vm738, %v748, %v749
        %v751 = vrot.slane %v682, 7
        %v752 = vrot.slane %v683, 7
        %v753 = vsel %vm738, %v751, %v752
        %v754 = vrot.slane %v684, 7
        %v755 = vrot.slane %v685, 7
        %v756 = vsel %vm738, %v754, %v755
        %v757 = vrot.slane %v686, 7
        %v758 = vrot.slane %v687, 7
        %v759 = vsel %vm738, %v757, %v758
        %v760 = vrot.slane %v688, 7
        %v761 = vrot.slane %v689, 7
        %v762 = vsel %vm738, %v760, %v761
        %v763 = vrot.slane %v690, 7
        %v764 = vrot.slane %v691, 7
        %v765 = vsel %vm738, %v763, %v764
        %v766 = vrot.slane %v692, 7
        %v767 = vrot.slane %v693, 7
        %v768 = vsel %vm738, %v766, %v767
        %v769 = vrot.slane %v694, 7
        %v770 = vrot.slane %v695, 7
        %v771 = vsel %vm738, %v769, %v770
        %v772 = vrot.slane %v696, 7
        %v773 = vrot.slane %v697, 7
        %v774 = vsel %vm738, %v772, %v773
        %v775 = vrot.slane %v698, 7
        %v776 = vrot.slane %v699, 7
        %v777 = vsel %vm738, %v775, %v776
        %v778 = vrot.slane %v700, 7
        %v779 = vrot.slane %v701, 7
        %v780 = vsel %vm738, %v778, %v779
        %v781 = vrot.slane %v702, 7
        %v782 = vrot.slane %v703, 7
        %v783 = vsel %vm738, %v781, %v782
        %v784 = vrot.slane %v704, 7
        %v785 = vrot.slane %v705, 7
        %v786 = vsel %vm738, %v784, %v785
        %v819 = vsel %vm738, 0.0, %v739
        %v820 = vsel %vm738, 0.0, %v742
        %v821 = vsel %vm738, 0.0, %v745
        %v822 = vsel %vm738, 0.0, %v748
        %v823 = vsel %vm738, 0.0, %v751
        %v824 = vsel %vm738, 0.0, %v754
        %v825 = vsel %vm738, 0.0, %v757
        %v826 = vsel %vm738, 0.0, %v760
        %v827 = vsel %vm738, 0.0, %v763
        %v828 = vsel %vm738, 0.0, %v766
        %v829 = vsel %vm738, 0.0, %v769
        %v830 = vsel %vm738, 0.0, %v772
        %v831 = vsel %vm738, 0.0, %v775
        %v832 = vsel %vm738, 0.0, %v778
        %v833 = vsel %vm738, 0.0, %v781
        %v834 = vsel %vm738, 0.0, %v784
        %v835 = vadd.f32 %v674, %v819
        %v836 = vadd.f32 %v675, %v741
        %v837 = vadd.f32 %v676, %v820
        %v838 = vadd.f32 %v677, %v744
        %v839 = vadd.f32 %v678, %v821
        %v840 = vadd.f32 %v679, %v747
        %v841 = vadd.f32 %v680, %v822
        %v842 = vadd.f32 %v681, %v750
        %v843 = vadd.f32 %v682, %v823
        %v844 = vadd.f32 %v683, %v753
        %v845 = vadd.f32 %v684, %v824
        %v846 = vadd.f32 %v685, %v756
        %v847 = vadd.f32 %v686, %v825
        %v848 = vadd.f32 %v687, %v759
        %v849 = vadd.f32 %v688, %v826
        %v850 = vadd.f32 %v689, %v762
        %v851 = vadd.f32 %v690, %v827
        %v852 = vadd.f32 %v691, %v765
        %v853 = vadd.f32 %v692, %v828
        %v854 = vadd.f32 %v693, %v768
        %v855 = vadd.f32 %v694, %v829
        %v856 = vadd.f32 %v695, %v771
        %v857 = vadd.f32 %v696, %v830
        %v858 = vadd.f32 %v697, %v774
        %v859 = vadd.f32 %v698, %v831
        %v860 = vadd.f32 %v699, %v777
        %v861 = vadd.f32 %v700, %v832
        %v862 = vadd.f32 %v701, %v780
        %v863 = vadd.f32 %v702, %v833
        %v864 = vadd.f32 %v703, %v783
        %v865 = vadd.f32 %v704, %v834
        %v866 = vadd.f32 %v705, %v786
        %vm867 = vcmask 1046528
        %v868 = vrot.slane %v674, 1
        %v869 = vrot.slane %v675, 1
        %v870 = vsel %vm867, %v868, %v869
        %v871 = vrot.slane %v676, 1
        %v872 = vrot.slane %v677, 1
        %v873 = vsel %vm867, %v871, %v872
        %v874 = vrot.slane %v678, 1
        %v875 = vrot.slane %v679, 1
        %v876 = vsel %vm867, %v874, %v875
        %v877 = vrot.slane %v680, 1
        %v878 = vrot.slane %v681, 1
        %v879 = vsel %vm867, %v877, %v878
        %v880 = vrot.slane %v682, 1
        %v881 = vrot.slane %v683, 1
        %v882 = vsel %vm867, %v880, %v881
        %v883 = vrot.slane %v684, 1
        %v884 = vrot.slane %v685, 1
        %v885 = vsel %vm867, %v883, %v884
        %v886 = vrot.slane %v686, 1
        %v887 = vrot.slane %v687, 1
        %v888 = vsel %vm867, %v886, %v887
        %v889 = vrot.slane %v688, 1
        %v890 = vrot.slane %v689, 1
        %v891 = vsel %vm867, %v889, %v890
        %v892 = vrot.slane %v690, 1
        %v893 = vrot.slane %v691, 1
        %v894 = vsel %vm867, %v892, %v893
        %v895 = vrot.slane %v692, 1
        %v896 = vrot.slane %v693, 1
        %v897 = vsel %vm867, %v895, %v896
        %v898 = vrot.slane %v694, 1
        %v899 = vrot.slane %v695, 1
        %v900 = vsel %vm867, %v898, %v899
        %v901 = vrot.slane %v696, 1
        %v902 = vrot.slane %v697, 1
        %v903 = vsel %vm867, %v901, %v902
        %v904 = vrot.slane %v698, 1
        %v905 = vrot.slane %v699, 1
        %v906 = vsel %vm867, %v904, %v905
        %v907 = vrot.slane %v700, 1
        %v908 = vrot.slane %v701, 1
        %v909 = vsel %vm867, %v907, %v908
        %v910 = vrot.slane %v702, 1
        %v911 = vrot.slane %v703, 1
        %v912 = vsel %vm867, %v910, %v911
        %v913 = vrot.slane %v704, 1
        %v914 = vrot.slane %v705, 1
        %v915 = vsel %vm867, %v913, %v914
        %v948 = vsel %vm867, %v869, 0.0
        %v949 = vsel %vm867, %v872, 0.0
        %v950 = vsel %vm867, %v875, 0.0
        %v951 = vsel %vm867, %v878, 0.0
        %v952 = vsel %vm867, %v881, 0.0
        %v953 = vsel %vm867, %v884, 0.0
        %v954 = vsel %vm867, %v887, 0.0
        %v955 = vsel %vm867, %v890, 0.0
        %v956 = vsel %vm867, %v893, 0.0
        %v957 = vsel %vm867, %v896, 0.0
        %v958 = vsel %vm867, %v899, 0.0
        %v959 = vsel %vm867, %v902, 0.0
        %v960 = vsel %vm867, %v905, 0.0
        %v961 = vsel %vm867, %v908, 0.0
        %v962 = vsel %vm867, %v911, 0.0
        %v963 = vsel %vm867, %v914, 0.0
        %v964 = vadd.f32 %v835, %v870
        %v965 = vadd.f32 %v836, %v948
        %v966 = vadd.f32 %v837, %v873
        %v967 = vadd.f32 %v838, %v949
        %v968 = vadd.f32 %v839, %v876
        %v969 = vadd.f32 %v840, %v950
        %v970 = vadd.f32 %v841, %v879
        %v971 = vadd.f32 %v842, %v951
        %v972 = vadd.f32 %v843, %v882
        %v973 = vadd.f32 %v844, %v952
        %v974 = vadd.f32 %v845, %v885
        %v975 = vadd.f32 %v846, %v953
        %v976 = vadd.f32 %v847, %v888
        %v977 = vadd.f32 %v848, %v954
        %v978 = vadd.f32 %v849, %v891
        %v979 = vadd.f32 %v850, %v955
        %v980 = vadd.f32 %v851, %v894
        %v981 = vadd.f32 %v852, %v956
        %v982 = vadd.f32 %v853, %v897
        %v983 = vadd.f32 %v854, %v957
        %v984 = vadd.f32 %v855, %v900
        %v985 = vadd.f32 %v856, %v958
        %v986 = vadd.f32 %v857, %v903
        %v987 = vadd.f32 %v858, %v959
        %v988 = vadd.f32 %v859, %v906
        %v989 = vadd.f32 %v860, %v960
        %v990 = vadd.f32 %v861, %v909
        %v991 = vadd.f32 %v862, %v961
        %v992 = vadd.f32 %v863, %v912
        %v993 = vadd.f32 %v864, %v962
        %v994 = vadd.f32 %v865, %v915
        %v995 = vadd.f32 %v866, %v963
        %v996 = vadd.f32 %v964, 0.0
        %v997 = vadd.f32 %v965, 0.0
        %v998 = vadd.f32 %v966, %v964
        %v999 = vadd.f32 %v967, %v965
        %v1000 = vadd.f32 %v968, %v966
        %v1001 = vadd.f32 %v969, %v967
        %v1002 = vadd.f32 %v970, %v968
        %v1003 = vadd.f32 %v971, %v969
        %v1004 = vadd.f32 %v972, %v970
        %v1005 = vadd.f32 %v973, %v971
        %v1006 = vadd.f32 %v974, %v972
        %v1007 = vadd.f32 %v975, %v973
        %v1008 = vadd.f32 %v976, %v974
        %v1009 = vadd.f32 %v977, %v975
        %v1010 = vadd.f32 %v978, %v976
        %v1011 = vadd.f32 %v979, %v977
        %v1012 = vadd.f32 %v980, %v978
        %v1013 = vadd.f32 %v981, %v979
        %v1014 = vadd.f32 %v982, %v980
        %v1015 = vadd.f32 %v983, %v981
        %v1016 = vadd.f32 %v984, %v982
        %v1017 = vadd.f32 %v985, %v983
        %v1018 = vadd.f32 %v986, %v984
        %v1019 = vadd.f32 %v987, %v985
        %v1020 = vadd.f32 %v988, %v986
        %v1021 = vadd.f32 %v989, %v987
        %v1022 = vadd.f32 %v990, %v988
        %v1023 = vadd.f32 %v991, %v989
        %v1024 = vadd.f32 %v992, %v990
        %v1025 = vadd.f32 %v993, %v991
        %v1026 = vadd.f32 %v994, %v992
        %v1027 = vadd.f32 %v995, %v993
        %v1028 = vadd.f32 %v996, %v966
        %v1029 = vadd.f32 %v997, %v967
        %v1030 = vadd.f32 %v998, %v968
        %v1031 = vadd.f32 %v999, %v969
        %v1032 = vadd.f32 %v1000, %v970
        %v1033 = vadd.f32 %v1001, %v971
        %v1034 = vadd.f32 %v1002, %v972
        %v1035 = vadd.f32 %v1003, %v973
        %v1036 = vadd.f32 %v1004, %v974
        %v1037 = vadd.f32 %v1005, %v975
        %v1038 = vadd.f32 %v1006, %v976
        %v1039 = vadd.f32 %v1007, %v977
        %v1040 = vadd.f32 %v1008, %v978
        %v1041 = vadd.f32 %v1009, %v979
        %v1042 = vadd.f32 %v1010, %v980
        %v1043 = vadd.f32 %v1011, %v981
        %v1044 = vadd.f32 %v1012, %v982
        %v1045 = vadd.f32 %v1013, %v983
        %v1046 = vadd.f32 %v1014, %v984
        %v1047 = vadd.f32 %v1015, %v985
        %v1048 = vadd.f32 %v1016, %v986
        %v1049 = vadd.f32 %v1017, %v987
        %v1050 = vadd.f32 %v1018, %v988
        %v1051 = vadd.f32 %v1019, %v989
        %v1052 = vadd.f32 %v1020, %v990
        %v1053 = vadd.f32 %v1021, %v991
        %v1054 = vadd.f32 %v1022, %v992
        %v1055 = vadd.f32 %v1023, %v993
        %v1056 = vadd.f32 %v1024, %v994
        %v1057 = vadd.f32 %v1025, %v995
        %v1058 = vadd.f32 %v1026, 0.0
        %v1059 = vadd.f32 %v1027, 0.0
        %v1060 = vmul.f32 %v1028, 0.11111111
        %v1061 = vmul.f32 %v1029, 0.11111111
        %v1062 = vmul.f32 %v1030, 0.11111111
        %v1063 = vmul.f32 %v1031, 0.11111111
        %v1064 = vmul.f32 %v1032, 0.11111111
        %v1065 = vmul.f32 %v1033, 0.11111111
        %v1066 = vmul.f32 %v1034, 0.11111111
        %v1067 = vmul.f32 %v1035, 0.11111111
        %v1068 = vmul.f32 %v1036, 0.11111111
        %v1069 = vmul.f32 %v1037, 0.11111111
        %v1070 = vmul.f32 %v1038, 0.11111111
        %v1071 = vmul.f32 %v1039, 0.11111111
        %v1072 = vmul.f32 %v1040, 0.11111111
        %v1073 = vmul.f32 %v1041, 0.11111111
        %v1074 = vmul.f32 %v1042, 0.11111111
        %v1075 = vmul.f32 %v1043, 0.11111111
        %v1076 = vmul.f32 %v1044, 0.11111111
        %v1077 = vmul.f32 %v1045, 0.11111111
        %v1078 = vmul.f32 %v1046, 0.11111111
        %v1079 = vmul.f32 %v1047, 0.11111111
        %v1080 = vmul.f32 %v1048, 0.11111111
        %v1081 = vmul.f32 %v1049, 0.11111111
        %v1082 = vmul.f32 %v1050, 0.11111111
        %v1083 = vmul.f32 %v1051, 0.11111111
        %v1084 = vmul.f32 %v1052, 0.11111111
        %v1085 = vmul.f32 %v1053, 0.11111111
        %v1086 = vmul.f32 %v1054, 0.11111111
        %v1087 = vmul.f32 %v1055, 0.11111111
        %v1088 = vmul.f32 %v1056, 0.11111111
        %v1089 = vmul.f32 %v1057, 0.11111111
        %v1090 = vmul.f32 %v1058, 0.11111111
        %v1091 = vmul.f32 %v1059, 0.11111111
        %v1092 = vlaneseq
        %v1093 = vshrl.u32 %v1092, 7
        %v1094 = vadd.s32 %v1093, 8
        %v1095 = vmul.f32 %v1060, 1.5
        %v1096 = vmul.f32 %v1061, 1.5
        %v1097 = vmul.f32 %v1062, 1.5
        %v1098 = vmul.f32 %v1063, 1.5
        %v1099 = vmul.f32 %v1064, 1.5
        %v1100 = vmul.f32 %v1065, 1.5
        %v1101 = vmul.f32 %v1066, 1.5
        %v1102 = vmul.f32 %v1067, 1.5
        %v1103 = vmul.f32 %v1068, 1.5
        %v1104 = vmul.f32 %v1069, 1.5
        %v1105 = vmul.f32 %v1070, 1.5
        %v1106 = vmul.f32 %v1071, 1.5
        %v1107 = vmul.f32 %v1072, 1.5
        %v1108 = vmul.f32 %v1073, 1.5
        %v1109 = vmul.f32 %v1074, 1.5
        %v1110 = vmul.f32 %v1075, 1.5
        %v1111 = vmul.f32 %v1076, 1.5
        %v1112 = vmul.f32 %v1077, 1.5
        %v1113 = vmul.f32 %v1078, 1.5
        %v1114 = vmul.f32 %v1079, 1.5
        %v1115 = vmul.f32 %v1080, 1.5
        %v1116 = vmul.f32 %v1081, 1.5
        %v1117 = vmul.f32 %v1082, 1.5
        %v1118 = vmul.f32 %v1083, 1.5
        %v1119 = vmul.f32 %v1084, 1.5
        %v1120 = vmul.f32 %v1085, 1.5
        %v1121 = vmul.f32 %v1086, 1.5
        %v1122 = vmul.f32 %v1087, 1.5
        %v1123 = vmul.f32 %v1088, 1.5
        %v1124 = vmul.f32 %v1089, 1.5
        %v1125 = vmul.f32 %v1090, 1.5
        %v1126 = vmul.f32 %v1091, 1.5
        %v1127 = vsel 1, %v1095, %v1060
        %v1128 = vsel 1, %v1096, %v1061
        %v1129 = vsel 0, %v1097, %v1062
        %v1130 = vsel 0, %v1098, %v1063
        %v1131 = vsel 0, %v1099, %v1064
        %v1132 = vsel 0, %v1100, %v1065
        %v1133 = vsel 0, %v1101, %v1066
        %v1134 = vsel 0, %v1102, %v1067
        %v1135 = vsel 0, %v1103, %v1068
        %v1136 = vsel 0, %v1104, %v1069
        %v1137 = vsel 0, %v1105, %v1070
        %v1138 = vsel 0, %v1106, %v1071
        %v1139 = vsel 0, %v1107, %v1072
        %v1140 = vsel 0, %v1108, %v1073
        %v1141 = vsel 0, %v1109, %v1074
        %v1142 = vsel 0, %v1110, %v1075
        %v1143 = vsel 0, %v1111, %v1076
        %v1144 = vsel 0, %v1112, %v1077
        %v1145 = vsel 0, %v1113, %v1078
        %v1146 = vsel 0, %v1114, %v1079
        %v1147 = vsel 0, %v1115, %v1080
        %v1148 = vsel 0, %v1116, %v1081
        %v1149 = vsel 0, %v1117, %v1082
        %v1150 = vsel 0, %v1118, %v1083
        %v1151 = vsel 0, %v1119, %v1084
        %v1152 = vsel 0, %v1120, %v1085
        %v1153 = vsel 0, %v1121, %v1086
        %v1154 = vsel 0, %v1122, %v1087
        %v1155 = vsel 0, %v1123, %v1088
        %v1156 = vsel 0, %v1124, %v1089
        %v1157 = vsel 1, %v1125, %v1090
        %v1158 = vsel 1, %v1126, %v1091
        %vm1159 = vcmp.eq.s32.totalorder %v1093, 0
        %vm1160 = vcmp.eq.s32.totalorder %v1094, 0
        %vm1161 = vcmp.eq.s32.totalorder %v1093, 15
        %vm1162 = vcmp.eq.s32.totalorder %v1094, 15
        %vm1163 = vmor %vm1159, %vm1161
        %vm1164 = vmor %vm1160, %vm1162
        %v1165 = vmul.f32 %v1127, 1.5
        %v1166 = vmul.f32 %v1128, 1.5
        %v1167 = vmul.f32 %v1129, 1.5
        %v1168 = vmul.f32 %v1130, 1.5
        %v1169 = vmul.f32 %v1131, 1.5
        %v1170 = vmul.f32 %v1132, 1.5
        %v1171 = vmul.f32 %v1133, 1.5
        %v1172 = vmul.f32 %v1134, 1.5
        %v1173 = vmul.f32 %v1135, 1.5
        %v1174 = vmul.f32 %v1136, 1.5
        %v1175 = vmul.f32 %v1137, 1.5
        %v1176 = vmul.f32 %v1138, 1.5
        %v1177 = vmul.f32 %v1139, 1.5
        %v1178 = vmul.f32 %v1140, 1.5
        %v1179 = vmul.f32 %v1141, 1.5
        %v1180 = vmul.f32 %v1142, 1.5
        %v1181 = vmul.f32 %v1143, 1.5
        %v1182 = vmul.f32 %v1144, 1.5
        %v1183 = vmul.f32 %v1145, 1.5
        %v1184 = vmul.f32 %v1146, 1.5
        %v1185 = vmul.f32 %v1147, 1.5
        %v1186 = vmul.f32 %v1148, 1.5
        %v1187 = vmul.f32 %v1149, 1.5
        %v1188 = vmul.f32 %v1150, 1.5
        %v1189 = vmul.f32 %v1151, 1.5
        %v1190 = vmul.f32 %v1152, 1.5
        %v1191 = vmul.f32 %v1153, 1.5
        %v1192 = vmul.f32 %v1154, 1.5
        %v1193 = vmul.f32 %v1155, 1.5
        %v1194 = vmul.f32 %v1156, 1.5
        %v1195 = vmul.f32 %v1157, 1.5
        %v1196 = vmul.f32 %v1158, 1.5
        %v1197 = vsel %vm1163, %v1165, %v1127
        %v1198 = vsel %vm1164, %v1166, %v1128
        %v1199 = vsel %vm1163, %v1167, %v1129
        %v1200 = vsel %vm1164, %v1168, %v1130
        %v1201 = vsel %vm1163, %v1169, %v1131
        %v1202 = vsel %vm1164, %v1170, %v1132
        %v1203 = vsel %vm1163, %v1171, %v1133
        %v1204 = vsel %vm1164, %v1172, %v1134
        %v1205 = vsel %vm1163, %v1173, %v1135
        %v1206 = vsel %vm1164, %v1174, %v1136
        %v1207 = vsel %vm1163, %v1175, %v1137
        %v1208 = vsel %vm1164, %v1176, %v1138
        %v1209 = vsel %vm1163, %v1177, %v1139
        %v1210 = vsel %vm1164, %v1178, %v1140
        %v1211 = vsel %vm1163, %v1179, %v1141
        %v1212 = vsel %vm1164, %v1180, %v1142
        %v1213 = vsel %vm1163, %v1181, %v1143
        %v1214 = vsel %vm1164, %v1182, %v1144
        %v1215 = vsel %vm1163, %v1183, %v1145
        %v1216 = vsel %vm1164, %v1184, %v1146
        %v1217 = vsel %vm1163, %v1185, %v1147
        %v1218 = vsel %vm1164, %v1186, %v1148
        %v1219 = vsel %vm1163, %v1187, %v1149
        %v1220 = vsel %vm1164, %v1188, %v1150
        %v1221 = vsel %vm1163, %v1189, %v1151
        %v1222 = vsel %vm1164, %v1190, %v1152
        %v1223 = vsel %vm1163, %v1191, %v1153
        %v1224 = vsel %vm1164, %v1192, %v1154
        %v1225 = vsel %vm1163, %v1193, %v1155
        %v1226 = vsel %vm1164, %v1194, %v1156
        %v1227 = vsel %vm1163, %v1195, %v1157
        %v1228 = vsel %vm1164, %v1196, %v1158
        %v1229 = vld [vmem:[%s3] sm:$0x1]
        %v1230 = vsub.f32 %v1197, %v674
        %v1231 = vsub.f32 %v1198, %v675
        %v1232 = vsub.f32 %v1199, %v676
        %v1233 = vsub.f32 %v1200, %v677
        %v1234 = vsub.f32 %v1201, %v678
        %v1235 = vsub.f32 %v1202, %v679
        %v1236 = vsub.f32 %v1203, %v680
        %v1237 = vsub.f32 %v1204, %v681
        %v1238 = vsub.f32 %v1205, %v682
        %v1239 = vsub.f32 %v1206, %v683
        %v1240 = vsub.f32 %v1207, %v684
        %v1241 = vsub.f32 %v1208, %v685
        %v1242 = vsub.f32 %v1209, %v686
        %v1243 = vsub.f32 %v1210, %v687
        %v1244 = vsub.f32 %v1211, %v688
        %v1245 = vsub.f32 %v1212, %v689
        %v1246 = vsub.f32 %v1213, %v690
        %v1247 = vsub.f32 %v1214, %v691
        %v1248 = vsub.f32 %v1215, %v692
        %v1249 = vsub.f32 %v1216, %v693
        %v1250 = vsub.f32 %v1217, %v694
        %v1251 = vsub.f32 %v1218, %v695
        %v1252 = vsub.f32 %v1219, %v696
        %v1253 = vsub.f32 %v1220, %v697
        %v1254 = vsub.f32 %v1221, %v698
        %v1255 = vsub.f32 %v1222, %v699
        %v1256 = vsub.f32 %v1223, %v700
        %v1257 = vsub.f32 %v1224, %v701
        %v1258 = vsub.f32 %v1225, %v702
        %v1259 = vsub.f32 %v1226, %v703
        %v1260 = vsub.f32 %v1227, %v704
        %v1261 = vsub.f32 %v1228, %v705
        %v1263 = vlaneseq
        %v1264 = vshrl.u32 %v1263, 7
        %v1265 = vsub.s32 0, %v1264
        %v1266 = vrot.slane %v1229, %v1265
        %v1268 = vmul.f32 %v1266, %v1230
        %v1269 = vmul.f32 %v1266, %v1231
        %v1270 = vmul.f32 %v1266, %v1232
        %v1271 = vmul.f32 %v1266, %v1233
        %v1272 = vmul.f32 %v1266, %v1234
        %v1273 = vmul.f32 %v1266, %v1235
        %v1274 = vmul.f32 %v1266, %v1236
        %v1275 = vmul.f32 %v1266, %v1237
        %v1276 = vmul.f32 %v1266, %v1238
        %v1277 = vmul.f32 %v1266, %v1239
        %v1278 = vmul.f32 %v1266, %v1240
        %v1279 = vmul.f32 %v1266, %v1241
        %v1280 = vmul.f32 %v1266, %v1242
        %v1281 = vmul.f32 %v1266, %v1243
        %v1282 = vmul.f32 %v1266, %v1244
        %v1283 = vmul.f32 %v1266, %v1245
        %v1284 = vmul.f32 %v1266, %v1246
        %v1285 = vmul.f32 %v1266, %v1247
        %v1286 = vmul.f32 %v1266, %v1248
        %v1287 = vmul.f32 %v1266, %v1249
        %v1288 = vmul.f32 %v1266, %v1250
        %v1289 = vmul.f32 %v1266, %v1251
        %v1290 = vmul.f32 %v1266, %v1252
        %v1291 = vmul.f32 %v1266, %v1253
        %v1292 = vmul.f32 %v1266, %v1254
        %v1293 = vmul.f32 %v1266, %v1255
        %v1294 = vmul.f32 %v1266, %v1256
        %v1295 = vmul.f32 %v1266, %v1257
        %v1296 = vmul.f32 %v1266, %v1258
        %v1297 = vmul.f32 %v1266, %v1259
        %v1298 = vmul.f32 %v1266, %v1260
        %v1299 = vmul.f32 %v1266, %v1261
        %v1300 = vadd.f32 %v406, %v1268
        %v1301 = vadd.f32 %v407, %v1269
        %v1302 = vadd.f32 %v408, %v1270
        %v1303 = vadd.f32 %v409, %v1271
        %v1304 = vadd.f32 %v410, %v1272
        %v1305 = vadd.f32 %v411, %v1273
        %v1306 = vadd.f32 %v412, %v1274
        %v1307 = vadd.f32 %v413, %v1275
        %v1308 = vadd.f32 %v414, %v1276
        %v1309 = vadd.f32 %v415, %v1277
        %v1310 = vadd.f32 %v416, %v1278
        %v1311 = vadd.f32 %v417, %v1279
        %v1312 = vadd.f32 %v418, %v1280
        %v1313 = vadd.f32 %v419, %v1281
        %v1314 = vadd.f32 %v420, %v1282
        %v1315 = vadd.f32 %v421, %v1283
        %v1316 = vadd.f32 %v422, %v1284
        %v1317 = vadd.f32 %v423, %v1285
        %v1318 = vadd.f32 %v424, %v1286
        %v1319 = vadd.f32 %v425, %v1287
        %v1320 = vadd.f32 %v426, %v1288
        %v1321 = vadd.f32 %v427, %v1289
        %v1322 = vadd.f32 %v428, %v1290
        %v1323 = vadd.f32 %v429, %v1291
        %v1324 = vadd.f32 %v430, %v1292
        %v1325 = vadd.f32 %v431, %v1293
        %v1326 = vadd.f32 %v432, %v1294
        %v1327 = vadd.f32 %v433, %v1295
        %v1328 = vadd.f32 %v434, %v1296
        %v1329 = vadd.f32 %v435, %v1297
        %v1330 = vadd.f32 %v436, %v1298
        %v1331 = vadd.f32 %v437, %v1299
        %1332 = vst.msk [vmem:[%s404] sm:$0xff] %vm440, %v1300
        %1333 = vst.msk [vmem:[%s404 + $0x8] sm:$0xff] %vm440, %v1301
        %1334 = vst.msk [vmem:[%s404 + $0x10] sm:$0xff] %vm440, %v1302
        %1335 = vst.msk [vmem:[%s404 + $0x18] sm:$0xff] %vm440, %v1303
        %1336 = vst.msk [vmem:[%s404 + $0x20] sm:$0xff] %vm440, %v1304
        %1337 = vst.msk [vmem:[%s404 + $0x28] sm:$0xff] %vm440, %v1305
        %1338 = vst.msk [vmem:[%s404 + $0x30] sm:$0xff] %vm440, %v1306
        %1339 = vst.msk [vmem:[%s404 + $0x38] sm:$0xff] %vm440, %v1307
        %1340 = vst.msk [vmem:[%s404 + $0x40] sm:$0xff] %vm440, %v1308
        %1341 = vst.msk [vmem:[%s404 + $0x48] sm:$0xff] %vm440, %v1309
        %1342 = vst.msk [vmem:[%s404 + $0x50] sm:$0xff] %vm440, %v1310
        %1343 = vst.msk [vmem:[%s404 + $0x58] sm:$0xff] %vm440, %v1311
        %1344 = vst.msk [vmem:[%s404 + $0x60] sm:$0xff] %vm440, %v1312
        %1345 = vst.msk [vmem:[%s404 + $0x68] sm:$0xff] %vm440, %v1313
        %1346 = vst.msk [vmem:[%s404 + $0x70] sm:$0xff] %vm440, %v1314
        %1347 = vst.msk [vmem:[%s404 + $0x78] sm:$0xff] %vm440, %v1315
        %1348 = vst.msk [vmem:[%s404 + $0x80] sm:$0xff] %vm440, %v1316
        %1349 = vst.msk [vmem:[%s404 + $0x88] sm:$0xff] %vm440, %v1317
        %1350 = vst.msk [vmem:[%s404 + $0x90] sm:$0xff] %vm440, %v1318
        %1351 = vst.msk [vmem:[%s404 + $0x98] sm:$0xff] %vm440, %v1319
        %1352 = vst.msk [vmem:[%s404 + $0xa0] sm:$0xff] %vm440, %v1320
        %1353 = vst.msk [vmem:[%s404 + $0xa8] sm:$0xff] %vm440, %v1321
        %1354 = vst.msk [vmem:[%s404 + $0xb0] sm:$0xff] %vm440, %v1322
        %1355 = vst.msk [vmem:[%s404 + $0xb8] sm:$0xff] %vm440, %v1323
        %1356 = vst.msk [vmem:[%s404 + $0xc0] sm:$0xff] %vm440, %v1324
        %1357 = vst.msk [vmem:[%s404 + $0xc8] sm:$0xff] %vm440, %v1325
        %1358 = vst.msk [vmem:[%s404 + $0xd0] sm:$0xff] %vm440, %v1326
        %1359 = vst.msk [vmem:[%s404 + $0xd8] sm:$0xff] %vm440, %v1327
        %1360 = vst.msk [vmem:[%s404 + $0xe0] sm:$0xff] %vm440, %v1328
        %1361 = vst.msk [vmem:[%s404 + $0xe8] sm:$0xff] %vm440, %v1329
        %1362 = vst.msk [vmem:[%s404 + $0xf0] sm:$0xff] %vm440, %v1330
        %1363 = vst.msk [vmem:[%s404 + $0xf8] sm:$0xff] %vm440, %v1331
        %v1364 = vld [vmem:[%s4] sm:$0x1]
        %v1365 = vld [vmem:[%s5] sm:$0x1]
        %v1366 = vsel %vm440, %v1300, 0.0
        %v1367 = vsel %vm440, %v1302, 0.0
        %v1368 = vadd.f32 %v1366, %v1367
        %v1369 = vsel %vm440, %v1304, 0.0
        %v1370 = vadd.f32 %v1368, %v1369
        %v1371 = vsel %vm440, %v1306, 0.0
        %v1372 = vadd.f32 %v1370, %v1371
        %v1373 = vsel %vm440, %v1308, 0.0
        %v1374 = vadd.f32 %v1372, %v1373
        %v1375 = vsel %vm440, %v1310, 0.0
        %v1376 = vadd.f32 %v1374, %v1375
        %v1377 = vsel %vm440, %v1312, 0.0
        %v1378 = vadd.f32 %v1376, %v1377
        %v1379 = vsel %vm440, %v1314, 0.0
        %v1380 = vadd.f32 %v1378, %v1379
        %v1381 = vsel %vm440, %v1316, 0.0
        %v1382 = vadd.f32 %v1380, %v1381
        %v1383 = vsel %vm440, %v1318, 0.0
        %v1384 = vadd.f32 %v1382, %v1383
        %v1385 = vsel %vm440, %v1320, 0.0
        %v1386 = vadd.f32 %v1384, %v1385
        %v1387 = vsel %vm440, %v1322, 0.0
        %v1388 = vadd.f32 %v1386, %v1387
        %v1389 = vsel %vm440, %v1324, 0.0
        %v1390 = vadd.f32 %v1388, %v1389
        %v1391 = vsel %vm440, %v1326, 0.0
        %v1392 = vadd.f32 %v1390, %v1391
        %v1393 = vsel %vm440, %v1328, 0.0
        %v1394 = vadd.f32 %v1392, %v1393
        %v1395 = vsel %vm440, %v1330, 0.0
        %v1396 = vadd.f32 %v1394, %v1395
        %v1397 = vsel %vm440, %v1301, 0.0
        %v1398 = vsel %vm440, %v1303, 0.0
        %v1399 = vadd.f32 %v1397, %v1398
        %v1400 = vsel %vm440, %v1305, 0.0
        %v1401 = vadd.f32 %v1399, %v1400
        %v1402 = vsel %vm440, %v1307, 0.0
        %v1403 = vadd.f32 %v1401, %v1402
        %v1404 = vsel %vm440, %v1309, 0.0
        %v1405 = vadd.f32 %v1403, %v1404
        %v1406 = vsel %vm440, %v1311, 0.0
        %v1407 = vadd.f32 %v1405, %v1406
        %v1408 = vsel %vm440, %v1313, 0.0
        %v1409 = vadd.f32 %v1407, %v1408
        %v1410 = vsel %vm440, %v1315, 0.0
        %v1411 = vadd.f32 %v1409, %v1410
        %v1412 = vsel %vm440, %v1317, 0.0
        %v1413 = vadd.f32 %v1411, %v1412
        %v1414 = vsel %vm440, %v1319, 0.0
        %v1415 = vadd.f32 %v1413, %v1414
        %v1416 = vsel %vm440, %v1321, 0.0
        %v1417 = vadd.f32 %v1415, %v1416
        %v1418 = vsel %vm440, %v1323, 0.0
        %v1419 = vadd.f32 %v1417, %v1418
        %v1420 = vsel %vm440, %v1325, 0.0
        %v1421 = vadd.f32 %v1419, %v1420
        %v1422 = vsel %vm440, %v1327, 0.0
        %v1423 = vadd.f32 %v1421, %v1422
        %v1424 = vsel %vm440, %v1329, 0.0
        %v1425 = vadd.f32 %v1423, %v1424
        %v1426 = vsel %vm440, %v1331, 0.0
        %v1427 = vadd.f32 %v1425, %v1426
        %v1428 = vmul.f32 %v1300, %v1300
        %v1429 = vmul.f32 %v1301, %v1301
        %v1430 = vmul.f32 %v1302, %v1302
        %v1431 = vmul.f32 %v1303, %v1303
        %v1432 = vmul.f32 %v1304, %v1304
        %v1433 = vmul.f32 %v1305, %v1305
        %v1434 = vmul.f32 %v1306, %v1306
        %v1435 = vmul.f32 %v1307, %v1307
        %v1436 = vmul.f32 %v1308, %v1308
        %v1437 = vmul.f32 %v1309, %v1309
        %v1438 = vmul.f32 %v1310, %v1310
        %v1439 = vmul.f32 %v1311, %v1311
        %v1440 = vmul.f32 %v1312, %v1312
        %v1441 = vmul.f32 %v1313, %v1313
        %v1442 = vmul.f32 %v1314, %v1314
        %v1443 = vmul.f32 %v1315, %v1315
        %v1444 = vmul.f32 %v1316, %v1316
        %v1445 = vmul.f32 %v1317, %v1317
        %v1446 = vmul.f32 %v1318, %v1318
        %v1447 = vmul.f32 %v1319, %v1319
        %v1448 = vmul.f32 %v1320, %v1320
        %v1449 = vmul.f32 %v1321, %v1321
        %v1450 = vmul.f32 %v1322, %v1322
        %v1451 = vmul.f32 %v1323, %v1323
        %v1452 = vmul.f32 %v1324, %v1324
        %v1453 = vmul.f32 %v1325, %v1325
        %v1454 = vmul.f32 %v1326, %v1326
        %v1455 = vmul.f32 %v1327, %v1327
        %v1456 = vmul.f32 %v1328, %v1328
        %v1457 = vmul.f32 %v1329, %v1329
        %v1458 = vmul.f32 %v1330, %v1330
        %v1459 = vmul.f32 %v1331, %v1331
        %v1460 = vsel %vm440, %v1428, 0.0
        %v1461 = vsel %vm440, %v1430, 0.0
        %v1462 = vadd.f32 %v1460, %v1461
        %v1463 = vsel %vm440, %v1432, 0.0
        %v1464 = vadd.f32 %v1462, %v1463
        %v1465 = vsel %vm440, %v1434, 0.0
        %v1466 = vadd.f32 %v1464, %v1465
        %v1467 = vsel %vm440, %v1436, 0.0
        %v1468 = vadd.f32 %v1466, %v1467
        %v1469 = vsel %vm440, %v1438, 0.0
        %v1470 = vadd.f32 %v1468, %v1469
        %v1471 = vsel %vm440, %v1440, 0.0
        %v1472 = vadd.f32 %v1470, %v1471
        %v1473 = vsel %vm440, %v1442, 0.0
        %v1474 = vadd.f32 %v1472, %v1473
        %v1475 = vsel %vm440, %v1444, 0.0
        %v1476 = vadd.f32 %v1474, %v1475
        %v1477 = vsel %vm440, %v1446, 0.0
        %v1478 = vadd.f32 %v1476, %v1477
        %v1479 = vsel %vm440, %v1448, 0.0
        %v1480 = vadd.f32 %v1478, %v1479
        %v1481 = vsel %vm440, %v1450, 0.0
        %v1482 = vadd.f32 %v1480, %v1481
        %v1483 = vsel %vm440, %v1452, 0.0
        %v1484 = vadd.f32 %v1482, %v1483
        %v1485 = vsel %vm440, %v1454, 0.0
        %v1486 = vadd.f32 %v1484, %v1485
        %v1487 = vsel %vm440, %v1456, 0.0
        %v1488 = vadd.f32 %v1486, %v1487
        %v1489 = vsel %vm440, %v1458, 0.0
        %v1490 = vadd.f32 %v1488, %v1489
        %v1491 = vsel %vm440, %v1429, 0.0
        %v1492 = vsel %vm440, %v1431, 0.0
        %v1493 = vadd.f32 %v1491, %v1492
        %v1494 = vsel %vm440, %v1433, 0.0
        %v1495 = vadd.f32 %v1493, %v1494
        %v1496 = vsel %vm440, %v1435, 0.0
        %v1497 = vadd.f32 %v1495, %v1496
        %v1498 = vsel %vm440, %v1437, 0.0
        %v1499 = vadd.f32 %v1497, %v1498
        %v1500 = vsel %vm440, %v1439, 0.0
        %v1501 = vadd.f32 %v1499, %v1500
        %v1502 = vsel %vm440, %v1441, 0.0
        %v1503 = vadd.f32 %v1501, %v1502
        %v1504 = vsel %vm440, %v1443, 0.0
        %v1505 = vadd.f32 %v1503, %v1504
        %v1506 = vsel %vm440, %v1445, 0.0
        %v1507 = vadd.f32 %v1505, %v1506
        %v1508 = vsel %vm440, %v1447, 0.0
        %v1509 = vadd.f32 %v1507, %v1508
        %v1510 = vsel %vm440, %v1449, 0.0
        %v1511 = vadd.f32 %v1509, %v1510
        %v1512 = vsel %vm440, %v1451, 0.0
        %v1513 = vadd.f32 %v1511, %v1512
        %v1514 = vsel %vm440, %v1453, 0.0
        %v1515 = vadd.f32 %v1513, %v1514
        %v1516 = vsel %vm440, %v1455, 0.0
        %v1517 = vadd.f32 %v1515, %v1516
        %v1518 = vsel %vm440, %v1457, 0.0
        %v1519 = vadd.f32 %v1517, %v1518
        %v1520 = vsel %vm440, %v1459, 0.0
        %v1521 = vadd.f32 %v1519, %v1520
        %v1522 = vsel %vm440, %v1396, 0.0
        %v1523 = vsel %vm440, %v1427, 0.0
        %v1524 = vadd.f32 %v1522, %v1523
        %v1525 = vrot.slane %v1524, 4
        %v1526 = vadd.f32 %v1524, %v1525
        %v1527 = vrot.slane %v1526, 2
        %v1528 = vadd.f32 %v1526, %v1527
        %v1529 = vrot.slane %v1528, 1
        %v1530 = vadd.f32 %v1528, %v1529
        %v1531 = vsel %vm440, %v1490, 0.0
        %v1532 = vsel %vm440, %v1521, 0.0
        %v1533 = vadd.f32 %v1531, %v1532
        %v1534 = vrot.slane %v1533, 4
        %v1535 = vadd.f32 %v1533, %v1534
        %v1536 = vrot.slane %v1535, 2
        %v1537 = vadd.f32 %v1535, %v1536
        %v1538 = vrot.slane %v1537, 1
        %v1539 = vadd.f32 %v1537, %v1538
        %v1540 = vsel %vm440, %v1530, 0.0
        %1541 = vadd.xlane.f32.xlu0 %v1540
        %v1542 = vpop.xlane.xlu0 %1541
        %v1543 = vsel %vm440, %v1539, 0.0
        %1544 = vadd.xlane.f32.xlu0 %v1543
        %v1545 = vpop.xlane.xlu0 %1544
        %v1546 = vmul.f32 %v1542, 6.1035156e-05
        %v1547 = vmul.f32 %v1545, 6.1035156e-05
        %v1548 = vmul.f32 %v1546, %v1546
        %v1549 = vsub.f32 %v1547, %v1548
        %v1550 = vadd.f32 %v1549, 1e-05
        %v1551 = vrsqrt.pop %v1550
        %v1552 = vmul.f32 %v1364, %v1551
        %v1553 = vmul.f32 %v1546, %v1552
        %v1554 = vsub.f32 %v1365, %v1553
        %v1555 = vld [vmem:[%s10] sm:$0x1]
        %v1556 = vld [vmem:[%s6] sm:$0xff]
        %v1557 = vld [vmem:[%s6 + $0x8] sm:$0xff]
        %v1558 = vld [vmem:[%s6 + $0x10] sm:$0xff]
        %v1559 = vld [vmem:[%s6 + $0x18] sm:$0xff]
        %v1560 = vld [vmem:[%s6 + $0x20] sm:$0xff]
        %v1561 = vld [vmem:[%s6 + $0x28] sm:$0xff]
        %v1562 = vld [vmem:[%s6 + $0x30] sm:$0xff]
        %v1563 = vld [vmem:[%s6 + $0x38] sm:$0xff]
        %v1564 = vld [vmem:[%s8] sm:$0xf]
        %v1565 = vld [vmem:[%s8 + $0x4] sm:$0xf]
        %v1566 = vld [vmem:[%s8 + $0x8] sm:$0xf]
        %v1567 = vld [vmem:[%s8 + $0xc] sm:$0xf]
        %v1568 = vld [vmem:[%s8 + $0x10] sm:$0xf]
        %v1569 = vld [vmem:[%s8 + $0x14] sm:$0xf]
        %v1570 = vld [vmem:[%s8 + $0x18] sm:$0xf]
        %v1571 = vld [vmem:[%s8 + $0x1c] sm:$0xf]
        %v1572 = vld [vmem:[%s8 + $0x20] sm:$0xf]
        %v1573 = vld [vmem:[%s8 + $0x24] sm:$0xf]
        %v1574 = vld [vmem:[%s8 + $0x28] sm:$0xf]
        %v1575 = vld [vmem:[%s8 + $0x2c] sm:$0xf]
        %v1576 = vld [vmem:[%s8 + $0x30] sm:$0xf]
        %v1577 = vld [vmem:[%s8 + $0x34] sm:$0xf]
        %v1578 = vld [vmem:[%s8 + $0x38] sm:$0xf]
        %v1579 = vld [vmem:[%s8 + $0x3c] sm:$0xf]
        %v1580 = vld [vmem:[%s8 + $0x40] sm:$0xf]
        %v1581 = vld [vmem:[%s8 + $0x44] sm:$0xf]
        %v1582 = vld [vmem:[%s8 + $0x48] sm:$0xf]
        %v1583 = vld [vmem:[%s8 + $0x4c] sm:$0xf]
        %v1584 = vld [vmem:[%s8 + $0x50] sm:$0xf]
        %v1585 = vld [vmem:[%s8 + $0x54] sm:$0xf]
        %v1586 = vld [vmem:[%s8 + $0x58] sm:$0xf]
        %v1587 = vld [vmem:[%s8 + $0x5c] sm:$0xf]
        %v1588 = vld [vmem:[%s8 + $0x60] sm:$0xf]
        %v1589 = vld [vmem:[%s8 + $0x64] sm:$0xf]
        %v1590 = vld [vmem:[%s8 + $0x68] sm:$0xf]
        %v1591 = vld [vmem:[%s8 + $0x6c] sm:$0xf]
        %v1592 = vld [vmem:[%s8 + $0x70] sm:$0xf]
        %v1593 = vld [vmem:[%s8 + $0x74] sm:$0xf]
        %v1594 = vld [vmem:[%s8 + $0x78] sm:$0xf]
        %v1595 = vld [vmem:[%s8 + $0x7c] sm:$0xf]
        %v1596 = vld [vmem:[%s7] sm:$0x3]
        %v1597 = vld [vmem:[%s9] sm:$0x1]
        %s1598 = smul.u32 0, 16
        %s1599 = scalar_lea.vmem %s404, %s1598 [#allocation5]
        %v1600 = vld [vmem:[%s1599] sm:$0xff]
        %v1601 = vld [vmem:[%s1599 + $0x8] sm:$0xff]
        %v1602 = vld [vmem:[%s1599 + $0x10] sm:$0xff]
        %v1603 = vld [vmem:[%s1599 + $0x18] sm:$0xff]
        %v1604 = vld [vmem:[%s1599 + $0x20] sm:$0xff]
        %v1605 = vld [vmem:[%s1599 + $0x28] sm:$0xff]
        %v1606 = vld [vmem:[%s1599 + $0x30] sm:$0xff]
        %v1607 = vld [vmem:[%s1599 + $0x38] sm:$0xff]
        %v1608 = vld [vmem:[%s1599 + $0x40] sm:$0xff]
        %v1609 = vld [vmem:[%s1599 + $0x48] sm:$0xff]
        %v1610 = vld [vmem:[%s1599 + $0x50] sm:$0xff]
        %v1611 = vld [vmem:[%s1599 + $0x58] sm:$0xff]
        %v1612 = vld [vmem:[%s1599 + $0x60] sm:$0xff]
        %v1613 = vld [vmem:[%s1599 + $0x68] sm:$0xff]
        %v1614 = vld [vmem:[%s1599 + $0x70] sm:$0xff]
        %v1615 = vld [vmem:[%s1599 + $0x78] sm:$0xff]
        %v1616 = vld [vmem:[%s1599 + $0x80] sm:$0xff]
        %v1617 = vld [vmem:[%s1599 + $0x88] sm:$0xff]
        %v1618 = vld [vmem:[%s1599 + $0x90] sm:$0xff]
        %v1619 = vld [vmem:[%s1599 + $0x98] sm:$0xff]
        %v1620 = vld [vmem:[%s1599 + $0xa0] sm:$0xff]
        %v1621 = vld [vmem:[%s1599 + $0xa8] sm:$0xff]
        %v1622 = vld [vmem:[%s1599 + $0xb0] sm:$0xff]
        %v1623 = vld [vmem:[%s1599 + $0xb8] sm:$0xff]
        %v1624 = vld [vmem:[%s1599 + $0xc0] sm:$0xff]
        %v1625 = vld [vmem:[%s1599 + $0xc8] sm:$0xff]
        %v1626 = vld [vmem:[%s1599 + $0xd0] sm:$0xff]
        %v1627 = vld [vmem:[%s1599 + $0xd8] sm:$0xff]
        %v1628 = vld [vmem:[%s1599 + $0xe0] sm:$0xff]
        %v1629 = vld [vmem:[%s1599 + $0xe8] sm:$0xff]
        %v1630 = vld [vmem:[%s1599 + $0xf0] sm:$0xff]
        %v1631 = vld [vmem:[%s1599 + $0xf8] sm:$0xff]
        %v1633 = vlaneseq
        %v1634 = vshrl.u32 %v1633, 7
        %v1635 = vsub.s32 0, %v1634
        %v1636 = vrot.slane %v1552, %v1635
        %v1638 = vmul.f32 %v1600, %v1636
        %v1639 = vmul.f32 %v1601, %v1636
        %v1640 = vmul.f32 %v1602, %v1636
        %v1641 = vmul.f32 %v1603, %v1636
        %v1642 = vmul.f32 %v1604, %v1636
        %v1643 = vmul.f32 %v1605, %v1636
        %v1644 = vmul.f32 %v1606, %v1636
        %v1645 = vmul.f32 %v1607, %v1636
        %v1646 = vmul.f32 %v1608, %v1636
        %v1647 = vmul.f32 %v1609, %v1636
        %v1648 = vmul.f32 %v1610, %v1636
        %v1649 = vmul.f32 %v1611, %v1636
        %v1650 = vmul.f32 %v1612, %v1636
        %v1651 = vmul.f32 %v1613, %v1636
        %v1652 = vmul.f32 %v1614, %v1636
        %v1653 = vmul.f32 %v1615, %v1636
        %v1654 = vmul.f32 %v1616, %v1636
        %v1655 = vmul.f32 %v1617, %v1636
        %v1656 = vmul.f32 %v1618, %v1636
        %v1657 = vmul.f32 %v1619, %v1636
        %v1658 = vmul.f32 %v1620, %v1636
        %v1659 = vmul.f32 %v1621, %v1636
        %v1660 = vmul.f32 %v1622, %v1636
        %v1661 = vmul.f32 %v1623, %v1636
        %v1662 = vmul.f32 %v1624, %v1636
        %v1663 = vmul.f32 %v1625, %v1636
        %v1664 = vmul.f32 %v1626, %v1636
        %v1665 = vmul.f32 %v1627, %v1636
        %v1666 = vmul.f32 %v1628, %v1636
        %v1667 = vmul.f32 %v1629, %v1636
        %v1668 = vmul.f32 %v1630, %v1636
        %v1669 = vmul.f32 %v1631, %v1636
        %v1671 = vlaneseq
        %v1672 = vshrl.u32 %v1671, 7
        %v1673 = vsub.s32 0, %v1672
        %v1674 = vrot.slane %v1554, %v1673
        %v1676 = vadd.f32 %v1638, %v1674
        %v1677 = vadd.f32 %v1639, %v1674
        %v1678 = vadd.f32 %v1640, %v1674
        %v1679 = vadd.f32 %v1641, %v1674
        %v1680 = vadd.f32 %v1642, %v1674
        %v1681 = vadd.f32 %v1643, %v1674
        %v1682 = vadd.f32 %v1644, %v1674
        %v1683 = vadd.f32 %v1645, %v1674
        %v1684 = vadd.f32 %v1646, %v1674
        %v1685 = vadd.f32 %v1647, %v1674
        %v1686 = vadd.f32 %v1648, %v1674
        %v1687 = vadd.f32 %v1649, %v1674
        %v1688 = vadd.f32 %v1650, %v1674
        %v1689 = vadd.f32 %v1651, %v1674
        %v1690 = vadd.f32 %v1652, %v1674
        %v1691 = vadd.f32 %v1653, %v1674
        %v1692 = vadd.f32 %v1654, %v1674
        %v1693 = vadd.f32 %v1655, %v1674
        %v1694 = vadd.f32 %v1656, %v1674
        %v1695 = vadd.f32 %v1657, %v1674
        %v1696 = vadd.f32 %v1658, %v1674
        %v1697 = vadd.f32 %v1659, %v1674
        %v1698 = vadd.f32 %v1660, %v1674
        %v1699 = vadd.f32 %v1661, %v1674
        %v1700 = vadd.f32 %v1662, %v1674
        %v1701 = vadd.f32 %v1663, %v1674
        %v1702 = vadd.f32 %v1664, %v1674
        %v1703 = vadd.f32 %v1665, %v1674
        %v1704 = vadd.f32 %v1666, %v1674
        %v1705 = vadd.f32 %v1667, %v1674
        %v1706 = vadd.f32 %v1668, %v1674
        %v1707 = vadd.f32 %v1669, %v1674
        %v1708 = vpack.c.bf16 %v1677, %v1676
        %v1709 = vpack.c.bf16 %v1679, %v1678
        %v1710 = vpack.c.bf16 %v1681, %v1680
        %v1711 = vpack.c.bf16 %v1683, %v1682
        %v1712 = vpack.c.bf16 %v1685, %v1684
        %v1713 = vpack.c.bf16 %v1687, %v1686
        %v1714 = vpack.c.bf16 %v1689, %v1688
        %v1715 = vpack.c.bf16 %v1691, %v1690
        %v1716 = vpack.c.bf16 %v1693, %v1692
        %v1717 = vpack.c.bf16 %v1695, %v1694
        %v1718 = vpack.c.bf16 %v1697, %v1696
        %v1719 = vpack.c.bf16 %v1699, %v1698
        %v1720 = vpack.c.bf16 %v1701, %v1700
        %v1721 = vpack.c.bf16 %v1703, %v1702
        %v1722 = vpack.c.bf16 %v1705, %v1704
        %v1723 = vpack.c.bf16 %v1707, %v1706
        %v1725 = vlaneseq
        %v1726 = vshrl.u32 %v1725, 7
        %v1727 = vsub.s32 0, %v1726
        %v1728 = vrot.slane %v1596, %v1727
        %v1729 = vlaneseq
        %v1730 = vshrl.u32 %v1729, 7
        %v1731 = vsub.s32 1, %v1730
        %v1732 = vrot.slane %v1596, %v1731
        %v1743 = vunpack.c.l.b16 %v1556
        %v1744 = vunpack.c.h.b16 %v1556
        %v1745 = vunpack.c.l.b16 %v1557
        %v1746 = vunpack.c.h.b16 %v1557
        %v1747 = vunpack.c.l.b16 %v1558
        %v1748 = vunpack.c.h.b16 %v1558
        %v1749 = vunpack.c.l.b16 %v1559
        %v1750 = vunpack.c.h.b16 %v1559
        %v1751 = vunpack.c.l.b16 %v1560
        %v1752 = vunpack.c.h.b16 %v1560
        %v1753 = vunpack.c.l.b16 %v1561
        %v1754 = vunpack.c.h.b16 %v1561
        %v1755 = vunpack.c.l.b16 %v1562
        %v1756 = vunpack.c.h.b16 %v1562
        %v1757 = vunpack.c.l.b16 %v1563
        %v1758 = vunpack.c.h.b16 %v1563
        %v1759 = vpack.c.b16 %v1745, %v1743
        %v1760 = vpack.c.b16 %v1746, %v1744
        %v1761 = vpack.c.b16 %v1749, %v1747
        %v1762 = vpack.c.b16 %v1750, %v1748
        %v1763 = vpack.c.b16 %v1753, %v1751
        %v1764 = vpack.c.b16 %v1754, %v1752
        %v1765 = vpack.c.b16 %v1757, %v1755
        %v1766 = vpack.c.b16 %v1758, %v1756
        %v1776 = vsel %vm440, %v1708, 0
        %v1779 = vsel %vm440, %v1709, 0
        %v1782 = vsel %vm440, %v1710, 0
        %v1785 = vsel %vm440, %v1711, 0
        %v1788 = vsel %vm440, %v1712, 0
        %v1791 = vsel %vm440, %v1713, 0
        %v1794 = vsel %vm440, %v1714, 0
        %v1797 = vsel %vm440, %v1715, 0
        %v1800 = vsel %vm440, %v1716, 0
        %v1803 = vsel %vm440, %v1717, 0
        %v1806 = vsel %vm440, %v1718, 0
        %v1809 = vsel %vm440, %v1719, 0
        %v1812 = vsel %vm440, %v1720, 0
        %v1815 = vsel %vm440, %v1721, 0
        %v1818 = vsel %vm440, %v1722, 0
        %v1821 = vsel %vm440, %v1723, 0
        %1823 = vmatprep.subr.bf16.mxu0 %v1760
        %1824 = vmatpush1.bf16.msra.mxu0 %v1759
        %1825 = vmatprep.subr.bf16.mxu0 %v1762
        %1826 = vmatpush1.bf16.msra.mxu0 %v1761
        %1827 = vmatprep.subr.bf16.mxu0 %v1764
        %1828 = vmatpush1.bf16.msra.mxu0 %v1763
        %1829 = vmatprep.subr.bf16.mxu0 %v1766
        %1830 = vmatpush1.bf16.msra.mxu0 %v1765
        %1831 = vmatprep.subr.bf16.mxu0 0
        %1832 = vmatpush1.bf16.msra.mxu0 0
        %1833 = vmatprep.subr.bf16.mxu0 0
        %1834 = vmatpush1.bf16.msra.mxu0 0
        %1835 = vmatprep.subr.bf16.mxu0 0
        %1836 = vmatpush1.bf16.msra.mxu0 0
        %1837 = vmatprep.subr.bf16.mxu0 0
        %1838 = vmatpush1.bf16.msra.mxu0 0
        %1839 = vmatprep.subr.bf16.mxu0 0
        %1840 = vmatpush1.bf16.msra.mxu0 0
        %1841 = vmatprep.subr.bf16.mxu0 0
        %1842 = vmatpush1.bf16.msra.mxu0 0
        %1843 = vmatprep.subr.bf16.mxu0 0
        %1844 = vmatpush1.bf16.msra.mxu0 0
        %1845 = vmatprep.subr.bf16.mxu0 0
        %1846 = vmatpush1.bf16.msra.mxu0 0
        %1847 = vmatprep.subr.bf16.mxu0 0
        %1848 = vmatpush1.bf16.msra.mxu0 0
        %1849 = vmatprep.subr.bf16.mxu0 0
        %1850 = vmatpush1.bf16.msra.mxu0 0
        %1851 = vmatprep.subr.bf16.mxu0 0
        %1852 = vmatpush1.bf16.msra.mxu0 0
        %1853 = vmatprep.subr.bf16.mxu0 0
        %1854 = vmatpush1.bf16.msra.mxu0 0
        %1855 = vmatprep.mubr.bf16.mxu0 0
        %1856 = vmatmul.mubr.bf16.gmra.mrb[0].mxu0 %v1776
        %v1857 = vpop.f32.mrb[0].mxu0
        %v1858 = vadd.f32 %v1728, %v1857
        %v1859 = vpop.f32.mrb[0].mxu0
        %v1860 = vadd.f32 %v1732, %v1859
        %v1861 = vpop.f32.mrb[0].mxu0
        %v1862 = vadd.f32 %v1728, %v1861
        %v1863 = vpop.f32.mrb[0].mxu0
        %v1864 = vadd.f32 %v1732, %v1863
        %1865 = vmatprep.mubr.bf16.mxu0 0
        %1866 = vmatmul.mubr.bf16.gmra.mrb[0].mxu0 %v1779
        %v1867 = vpop.f32.mrb[0].mxu0
        %v1868 = vadd.f32 %v1728, %v1867
        %v1869 = vpop.f32.mrb[0].mxu0
        %v1870 = vadd.f32 %v1732, %v1869
        %v1871 = vpop.f32.mrb[0].mxu0
        %v1872 = vadd.f32 %v1728, %v1871
        %v1873 = vpop.f32.mrb[0].mxu0
        %v1874 = vadd.f32 %v1732, %v1873
        %1875 = vmatprep.mubr.bf16.mxu0 0
        %1876 = vmatmul.mubr.bf16.gmra.mrb[0].mxu0 %v1782
        %v1877 = vpop.f32.mrb[0].mxu0
        %v1878 = vadd.f32 %v1728, %v1877
        %v1879 = vpop.f32.mrb[0].mxu0
        %v1880 = vadd.f32 %v1732, %v1879
        %v1881 = vpop.f32.mrb[0].mxu0
        %v1882 = vadd.f32 %v1728, %v1881
        %v1883 = vpop.f32.mrb[0].mxu0
        %v1884 = vadd.f32 %v1732, %v1883
        %1885 = vmatprep.mubr.bf16.mxu0 0
        %1886 = vmatmul.mubr.bf16.gmra.mrb[0].mxu0 %v1785
        %v1887 = vpop.f32.mrb[0].mxu0
        %v1888 = vadd.f32 %v1728, %v1887
        %v1889 = vpop.f32.mrb[0].mxu0
        %v1890 = vadd.f32 %v1732, %v1889
        %v1891 = vpop.f32.mrb[0].mxu0
        %v1892 = vadd.f32 %v1728, %v1891
        %v1893 = vpop.f32.mrb[0].mxu0
        %v1894 = vadd.f32 %v1732, %v1893
        %1895 = vmatprep.mubr.bf16.mxu0 0
        %1896 = vmatmul.mubr.bf16.gmra.mrb[0].mxu0 %v1788
        %v1897 = vpop.f32.mrb[0].mxu0
        %v1898 = vadd.f32 %v1728, %v1897
        %v1899 = vpop.f32.mrb[0].mxu0
        %v1900 = vadd.f32 %v1732, %v1899
        %v1901 = vpop.f32.mrb[0].mxu0
        %v1902 = vadd.f32 %v1728, %v1901
        %v1903 = vpop.f32.mrb[0].mxu0
        %v1904 = vadd.f32 %v1732, %v1903
        %1905 = vmatprep.mubr.bf16.mxu0 0
        %1906 = vmatmul.mubr.bf16.gmra.mrb[0].mxu0 %v1791
        %v1907 = vpop.f32.mrb[0].mxu0
        %v1908 = vadd.f32 %v1728, %v1907
        %v1909 = vpop.f32.mrb[0].mxu0
        %v1910 = vadd.f32 %v1732, %v1909
        %v1911 = vpop.f32.mrb[0].mxu0
        %v1912 = vadd.f32 %v1728, %v1911
        %v1913 = vpop.f32.mrb[0].mxu0
        %v1914 = vadd.f32 %v1732, %v1913
        %1915 = vmatprep.mubr.bf16.mxu0 0
        %1916 = vmatmul.mubr.bf16.gmra.mrb[0].mxu0 %v1794
        %v1917 = vpop.f32.mrb[0].mxu0
        %v1918 = vadd.f32 %v1728, %v1917
        %v1919 = vpop.f32.mrb[0].mxu0
        %v1920 = vadd.f32 %v1732, %v1919
        %v1921 = vpop.f32.mrb[0].mxu0
        %v1922 = vadd.f32 %v1728, %v1921
        %v1923 = vpop.f32.mrb[0].mxu0
        %v1924 = vadd.f32 %v1732, %v1923
        %1925 = vmatprep.mubr.bf16.mxu0 0
        %1926 = vmatmul.mubr.bf16.gmra.mrb[0].mxu0 %v1797
        %v1927 = vpop.f32.mrb[0].mxu0
        %v1928 = vadd.f32 %v1728, %v1927
        %v1929 = vpop.f32.mrb[0].mxu0
        %v1930 = vadd.f32 %v1732, %v1929
        %v1931 = vpop.f32.mrb[0].mxu0
        %v1932 = vadd.f32 %v1728, %v1931
        %v1933 = vpop.f32.mrb[0].mxu0
        %v1934 = vadd.f32 %v1732, %v1933
        %1935 = vmatprep.mubr.bf16.mxu0 0
        %1936 = vmatmul.mubr.bf16.gmra.mrb[0].mxu0 %v1800
        %v1937 = vpop.f32.mrb[0].mxu0
        %v1938 = vadd.f32 %v1728, %v1937
        %v1939 = vpop.f32.mrb[0].mxu0
        %v1940 = vadd.f32 %v1732, %v1939
        %v1941 = vpop.f32.mrb[0].mxu0
        %v1942 = vadd.f32 %v1728, %v1941
        %v1943 = vpop.f32.mrb[0].mxu0
        %v1944 = vadd.f32 %v1732, %v1943
        %1945 = vmatprep.mubr.bf16.mxu0 0
        %1946 = vmatmul.mubr.bf16.gmra.mrb[0].mxu0 %v1803
        %v1947 = vpop.f32.mrb[0].mxu0
        %v1948 = vadd.f32 %v1728, %v1947
        %v1949 = vpop.f32.mrb[0].mxu0
        %v1950 = vadd.f32 %v1732, %v1949
        %v1951 = vpop.f32.mrb[0].mxu0
        %v1952 = vadd.f32 %v1728, %v1951
        %v1953 = vpop.f32.mrb[0].mxu0
        %v1954 = vadd.f32 %v1732, %v1953
        %1955 = vmatprep.mubr.bf16.mxu0 0
        %1956 = vmatmul.mubr.bf16.gmra.mrb[0].mxu0 %v1806
        %v1957 = vpop.f32.mrb[0].mxu0
        %v1958 = vadd.f32 %v1728, %v1957
        %v1959 = vpop.f32.mrb[0].mxu0
        %v1960 = vadd.f32 %v1732, %v1959
        %v1961 = vpop.f32.mrb[0].mxu0
        %v1962 = vadd.f32 %v1728, %v1961
        %v1963 = vpop.f32.mrb[0].mxu0
        %v1964 = vadd.f32 %v1732, %v1963
        %1965 = vmatprep.mubr.bf16.mxu0 0
        %1966 = vmatmul.mubr.bf16.gmra.mrb[0].mxu0 %v1809
        %v1967 = vpop.f32.mrb[0].mxu0
        %v1968 = vadd.f32 %v1728, %v1967
        %v1969 = vpop.f32.mrb[0].mxu0
        %v1970 = vadd.f32 %v1732, %v1969
        %v1971 = vpop.f32.mrb[0].mxu0
        %v1972 = vadd.f32 %v1728, %v1971
        %v1973 = vpop.f32.mrb[0].mxu0
        %v1974 = vadd.f32 %v1732, %v1973
        %1975 = vmatprep.mubr.bf16.mxu0 0
        %1976 = vmatmul.mubr.bf16.gmra.mrb[0].mxu0 %v1812
        %v1977 = vpop.f32.mrb[0].mxu0
        %v1978 = vadd.f32 %v1728, %v1977
        %v1979 = vpop.f32.mrb[0].mxu0
        %v1980 = vadd.f32 %v1732, %v1979
        %v1981 = vpop.f32.mrb[0].mxu0
        %v1982 = vadd.f32 %v1728, %v1981
        %v1983 = vpop.f32.mrb[0].mxu0
        %v1984 = vadd.f32 %v1732, %v1983
        %1985 = vmatprep.mubr.bf16.mxu0 0
        %1986 = vmatmul.mubr.bf16.gmra.mrb[0].mxu0 %v1815
        %v1987 = vpop.f32.mrb[0].mxu0
        %v1988 = vadd.f32 %v1728, %v1987
        %v1989 = vpop.f32.mrb[0].mxu0
        %v1990 = vadd.f32 %v1732, %v1989
        %v1991 = vpop.f32.mrb[0].mxu0
        %v1992 = vadd.f32 %v1728, %v1991
        %v1993 = vpop.f32.mrb[0].mxu0
        %v1994 = vadd.f32 %v1732, %v1993
        %1995 = vmatprep.mubr.bf16.mxu0 0
        %1996 = vmatmul.mubr.bf16.gmra.mrb[0].mxu0 %v1818
        %v1997 = vpop.f32.mrb[0].mxu0
        %v1998 = vadd.f32 %v1728, %v1997
        %v1999 = vpop.f32.mrb[0].mxu0
        %v2000 = vadd.f32 %v1732, %v1999
        %v2001 = vpop.f32.mrb[0].mxu0
        %v2002 = vadd.f32 %v1728, %v2001
        %v2003 = vpop.f32.mrb[0].mxu0
        %v2004 = vadd.f32 %v1732, %v2003
        %2005 = vmatprep.mubr.bf16.mxu0 0
        %2006 = vmatmul.mubr.bf16.gmra.mrb[0].mxu0 %v1821
        %v2007 = vpop.f32.mrb[0].mxu0
        %v2008 = vadd.f32 %v1728, %v2007
        %v2009 = vpop.f32.mrb[0].mxu0
        %v2010 = vadd.f32 %v1732, %v2009
        %v2011 = vpop.f32.mrb[0].mxu0
        %v2012 = vadd.f32 %v1728, %v2011
        %v2013 = vpop.f32.mrb[0].mxu0
        %v2014 = vadd.f32 %v1732, %v2013
        %2015 = vdwg.mxu0
        %v2016 = vmul.f32 %v1858, 0.5
        %v2017 = vmul.f32 %v1860, 0.5
        %v2018 = vmul.f32 %v1862, 0.5
        %v2019 = vmul.f32 %v1864, 0.5
        %v2020 = vmul.f32 %v1868, 0.5
        %v2021 = vmul.f32 %v1870, 0.5
        %v2022 = vmul.f32 %v1872, 0.5
        %v2023 = vmul.f32 %v1874, 0.5
        %v2024 = vmul.f32 %v1878, 0.5
        %v2025 = vmul.f32 %v1880, 0.5
        %v2026 = vmul.f32 %v1882, 0.5
        %v2027 = vmul.f32 %v1884, 0.5
        %v2028 = vmul.f32 %v1888, 0.5
        %v2029 = vmul.f32 %v1890, 0.5
        %v2030 = vmul.f32 %v1892, 0.5
        %v2031 = vmul.f32 %v1894, 0.5
        %v2032 = vmul.f32 %v1898, 0.5
        %v2033 = vmul.f32 %v1900, 0.5
        %v2034 = vmul.f32 %v1902, 0.5
        %v2035 = vmul.f32 %v1904, 0.5
        %v2036 = vmul.f32 %v1908, 0.5
        %v2037 = vmul.f32 %v1910, 0.5
        %v2038 = vmul.f32 %v1912, 0.5
        %v2039 = vmul.f32 %v1914, 0.5
        %v2040 = vmul.f32 %v1918, 0.5
        %v2041 = vmul.f32 %v1920, 0.5
        %v2042 = vmul.f32 %v1922, 0.5
        %v2043 = vmul.f32 %v1924, 0.5
        %v2044 = vmul.f32 %v1928, 0.5
        %v2045 = vmul.f32 %v1930, 0.5
        %v2046 = vmul.f32 %v1932, 0.5
        %v2047 = vmul.f32 %v1934, 0.5
        %v2048 = vmul.f32 %v1938, 0.5
        %v2049 = vmul.f32 %v1940, 0.5
        %v2050 = vmul.f32 %v1942, 0.5
        %v2051 = vmul.f32 %v1944, 0.5
        %v2052 = vmul.f32 %v1948, 0.5
        %v2053 = vmul.f32 %v1950, 0.5
        %v2054 = vmul.f32 %v1952, 0.5
        %v2055 = vmul.f32 %v1954, 0.5
        %v2056 = vmul.f32 %v1958, 0.5
        %v2057 = vmul.f32 %v1960, 0.5
        %v2058 = vmul.f32 %v1962, 0.5
        %v2059 = vmul.f32 %v1964, 0.5
        %v2060 = vmul.f32 %v1968, 0.5
        %v2061 = vmul.f32 %v1970, 0.5
        %v2062 = vmul.f32 %v1972, 0.5
        %v2063 = vmul.f32 %v1974, 0.5
        %v2064 = vmul.f32 %v1978, 0.5
        %v2065 = vmul.f32 %v1980, 0.5
        %v2066 = vmul.f32 %v1982, 0.5
        %v2067 = vmul.f32 %v1984, 0.5
        %v2068 = vmul.f32 %v1988, 0.5
        %v2069 = vmul.f32 %v1990, 0.5
        %v2070 = vmul.f32 %v1992, 0.5
        %v2071 = vmul.f32 %v1994, 0.5
        %v2072 = vmul.f32 %v1998, 0.5
        %v2073 = vmul.f32 %v2000, 0.5
        %v2074 = vmul.f32 %v2002, 0.5
        %v2075 = vmul.f32 %v2004, 0.5
        %v2076 = vmul.f32 %v2008, 0.5
        %v2077 = vmul.f32 %v2010, 0.5
        %v2078 = vmul.f32 %v2012, 0.5
        %v2079 = vmul.f32 %v2014, 0.5
        %v2080 = vmul.f32 %v1858, 0.044715
        %v2081 = vmul.f32 %v1860, 0.044715
        %v2082 = vmul.f32 %v1862, 0.044715
        %v2083 = vmul.f32 %v1864, 0.044715
        %v2084 = vmul.f32 %v1868, 0.044715
        %v2085 = vmul.f32 %v1870, 0.044715
        %v2086 = vmul.f32 %v1872, 0.044715
        %v2087 = vmul.f32 %v1874, 0.044715
        %v2088 = vmul.f32 %v1878, 0.044715
        %v2089 = vmul.f32 %v1880, 0.044715
        %v2090 = vmul.f32 %v1882, 0.044715
        %v2091 = vmul.f32 %v1884, 0.044715
        %v2092 = vmul.f32 %v1888, 0.044715
        %v2093 = vmul.f32 %v1890, 0.044715
        %v2094 = vmul.f32 %v1892, 0.044715
        %v2095 = vmul.f32 %v1894, 0.044715
        %v2096 = vmul.f32 %v1898, 0.044715
        %v2097 = vmul.f32 %v1900, 0.044715
        %v2098 = vmul.f32 %v1902, 0.044715
        %v2099 = vmul.f32 %v1904, 0.044715
        %v2100 = vmul.f32 %v1908, 0.044715
        %v2101 = vmul.f32 %v1910, 0.044715
        %v2102 = vmul.f32 %v1912, 0.044715
        %v2103 = vmul.f32 %v1914, 0.044715
        %v2104 = vmul.f32 %v1918, 0.044715
        %v2105 = vmul.f32 %v1920, 0.044715
        %v2106 = vmul.f32 %v1922, 0.044715
        %v2107 = vmul.f32 %v1924, 0.044715
        %v2108 = vmul.f32 %v1928, 0.044715
        %v2109 = vmul.f32 %v1930, 0.044715
        %v2110 = vmul.f32 %v1932, 0.044715
        %v2111 = vmul.f32 %v1934, 0.044715
        %v2112 = vmul.f32 %v1938, 0.044715
        %v2113 = vmul.f32 %v1940, 0.044715
        %v2114 = vmul.f32 %v1942, 0.044715
        %v2115 = vmul.f32 %v1944, 0.044715
        %v2116 = vmul.f32 %v1948, 0.044715
        %v2117 = vmul.f32 %v1950, 0.044715
        %v2118 = vmul.f32 %v1952, 0.044715
        %v2119 = vmul.f32 %v1954, 0.044715
        %v2120 = vmul.f32 %v1958, 0.044715
        %v2121 = vmul.f32 %v1960, 0.044715
        %v2122 = vmul.f32 %v1962, 0.044715
        %v2123 = vmul.f32 %v1964, 0.044715
        %v2124 = vmul.f32 %v1968, 0.044715
        %v2125 = vmul.f32 %v1970, 0.044715
        %v2126 = vmul.f32 %v1972, 0.044715
        %v2127 = vmul.f32 %v1974, 0.044715
        %v2128 = vmul.f32 %v1978, 0.044715
        %v2129 = vmul.f32 %v1980, 0.044715
        %v2130 = vmul.f32 %v1982, 0.044715
        %v2131 = vmul.f32 %v1984, 0.044715
        %v2132 = vmul.f32 %v1988, 0.044715
        %v2133 = vmul.f32 %v1990, 0.044715
        %v2134 = vmul.f32 %v1992, 0.044715
        %v2135 = vmul.f32 %v1994, 0.044715
        %v2136 = vmul.f32 %v1998, 0.044715
        %v2137 = vmul.f32 %v2000, 0.044715
        %v2138 = vmul.f32 %v2002, 0.044715
        %v2139 = vmul.f32 %v2004, 0.044715
        %v2140 = vmul.f32 %v2008, 0.044715
        %v2141 = vmul.f32 %v2010, 0.044715
        %v2142 = vmul.f32 %v2012, 0.044715
        %v2143 = vmul.f32 %v2014, 0.044715
        %v2144 = vmul.f32 %v2080, %v1858
        %v2145 = vmul.f32 %v2081, %v1860
        %v2146 = vmul.f32 %v2082, %v1862
        %v2147 = vmul.f32 %v2083, %v1864
        %v2148 = vmul.f32 %v2084, %v1868
        %v2149 = vmul.f32 %v2085, %v1870
        %v2150 = vmul.f32 %v2086, %v1872
        %v2151 = vmul.f32 %v2087, %v1874
        %v2152 = vmul.f32 %v2088, %v1878
        %v2153 = vmul.f32 %v2089, %v1880
        %v2154 = vmul.f32 %v2090, %v1882
        %v2155 = vmul.f32 %v2091, %v1884
        %v2156 = vmul.f32 %v2092, %v1888
        %v2157 = vmul.f32 %v2093, %v1890
        %v2158 = vmul.f32 %v2094, %v1892
        %v2159 = vmul.f32 %v2095, %v1894
        %v2160 = vmul.f32 %v2096, %v1898
        %v2161 = vmul.f32 %v2097, %v1900
        %v2162 = vmul.f32 %v2098, %v1902
        %v2163 = vmul.f32 %v2099, %v1904
        %v2164 = vmul.f32 %v2100, %v1908
        %v2165 = vmul.f32 %v2101, %v1910
        %v2166 = vmul.f32 %v2102, %v1912
        %v2167 = vmul.f32 %v2103, %v1914
        %v2168 = vmul.f32 %v2104, %v1918
        %v2169 = vmul.f32 %v2105, %v1920
        %v2170 = vmul.f32 %v2106, %v1922
        %v2171 = vmul.f32 %v2107, %v1924
        %v2172 = vmul.f32 %v2108, %v1928
        %v2173 = vmul.f32 %v2109, %v1930
        %v2174 = vmul.f32 %v2110, %v1932
        %v2175 = vmul.f32 %v2111, %v1934
        %v2176 = vmul.f32 %v2112, %v1938
        %v2177 = vmul.f32 %v2113, %v1940
        %v2178 = vmul.f32 %v2114, %v1942
        %v2179 = vmul.f32 %v2115, %v1944
        %v2180 = vmul.f32 %v2116, %v1948
        %v2181 = vmul.f32 %v2117, %v1950
        %v2182 = vmul.f32 %v2118, %v1952
        %v2183 = vmul.f32 %v2119, %v1954
        %v2184 = vmul.f32 %v2120, %v1958
        %v2185 = vmul.f32 %v2121, %v1960
        %v2186 = vmul.f32 %v2122, %v1962
        %v2187 = vmul.f32 %v2123, %v1964
        %v2188 = vmul.f32 %v2124, %v1968
        %v2189 = vmul.f32 %v2125, %v1970
        %v2190 = vmul.f32 %v2126, %v1972
        %v2191 = vmul.f32 %v2127, %v1974
        %v2192 = vmul.f32 %v2128, %v1978
        %v2193 = vmul.f32 %v2129, %v1980
        %v2194 = vmul.f32 %v2130, %v1982
        %v2195 = vmul.f32 %v2131, %v1984
        %v2196 = vmul.f32 %v2132, %v1988
        %v2197 = vmul.f32 %v2133, %v1990
        %v2198 = vmul.f32 %v2134, %v1992
        %v2199 = vmul.f32 %v2135, %v1994
        %v2200 = vmul.f32 %v2136, %v1998
        %v2201 = vmul.f32 %v2137, %v2000
        %v2202 = vmul.f32 %v2138, %v2002
        %v2203 = vmul.f32 %v2139, %v2004
        %v2204 = vmul.f32 %v2140, %v2008
        %v2205 = vmul.f32 %v2141, %v2010
        %v2206 = vmul.f32 %v2142, %v2012
        %v2207 = vmul.f32 %v2143, %v2014
        %v2208 = vmul.f32 %v2144, %v1858
        %v2209 = vmul.f32 %v2145, %v1860
        %v2210 = vmul.f32 %v2146, %v1862
        %v2211 = vmul.f32 %v2147, %v1864
        %v2212 = vmul.f32 %v2148, %v1868
        %v2213 = vmul.f32 %v2149, %v1870
        %v2214 = vmul.f32 %v2150, %v1872
        %v2215 = vmul.f32 %v2151, %v1874
        %v2216 = vmul.f32 %v2152, %v1878
        %v2217 = vmul.f32 %v2153, %v1880
        %v2218 = vmul.f32 %v2154, %v1882
        %v2219 = vmul.f32 %v2155, %v1884
        %v2220 = vmul.f32 %v2156, %v1888
        %v2221 = vmul.f32 %v2157, %v1890
        %v2222 = vmul.f32 %v2158, %v1892
        %v2223 = vmul.f32 %v2159, %v1894
        %v2224 = vmul.f32 %v2160, %v1898
        %v2225 = vmul.f32 %v2161, %v1900
        %v2226 = vmul.f32 %v2162, %v1902
        %v2227 = vmul.f32 %v2163, %v1904
        %v2228 = vmul.f32 %v2164, %v1908
        %v2229 = vmul.f32 %v2165, %v1910
        %v2230 = vmul.f32 %v2166, %v1912
        %v2231 = vmul.f32 %v2167, %v1914
        %v2232 = vmul.f32 %v2168, %v1918
        %v2233 = vmul.f32 %v2169, %v1920
        %v2234 = vmul.f32 %v2170, %v1922
        %v2235 = vmul.f32 %v2171, %v1924
        %v2236 = vmul.f32 %v2172, %v1928
        %v2237 = vmul.f32 %v2173, %v1930
        %v2238 = vmul.f32 %v2174, %v1932
        %v2239 = vmul.f32 %v2175, %v1934
        %v2240 = vmul.f32 %v2176, %v1938
        %v2241 = vmul.f32 %v2177, %v1940
        %v2242 = vmul.f32 %v2178, %v1942
        %v2243 = vmul.f32 %v2179, %v1944
        %v2244 = vmul.f32 %v2180, %v1948
        %v2245 = vmul.f32 %v2181, %v1950
        %v2246 = vmul.f32 %v2182, %v1952
        %v2247 = vmul.f32 %v2183, %v1954
        %v2248 = vmul.f32 %v2184, %v1958
        %v2249 = vmul.f32 %v2185, %v1960
        %v2250 = vmul.f32 %v2186, %v1962
        %v2251 = vmul.f32 %v2187, %v1964
        %v2252 = vmul.f32 %v2188, %v1968
        %v2253 = vmul.f32 %v2189, %v1970
        %v2254 = vmul.f32 %v2190, %v1972
        %v2255 = vmul.f32 %v2191, %v1974
        %v2256 = vmul.f32 %v2192, %v1978
        %v2257 = vmul.f32 %v2193, %v1980
        %v2258 = vmul.f32 %v2194, %v1982
        %v2259 = vmul.f32 %v2195, %v1984
        %v2260 = vmul.f32 %v2196, %v1988
        %v2261 = vmul.f32 %v2197, %v1990
        %v2262 = vmul.f32 %v2198, %v1992
        %v2263 = vmul.f32 %v2199, %v1994
        %v2264 = vmul.f32 %v2200, %v1998
        %v2265 = vmul.f32 %v2201, %v2000
        %v2266 = vmul.f32 %v2202, %v2002
        %v2267 = vmul.f32 %v2203, %v2004
        %v2268 = vmul.f32 %v2204, %v2008
        %v2269 = vmul.f32 %v2205, %v2010
        %v2270 = vmul.f32 %v2206, %v2012
        %v2271 = vmul.f32 %v2207, %v2014
        %v2272 = vadd.f32 %v1858, %v2208
        %v2273 = vadd.f32 %v1860, %v2209
        %v2274 = vadd.f32 %v1862, %v2210
        %v2275 = vadd.f32 %v1864, %v2211
        %v2276 = vadd.f32 %v1868, %v2212
        %v2277 = vadd.f32 %v1870, %v2213
        %v2278 = vadd.f32 %v1872, %v2214
        %v2279 = vadd.f32 %v1874, %v2215
        %v2280 = vadd.f32 %v1878, %v2216
        %v2281 = vadd.f32 %v1880, %v2217
        %v2282 = vadd.f32 %v1882, %v2218
        %v2283 = vadd.f32 %v1884, %v2219
        %v2284 = vadd.f32 %v1888, %v2220
        %v2285 = vadd.f32 %v1890, %v2221
        %v2286 = vadd.f32 %v1892, %v2222
        %v2287 = vadd.f32 %v1894, %v2223
        %v2288 = vadd.f32 %v1898, %v2224
        %v2289 = vadd.f32 %v1900, %v2225
        %v2290 = vadd.f32 %v1902, %v2226
        %v2291 = vadd.f32 %v1904, %v2227
        %v2292 = vadd.f32 %v1908, %v2228
        %v2293 = vadd.f32 %v1910, %v2229
        %v2294 = vadd.f32 %v1912, %v2230
        %v2295 = vadd.f32 %v1914, %v2231
        %v2296 = vadd.f32 %v1918, %v2232
        %v2297 = vadd.f32 %v1920, %v2233
        %v2298 = vadd.f32 %v1922, %v2234
        %v2299 = vadd.f32 %v1924, %v2235
        %v2300 = vadd.f32 %v1928, %v2236
        %v2301 = vadd.f32 %v1930, %v2237
        %v2302 = vadd.f32 %v1932, %v2238
        %v2303 = vadd.f32 %v1934, %v2239
        %v2304 = vadd.f32 %v1938, %v2240
        %v2305 = vadd.f32 %v1940, %v2241
        %v2306 = vadd.f32 %v1942, %v2242
        %v2307 = vadd.f32 %v1944, %v2243
        %v2308 = vadd.f32 %v1948, %v2244
        %v2309 = vadd.f32 %v1950, %v2245
        %v2310 = vadd.f32 %v1952, %v2246
        %v2311 = vadd.f32 %v1954, %v2247
        %v2312 = vadd.f32 %v1958, %v2248
        %v2313 = vadd.f32 %v1960, %v2249
        %v2314 = vadd.f32 %v1962, %v2250
        %v2315 = vadd.f32 %v1964, %v2251
        %v2316 = vadd.f32 %v1968, %v2252
        %v2317 = vadd.f32 %v1970, %v2253
        %v2318 = vadd.f32 %v1972, %v2254
        %v2319 = vadd.f32 %v1974, %v2255
        %v2320 = vadd.f32 %v1978, %v2256
        %v2321 = vadd.f32 %v1980, %v2257
        %v2322 = vadd.f32 %v1982, %v2258
        %v2323 = vadd.f32 %v1984, %v2259
        %v2324 = vadd.f32 %v1988, %v2260
        %v2325 = vadd.f32 %v1990, %v2261
        %v2326 = vadd.f32 %v1992, %v2262
        %v2327 = vadd.f32 %v1994, %v2263
        %v2328 = vadd.f32 %v1998, %v2264
        %v2329 = vadd.f32 %v2000, %v2265
        %v2330 = vadd.f32 %v2002, %v2266
        %v2331 = vadd.f32 %v2004, %v2267
        %v2332 = vadd.f32 %v2008, %v2268
        %v2333 = vadd.f32 %v2010, %v2269
        %v2334 = vadd.f32 %v2012, %v2270
        %v2335 = vadd.f32 %v2014, %v2271
        %v2336 = vmul.f32 %v2272, 0.7978846
        %v2337 = vmul.f32 %v2273, 0.7978846
        %v2338 = vmul.f32 %v2274, 0.7978846
        %v2339 = vmul.f32 %v2275, 0.7978846
        %v2340 = vmul.f32 %v2276, 0.7978846
        %v2341 = vmul.f32 %v2277, 0.7978846
        %v2342 = vmul.f32 %v2278, 0.7978846
        %v2343 = vmul.f32 %v2279, 0.7978846
        %v2344 = vmul.f32 %v2280, 0.7978846
        %v2345 = vmul.f32 %v2281, 0.7978846
        %v2346 = vmul.f32 %v2282, 0.7978846
        %v2347 = vmul.f32 %v2283, 0.7978846
        %v2348 = vmul.f32 %v2284, 0.7978846
        %v2349 = vmul.f32 %v2285, 0.7978846
        %v2350 = vmul.f32 %v2286, 0.7978846
        %v2351 = vmul.f32 %v2287, 0.7978846
        %v2352 = vmul.f32 %v2288, 0.7978846
        %v2353 = vmul.f32 %v2289, 0.7978846
        %v2354 = vmul.f32 %v2290, 0.7978846
        %v2355 = vmul.f32 %v2291, 0.7978846
        %v2356 = vmul.f32 %v2292, 0.7978846
        %v2357 = vmul.f32 %v2293, 0.7978846
        %v2358 = vmul.f32 %v2294, 0.7978846
        %v2359 = vmul.f32 %v2295, 0.7978846
        %v2360 = vmul.f32 %v2296, 0.7978846
        %v2361 = vmul.f32 %v2297, 0.7978846
        %v2362 = vmul.f32 %v2298, 0.7978846
        %v2363 = vmul.f32 %v2299, 0.7978846
        %v2364 = vmul.f32 %v2300, 0.7978846
        %v2365 = vmul.f32 %v2301, 0.7978846
        %v2366 = vmul.f32 %v2302, 0.7978846
        %v2367 = vmul.f32 %v2303, 0.7978846
        %v2368 = vmul.f32 %v2304, 0.7978846
        %v2369 = vmul.f32 %v2305, 0.7978846
        %v2370 = vmul.f32 %v2306, 0.7978846
        %v2371 = vmul.f32 %v2307, 0.7978846
        %v2372 = vmul.f32 %v2308, 0.7978846
        %v2373 = vmul.f32 %v2309, 0.7978846
        %v2374 = vmul.f32 %v2310, 0.7978846
        %v2375 = vmul.f32 %v2311, 0.7978846
        %v2376 = vmul.f32 %v2312, 0.7978846
        %v2377 = vmul.f32 %v2313, 0.7978846
        %v2378 = vmul.f32 %v2314, 0.7978846
        %v2379 = vmul.f32 %v2315, 0.7978846
        %v2380 = vmul.f32 %v2316, 0.7978846
        %v2381 = vmul.f32 %v2317, 0.7978846
        %v2382 = vmul.f32 %v2318, 0.7978846
        %v2383 = vmul.f32 %v2319, 0.7978846
        %v2384 = vmul.f32 %v2320, 0.7978846
        %v2385 = vmul.f32 %v2321, 0.7978846
        %v2386 = vmul.f32 %v2322, 0.7978846
        %v2387 = vmul.f32 %v2323, 0.7978846
        %v2388 = vmul.f32 %v2324, 0.7978846
        %v2389 = vmul.f32 %v2325, 0.7978846
        %v2390 = vmul.f32 %v2326, 0.7978846
        %v2391 = vmul.f32 %v2327, 0.7978846
        %v2392 = vmul.f32 %v2328, 0.7978846
        %v2393 = vmul.f32 %v2329, 0.7978846
        %v2394 = vmul.f32 %v2330, 0.7978846
        %v2395 = vmul.f32 %v2331, 0.7978846
        %v2396 = vmul.f32 %v2332, 0.7978846
        %v2397 = vmul.f32 %v2333, 0.7978846
        %v2398 = vmul.f32 %v2334, 0.7978846
        %v2399 = vmul.f32 %v2335, 0.7978846
        %v2400 = vtanh.pop %v2336
        %v2401 = vtanh.pop %v2337
        %v2402 = vtanh.pop %v2338
        %v2403 = vtanh.pop %v2339
        %v2404 = vtanh.pop %v2340
        %v2405 = vtanh.pop %v2341
        %v2406 = vtanh.pop %v2342
        %v2407 = vtanh.pop %v2343
        %v2408 = vtanh.pop %v2344
        %v2409 = vtanh.pop %v2345
        %v2410 = vtanh.pop %v2346
        %v2411 = vtanh.pop %v2347
        %v2412 = vtanh.pop %v2348
        %v2413 = vtanh.pop %v2349
        %v2414 = vtanh.pop %v2350
        %v2415 = vtanh.pop %v2351
        %v2416 = vtanh.pop %v2352
        %v2417 = vtanh.pop %v2353
        %v2418 = vtanh.pop %v2354
        %v2419 = vtanh.pop %v2355
        %v2420 = vtanh.pop %v2356
        %v2421 = vtanh.pop %v2357
        %v2422 = vtanh.pop %v2358
        %v2423 = vtanh.pop %v2359
        %v2424 = vtanh.pop %v2360
        %v2425 = vtanh.pop %v2361
        %v2426 = vtanh.pop %v2362
        %v2427 = vtanh.pop %v2363
        %v2428 = vtanh.pop %v2364
        %v2429 = vtanh.pop %v2365
        %v2430 = vtanh.pop %v2366
        %v2431 = vtanh.pop %v2367
        %v2432 = vtanh.pop %v2368
        %v2433 = vtanh.pop %v2369
        %v2434 = vtanh.pop %v2370
        %v2435 = vtanh.pop %v2371
        %v2436 = vtanh.pop %v2372
        %v2437 = vtanh.pop %v2373
        %v2438 = vtanh.pop %v2374
        %v2439 = vtanh.pop %v2375
        %v2440 = vtanh.pop %v2376
        %v2441 = vtanh.pop %v2377
        %v2442 = vtanh.pop %v2378
        %v2443 = vtanh.pop %v2379
        %v2444 = vtanh.pop %v2380
        %v2445 = vtanh.pop %v2381
        %v2446 = vtanh.pop %v2382
        %v2447 = vtanh.pop %v2383
        %v2448 = vtanh.pop %v2384
        %v2449 = vtanh.pop %v2385
        %v2450 = vtanh.pop %v2386
        %v2451 = vtanh.pop %v2387
        %v2452 = vtanh.pop %v2388
        %v2453 = vtanh.pop %v2389
        %v2454 = vtanh.pop %v2390
        %v2455 = vtanh.pop %v2391
        %v2456 = vtanh.pop %v2392
        %v2457 = vtanh.pop %v2393
        %v2458 = vtanh.pop %v2394
        %v2459 = vtanh.pop %v2395
        %v2460 = vtanh.pop %v2396
        %v2461 = vtanh.pop %v2397
        %v2462 = vtanh.pop %v2398
        %v2463 = vtanh.pop %v2399
        %v2464 = vadd.f32 %v2400, 1.0
        %v2465 = vadd.f32 %v2401, 1.0
        %v2466 = vadd.f32 %v2402, 1.0
        %v2467 = vadd.f32 %v2403, 1.0
        %v2468 = vadd.f32 %v2404, 1.0
        %v2469 = vadd.f32 %v2405, 1.0
        %v2470 = vadd.f32 %v2406, 1.0
        %v2471 = vadd.f32 %v2407, 1.0
        %v2472 = vadd.f32 %v2408, 1.0
        %v2473 = vadd.f32 %v2409, 1.0
        %v2474 = vadd.f32 %v2410, 1.0
        %v2475 = vadd.f32 %v2411, 1.0
        %v2476 = vadd.f32 %v2412, 1.0
        %v2477 = vadd.f32 %v2413, 1.0
        %v2478 = vadd.f32 %v2414, 1.0
        %v2479 = vadd.f32 %v2415, 1.0
        %v2480 = vadd.f32 %v2416, 1.0
        %v2481 = vadd.f32 %v2417, 1.0
        %v2482 = vadd.f32 %v2418, 1.0
        %v2483 = vadd.f32 %v2419, 1.0
        %v2484 = vadd.f32 %v2420, 1.0
        %v2485 = vadd.f32 %v2421, 1.0
        %v2486 = vadd.f32 %v2422, 1.0
        %v2487 = vadd.f32 %v2423, 1.0
        %v2488 = vadd.f32 %v2424, 1.0
        %v2489 = vadd.f32 %v2425, 1.0
        %v2490 = vadd.f32 %v2426, 1.0
        %v2491 = vadd.f32 %v2427, 1.0
        %v2492 = vadd.f32 %v2428, 1.0
        %v2493 = vadd.f32 %v2429, 1.0
        %v2494 = vadd.f32 %v2430, 1.0
        %v2495 = vadd.f32 %v2431, 1.0
        %v2496 = vadd.f32 %v2432, 1.0
        %v2497 = vadd.f32 %v2433, 1.0
        %v2498 = vadd.f32 %v2434, 1.0
        %v2499 = vadd.f32 %v2435, 1.0
        %v2500 = vadd.f32 %v2436, 1.0
        %v2501 = vadd.f32 %v2437, 1.0
        %v2502 = vadd.f32 %v2438, 1.0
        %v2503 = vadd.f32 %v2439, 1.0
        %v2504 = vadd.f32 %v2440, 1.0
        %v2505 = vadd.f32 %v2441, 1.0
        %v2506 = vadd.f32 %v2442, 1.0
        %v2507 = vadd.f32 %v2443, 1.0
        %v2508 = vadd.f32 %v2444, 1.0
        %v2509 = vadd.f32 %v2445, 1.0
        %v2510 = vadd.f32 %v2446, 1.0
        %v2511 = vadd.f32 %v2447, 1.0
        %v2512 = vadd.f32 %v2448, 1.0
        %v2513 = vadd.f32 %v2449, 1.0
        %v2514 = vadd.f32 %v2450, 1.0
        %v2515 = vadd.f32 %v2451, 1.0
        %v2516 = vadd.f32 %v2452, 1.0
        %v2517 = vadd.f32 %v2453, 1.0
        %v2518 = vadd.f32 %v2454, 1.0
        %v2519 = vadd.f32 %v2455, 1.0
        %v2520 = vadd.f32 %v2456, 1.0
        %v2521 = vadd.f32 %v2457, 1.0
        %v2522 = vadd.f32 %v2458, 1.0
        %v2523 = vadd.f32 %v2459, 1.0
        %v2524 = vadd.f32 %v2460, 1.0
        %v2525 = vadd.f32 %v2461, 1.0
        %v2526 = vadd.f32 %v2462, 1.0
        %v2527 = vadd.f32 %v2463, 1.0
        %v2528 = vmul.f32 %v2016, %v2464
        %v2529 = vmul.f32 %v2017, %v2465
        %v2530 = vmul.f32 %v2018, %v2466
        %v2531 = vmul.f32 %v2019, %v2467
        %v2532 = vmul.f32 %v2020, %v2468
        %v2533 = vmul.f32 %v2021, %v2469
        %v2534 = vmul.f32 %v2022, %v2470
        %v2535 = vmul.f32 %v2023, %v2471
        %v2536 = vmul.f32 %v2024, %v2472
        %v2537 = vmul.f32 %v2025, %v2473
        %v2538 = vmul.f32 %v2026, %v2474
        %v2539 = vmul.f32 %v2027, %v2475
        %v2540 = vmul.f32 %v2028, %v2476
        %v2541 = vmul.f32 %v2029, %v2477
        %v2542 = vmul.f32 %v2030, %v2478
        %v2543 = vmul.f32 %v2031, %v2479
        %v2544 = vmul.f32 %v2032, %v2480
        %v2545 = vmul.f32 %v2033, %v2481
        %v2546 = vmul.f32 %v2034, %v2482
        %v2547 = vmul.f32 %v2035, %v2483
        %v2548 = vmul.f32 %v2036, %v2484
        %v2549 = vmul.f32 %v2037, %v2485
        %v2550 = vmul.f32 %v2038, %v2486
        %v2551 = vmul.f32 %v2039, %v2487
        %v2552 = vmul.f32 %v2040, %v2488
        %v2553 = vmul.f32 %v2041, %v2489
        %v2554 = vmul.f32 %v2042, %v2490
        %v2555 = vmul.f32 %v2043, %v2491
        %v2556 = vmul.f32 %v2044, %v2492
        %v2557 = vmul.f32 %v2045, %v2493
        %v2558 = vmul.f32 %v2046, %v2494
        %v2559 = vmul.f32 %v2047, %v2495
        %v2560 = vmul.f32 %v2048, %v2496
        %v2561 = vmul.f32 %v2049, %v2497
        %v2562 = vmul.f32 %v2050, %v2498
        %v2563 = vmul.f32 %v2051, %v2499
        %v2564 = vmul.f32 %v2052, %v2500
        %v2565 = vmul.f32 %v2053, %v2501
        %v2566 = vmul.f32 %v2054, %v2502
        %v2567 = vmul.f32 %v2055, %v2503
        %v2568 = vmul.f32 %v2056, %v2504
        %v2569 = vmul.f32 %v2057, %v2505
        %v2570 = vmul.f32 %v2058, %v2506
        %v2571 = vmul.f32 %v2059, %v2507
        %v2572 = vmul.f32 %v2060, %v2508
        %v2573 = vmul.f32 %v2061, %v2509
        %v2574 = vmul.f32 %v2062, %v2510
        %v2575 = vmul.f32 %v2063, %v2511
        %v2576 = vmul.f32 %v2064, %v2512
        %v2577 = vmul.f32 %v2065, %v2513
        %v2578 = vmul.f32 %v2066, %v2514
        %v2579 = vmul.f32 %v2067, %v2515
        %v2580 = vmul.f32 %v2068, %v2516
        %v2581 = vmul.f32 %v2069, %v2517
        %v2582 = vmul.f32 %v2070, %v2518
        %v2583 = vmul.f32 %v2071, %v2519
        %v2584 = vmul.f32 %v2072, %v2520
        %v2585 = vmul.f32 %v2073, %v2521
        %v2586 = vmul.f32 %v2074, %v2522
        %v2587 = vmul.f32 %v2075, %v2523
        %v2588 = vmul.f32 %v2076, %v2524
        %v2589 = vmul.f32 %v2077, %v2525
        %v2590 = vmul.f32 %v2078, %v2526
        %v2591 = vmul.f32 %v2079, %v2527
        %v2592 = vpack.c.bf16 %v2530, %v2528
        %v2593 = vpack.c.bf16 %v2531, %v2529
        %v2594 = vpack.c.bf16 %v2534, %v2532
        %v2595 = vpack.c.bf16 %v2535, %v2533
        %v2596 = vpack.c.bf16 %v2538, %v2536
        %v2597 = vpack.c.bf16 %v2539, %v2537
        %v2598 = vpack.c.bf16 %v2542, %v2540
        %v2599 = vpack.c.bf16 %v2543, %v2541
        %v2600 = vpack.c.bf16 %v2546, %v2544
        %v2601 = vpack.c.bf16 %v2547, %v2545
        %v2602 = vpack.c.bf16 %v2550, %v2548
        %v2603 = vpack.c.bf16 %v2551, %v2549
        %v2604 = vpack.c.bf16 %v2554, %v2552
        %v2605 = vpack.c.bf16 %v2555, %v2553
        %v2606 = vpack.c.bf16 %v2558, %v2556
        %v2607 = vpack.c.bf16 %v2559, %v2557
        %v2608 = vpack.c.bf16 %v2562, %v2560
        %v2609 = vpack.c.bf16 %v2563, %v2561
        %v2610 = vpack.c.bf16 %v2566, %v2564
        %v2611 = vpack.c.bf16 %v2567, %v2565
        %v2612 = vpack.c.bf16 %v2570, %v2568
        %v2613 = vpack.c.bf16 %v2571, %v2569
        %v2614 = vpack.c.bf16 %v2574, %v2572
        %v2615 = vpack.c.bf16 %v2575, %v2573
        %v2616 = vpack.c.bf16 %v2578, %v2576
        %v2617 = vpack.c.bf16 %v2579, %v2577
        %v2618 = vpack.c.bf16 %v2582, %v2580
        %v2619 = vpack.c.bf16 %v2583, %v2581
        %v2620 = vpack.c.bf16 %v2586, %v2584
        %v2621 = vpack.c.bf16 %v2587, %v2585
        %v2622 = vpack.c.bf16 %v2590, %v2588
        %v2623 = vpack.c.bf16 %v2591, %v2589
        %v2625 = vlaneseq
        %v2626 = vshrl.u32 %v2625, 7
        %v2627 = vsub.s32 0, %v2626
        %v2628 = vrot.slane %v1597, %v2627
        %v2662 = vunpack.c.l.b16 %v1564
        %v2663 = vunpack.c.l.b16 %v1565
        %v2664 = vunpack.c.l.b16 %v1566
        %v2665 = vunpack.c.l.b16 %v1567
        %v2666 = vunpack.c.l.b16 %v1568
        %v2667 = vunpack.c.l.b16 %v1569
        %v2668 = vunpack.c.l.b16 %v1570
        %v2669 = vunpack.c.l.b16 %v1571
        %v2670 = vunpack.c.l.b16 %v1572
        %v2671 = vunpack.c.l.b16 %v1573
        %v2672 = vunpack.c.l.b16 %v1574
        %v2673 = vunpack.c.l.b16 %v1575
        %v2674 = vunpack.c.l.b16 %v1576
        %v2675 = vunpack.c.l.b16 %v1577
        %v2676 = vunpack.c.l.b16 %v1578
        %v2677 = vunpack.c.l.b16 %v1579
        %v2678 = vunpack.c.l.b16 %v1580
        %v2679 = vunpack.c.l.b16 %v1581
        %v2680 = vunpack.c.l.b16 %v1582
        %v2681 = vunpack.c.l.b16 %v1583
        %v2682 = vunpack.c.l.b16 %v1584
        %v2683 = vunpack.c.l.b16 %v1585
        %v2684 = vunpack.c.l.b16 %v1586
        %v2685 = vunpack.c.l.b16 %v1587
        %v2686 = vunpack.c.l.b16 %v1588
        %v2687 = vunpack.c.l.b16 %v1589
        %v2688 = vunpack.c.l.b16 %v1590
        %v2689 = vunpack.c.l.b16 %v1591
        %v2690 = vunpack.c.l.b16 %v1592
        %v2691 = vunpack.c.l.b16 %v1593
        %v2692 = vunpack.c.l.b16 %v1594
        %v2693 = vunpack.c.l.b16 %v1595
        %v2694 = vpack.c.b16 %v2663, %v2662
        %v2695 = vpack.c.b16 %v2665, %v2664
        %v2696 = vpack.c.b16 %v2667, %v2666
        %v2697 = vpack.c.b16 %v2669, %v2668
        %v2698 = vpack.c.b16 %v2671, %v2670
        %v2699 = vpack.c.b16 %v2673, %v2672
        %v2700 = vpack.c.b16 %v2675, %v2674
        %v2701 = vpack.c.b16 %v2677, %v2676
        %v2702 = vpack.c.b16 %v2679, %v2678
        %v2703 = vpack.c.b16 %v2681, %v2680
        %v2704 = vpack.c.b16 %v2683, %v2682
        %v2705 = vpack.c.b16 %v2685, %v2684
        %v2706 = vpack.c.b16 %v2687, %v2686
        %v2707 = vpack.c.b16 %v2689, %v2688
        %v2708 = vpack.c.b16 %v2691, %v2690
        %v2709 = vpack.c.b16 %v2693, %v2692
        %2726 = vmatprep.subr.bf16.mxu0 0
        %2727 = vmatpush1.bf16.msra.mxu0 %v2694
        %2728 = vmatprep.subr.bf16.mxu0 0
        %2729 = vmatpush1.bf16.msra.mxu0 %v2695
        %2730 = vmatprep.subr.bf16.mxu0 0
        %2731 = vmatpush1.bf16.msra.mxu0 %v2696
        %2732 = vmatprep.subr.bf16.mxu0 0
        %2733 = vmatpush1.bf16.msra.mxu0 %v2697
        %2734 = vmatprep.subr.bf16.mxu0 0
        %2735 = vmatpush1.bf16.msra.mxu0 %v2698
        %2736 = vmatprep.subr.bf16.mxu0 0
        %2737 = vmatpush1.bf16.msra.mxu0 %v2699
        %2738 = vmatprep.subr.bf16.mxu0 0
        %2739 = vmatpush1.bf16.msra.mxu0 %v2700
        %2740 = vmatprep.subr.bf16.mxu0 0
        %2741 = vmatpush1.bf16.msra.mxu0 %v2701
        %2742 = vmatprep.subr.bf16.mxu0 0
        %2743 = vmatpush1.bf16.msra.mxu0 %v2702
        %2744 = vmatprep.subr.bf16.mxu0 0
        %2745 = vmatpush1.bf16.msra.mxu0 %v2703
        %2746 = vmatprep.subr.bf16.mxu0 0
        %2747 = vmatpush1.bf16.msra.mxu0 %v2704
        %2748 = vmatprep.subr.bf16.mxu0 0
        %2749 = vmatpush1.bf16.msra.mxu0 %v2705
        %2750 = vmatprep.subr.bf16.mxu0 0
        %2751 = vmatpush1.bf16.msra.mxu0 %v2706
        %2752 = vmatprep.subr.bf16.mxu0 0
        %2753 = vmatpush1.bf16.msra.mxu0 %v2707
        %2754 = vmatprep.subr.bf16.mxu0 0
        %2755 = vmatpush1.bf16.msra.mxu0 %v2708
        %2756 = vmatprep.subr.bf16.mxu0 0
        %2757 = vmatpush1.bf16.msra.mxu0 %v2709
        %2758 = vmatprep.mubr.bf16.mxu0 %v2593
        %2759 = vmatmul.mubr.bf16.gmra.mrb[0].mxu0 %v2592
        %v2760 = vpop.f32.mrb[0].mxu0
        %v2761 = vadd.f32 %v2628, %v2760
        %v2762 = vpop.f32.mrb[0].mxu0
        %v2763 = vpop.f32.mrb[0].mxu0
        %v2764 = vadd.f32 %v2628, %v2763
        %v2765 = vpop.f32.mrb[0].mxu0
        %2766 = vmatprep.mubr.bf16.mxu0 %v2595
        %2767 = vmatmul.mubr.bf16.gmra.mrb[0].mxu0 %v2594
        %v2768 = vpop.f32.mrb[0].mxu0
        %v2769 = vadd.f32 %v2628, %v2768
        %v2770 = vpop.f32.mrb[0].mxu0
        %v2771 = vpop.f32.mrb[0].mxu0
        %v2772 = vadd.f32 %v2628, %v2771
        %v2773 = vpop.f32.mrb[0].mxu0
        %2774 = vmatprep.mubr.bf16.mxu0 %v2597
        %2775 = vmatmul.mubr.bf16.gmra.mrb[0].mxu0 %v2596
        %v2776 = vpop.f32.mrb[0].mxu0
        %v2777 = vadd.f32 %v2628, %v2776
        %v2778 = vpop.f32.mrb[0].mxu0
        %v2779 = vpop.f32.mrb[0].mxu0
        %v2780 = vadd.f32 %v2628, %v2779
        %v2781 = vpop.f32.mrb[0].mxu0
        %2782 = vmatprep.mubr.bf16.mxu0 %v2599
        %2783 = vmatmul.mubr.bf16.gmra.mrb[0].mxu0 %v2598
        %v2784 = vpop.f32.mrb[0].mxu0
        %v2785 = vadd.f32 %v2628, %v2784
        %v2786 = vpop.f32.mrb[0].mxu0
        %v2787 = vpop.f32.mrb[0].mxu0
        %v2788 = vadd.f32 %v2628, %v2787
        %v2789 = vpop.f32.mrb[0].mxu0
        %2790 = vmatprep.mubr.bf16.mxu0 %v2601
        %2791 = vmatmul.mubr.bf16.gmra.mrb[0].mxu0 %v2600
        %v2792 = vpop.f32.mrb[0].mxu0
        %v2793 = vadd.f32 %v2628, %v2792
        %v2794 = vpop.f32.mrb[0].mxu0
        %v2795 = vpop.f32.mrb[0].mxu0
        %v2796 = vadd.f32 %v2628, %v2795
        %v2797 = vpop.f32.mrb[0].mxu0
        %2798 = vmatprep.mubr.bf16.mxu0 %v2603
        %2799 = vmatmul.mubr.bf16.gmra.mrb[0].mxu0 %v2602
        %v2800 = vpop.f32.mrb[0].mxu0
        %v2801 = vadd.f32 %v2628, %v2800
        %v2802 = vpop.f32.mrb[0].mxu0
        %v2803 = vpop.f32.mrb[0].mxu0
        %v2804 = vadd.f32 %v2628, %v2803
        %v2805 = vpop.f32.mrb[0].mxu0
        %2806 = vmatprep.mubr.bf16.mxu0 %v2605
        %2807 = vmatmul.mubr.bf16.gmra.mrb[0].mxu0 %v2604
        %v2808 = vpop.f32.mrb[0].mxu0
        %v2809 = vadd.f32 %v2628, %v2808
        %v2810 = vpop.f32.mrb[0].mxu0
        %v2811 = vpop.f32.mrb[0].mxu0
        %v2812 = vadd.f32 %v2628, %v2811
        %v2813 = vpop.f32.mrb[0].mxu0
        %2814 = vmatprep.mubr.bf16.mxu0 %v2607
        %2815 = vmatmul.mubr.bf16.gmra.mrb[0].mxu0 %v2606
        %v2816 = vpop.f32.mrb[0].mxu0
        %v2817 = vadd.f32 %v2628, %v2816
        %v2818 = vpop.f32.mrb[0].mxu0
        %v2819 = vpop.f32.mrb[0].mxu0
        %v2820 = vadd.f32 %v2628, %v2819
        %v2821 = vpop.f32.mrb[0].mxu0
        %2822 = vmatprep.mubr.bf16.mxu0 %v2609
        %2823 = vmatmul.mubr.bf16.gmra.mrb[0].mxu0 %v2608
        %v2824 = vpop.f32.mrb[0].mxu0
        %v2825 = vadd.f32 %v2628, %v2824
        %v2826 = vpop.f32.mrb[0].mxu0
        %v2827 = vpop.f32.mrb[0].mxu0
        %v2828 = vadd.f32 %v2628, %v2827
        %v2829 = vpop.f32.mrb[0].mxu0
        %2830 = vmatprep.mubr.bf16.mxu0 %v2611
        %2831 = vmatmul.mubr.bf16.gmra.mrb[0].mxu0 %v2610
        %v2832 = vpop.f32.mrb[0].mxu0
        %v2833 = vadd.f32 %v2628, %v2832
        %v2834 = vpop.f32.mrb[0].mxu0
        %v2835 = vpop.f32.mrb[0].mxu0
        %v2836 = vadd.f32 %v2628, %v2835
        %v2837 = vpop.f32.mrb[0].mxu0
        %2838 = vmatprep.mubr.bf16.mxu0 %v2613
        %2839 = vmatmul.mubr.bf16.gmra.mrb[0].mxu0 %v2612
        %v2840 = vpop.f32.mrb[0].mxu0
        %v2841 = vadd.f32 %v2628, %v2840
        %v2842 = vpop.f32.mrb[0].mxu0
        %v2843 = vpop.f32.mrb[0].mxu0
        %v2844 = vadd.f32 %v2628, %v2843
        %v2845 = vpop.f32.mrb[0].mxu0
        %2846 = vmatprep.mubr.bf16.mxu0 %v2615
        %2847 = vmatmul.mubr.bf16.gmra.mrb[0].mxu0 %v2614
        %v2848 = vpop.f32.mrb[0].mxu0
        %v2849 = vadd.f32 %v2628, %v2848
        %v2850 = vpop.f32.mrb[0].mxu0
        %v2851 = vpop.f32.mrb[0].mxu0
        %v2852 = vadd.f32 %v2628, %v2851
        %v2853 = vpop.f32.mrb[0].mxu0
        %2854 = vmatprep.mubr.bf16.mxu0 %v2617
        %2855 = vmatmul.mubr.bf16.gmra.mrb[0].mxu0 %v2616
        %v2856 = vpop.f32.mrb[0].mxu0
        %v2857 = vadd.f32 %v2628, %v2856
        %v2858 = vpop.f32.mrb[0].mxu0
        %v2859 = vpop.f32.mrb[0].mxu0
        %v2860 = vadd.f32 %v2628, %v2859
        %v2861 = vpop.f32.mrb[0].mxu0
        %2862 = vmatprep.mubr.bf16.mxu0 %v2619
        %2863 = vmatmul.mubr.bf16.gmra.mrb[0].mxu0 %v2618
        %v2864 = vpop.f32.mrb[0].mxu0
        %v2865 = vadd.f32 %v2628, %v2864
        %v2866 = vpop.f32.mrb[0].mxu0
        %v2867 = vpop.f32.mrb[0].mxu0
        %v2868 = vadd.f32 %v2628, %v2867
        %v2869 = vpop.f32.mrb[0].mxu0
        %2870 = vmatprep.mubr.bf16.mxu0 %v2621
        %2871 = vmatmul.mubr.bf16.gmra.mrb[0].mxu0 %v2620
        %v2872 = vpop.f32.mrb[0].mxu0
        %v2873 = vadd.f32 %v2628, %v2872
        %v2874 = vpop.f32.mrb[0].mxu0
        %v2875 = vpop.f32.mrb[0].mxu0
        %v2876 = vadd.f32 %v2628, %v2875
        %v2877 = vpop.f32.mrb[0].mxu0
        %2878 = vmatprep.mubr.bf16.mxu0 %v2623
        %2879 = vmatmul.mubr.bf16.gmra.mrb[0].mxu0 %v2622
        %v2880 = vpop.f32.mrb[0].mxu0
        %v2881 = vadd.f32 %v2628, %v2880
        %v2882 = vpop.f32.mrb[0].mxu0
        %v2883 = vpop.f32.mrb[0].mxu0
        %v2884 = vadd.f32 %v2628, %v2883
        %v2885 = vpop.f32.mrb[0].mxu0
        %2886 = vdwg.mxu0
        %v2888 = vlaneseq
        %v2889 = vshrl.u32 %v2888, 7
        %v2890 = vsub.s32 0, %v2889
        %v2891 = vrot.slane %v1555, %v2890
        %v2893 = vmul.f32 %v2891, %v2761
        %v2894 = vmul.f32 %v2891, %v2764
        %v2895 = vmul.f32 %v2891, %v2769
        %v2896 = vmul.f32 %v2891, %v2772
        %v2897 = vmul.f32 %v2891, %v2777
        %v2898 = vmul.f32 %v2891, %v2780
        %v2899 = vmul.f32 %v2891, %v2785
        %v2900 = vmul.f32 %v2891, %v2788
        %v2901 = vmul.f32 %v2891, %v2793
        %v2902 = vmul.f32 %v2891, %v2796
        %v2903 = vmul.f32 %v2891, %v2801
        %v2904 = vmul.f32 %v2891, %v2804
        %v2905 = vmul.f32 %v2891, %v2809
        %v2906 = vmul.f32 %v2891, %v2812
        %v2907 = vmul.f32 %v2891, %v2817
        %v2908 = vmul.f32 %v2891, %v2820
        %v2909 = vmul.f32 %v2891, %v2825
        %v2910 = vmul.f32 %v2891, %v2828
        %v2911 = vmul.f32 %v2891, %v2833
        %v2912 = vmul.f32 %v2891, %v2836
        %v2913 = vmul.f32 %v2891, %v2841
        %v2914 = vmul.f32 %v2891, %v2844
        %v2915 = vmul.f32 %v2891, %v2849
        %v2916 = vmul.f32 %v2891, %v2852
        %v2917 = vmul.f32 %v2891, %v2857
        %v2918 = vmul.f32 %v2891, %v2860
        %v2919 = vmul.f32 %v2891, %v2865
        %v2920 = vmul.f32 %v2891, %v2868
        %v2921 = vmul.f32 %v2891, %v2873
        %v2922 = vmul.f32 %v2891, %v2876
        %v2923 = vmul.f32 %v2891, %v2881
        %v2924 = vmul.f32 %v2891, %v2884
        %v2925 = vadd.f32 %v1600, %v2893
        %v2926 = vadd.f32 %v1601, %v2894
        %v2927 = vadd.f32 %v1602, %v2895
        %v2928 = vadd.f32 %v1603, %v2896
        %v2929 = vadd.f32 %v1604, %v2897
        %v2930 = vadd.f32 %v1605, %v2898
        %v2931 = vadd.f32 %v1606, %v2899
        %v2932 = vadd.f32 %v1607, %v2900
        %v2933 = vadd.f32 %v1608, %v2901
        %v2934 = vadd.f32 %v1609, %v2902
        %v2935 = vadd.f32 %v1610, %v2903
        %v2936 = vadd.f32 %v1611, %v2904
        %v2937 = vadd.f32 %v1612, %v2905
        %v2938 = vadd.f32 %v1613, %v2906
        %v2939 = vadd.f32 %v1614, %v2907
        %v2940 = vadd.f32 %v1615, %v2908
        %v2941 = vadd.f32 %v1616, %v2909
        %v2942 = vadd.f32 %v1617, %v2910
        %v2943 = vadd.f32 %v1618, %v2911
        %v2944 = vadd.f32 %v1619, %v2912
        %v2945 = vadd.f32 %v1620, %v2913
        %v2946 = vadd.f32 %v1621, %v2914
        %v2947 = vadd.f32 %v1622, %v2915
        %v2948 = vadd.f32 %v1623, %v2916
        %v2949 = vadd.f32 %v1624, %v2917
        %v2950 = vadd.f32 %v1625, %v2918
        %v2951 = vadd.f32 %v1626, %v2919
        %v2952 = vadd.f32 %v1627, %v2920
        %v2953 = vadd.f32 %v1628, %v2921
        %v2954 = vadd.f32 %v1629, %v2922
        %v2955 = vadd.f32 %v1630, %v2923
        %v2956 = vadd.f32 %v1631, %v2924
        %2957 = vst.msk [vmem:[%s1599] sm:$0xff] %vm440, %v2925
        %2958 = vst.msk [vmem:[%s1599 + $0x8] sm:$0xff] %vm440, %v2926
        %2959 = vst.msk [vmem:[%s1599 + $0x10] sm:$0xff] %vm440, %v2927
        %2960 = vst.msk [vmem:[%s1599 + $0x18] sm:$0xff] %vm440, %v2928
        %2961 = vst.msk [vmem:[%s1599 + $0x20] sm:$0xff] %vm440, %v2929
        %2962 = vst.msk [vmem:[%s1599 + $0x28] sm:$0xff] %vm440, %v2930
        %2963 = vst.msk [vmem:[%s1599 + $0x30] sm:$0xff] %vm440, %v2931
        %2964 = vst.msk [vmem:[%s1599 + $0x38] sm:$0xff] %vm440, %v2932
        %2965 = vst.msk [vmem:[%s1599 + $0x40] sm:$0xff] %vm440, %v2933
        %2966 = vst.msk [vmem:[%s1599 + $0x48] sm:$0xff] %vm440, %v2934
        %2967 = vst.msk [vmem:[%s1599 + $0x50] sm:$0xff] %vm440, %v2935
        %2968 = vst.msk [vmem:[%s1599 + $0x58] sm:$0xff] %vm440, %v2936
        %2969 = vst.msk [vmem:[%s1599 + $0x60] sm:$0xff] %vm440, %v2937
        %2970 = vst.msk [vmem:[%s1599 + $0x68] sm:$0xff] %vm440, %v2938
        %2971 = vst.msk [vmem:[%s1599 + $0x70] sm:$0xff] %vm440, %v2939
        %2972 = vst.msk [vmem:[%s1599 + $0x78] sm:$0xff] %vm440, %v2940
        %2973 = vst.msk [vmem:[%s1599 + $0x80] sm:$0xff] %vm440, %v2941
        %2974 = vst.msk [vmem:[%s1599 + $0x88] sm:$0xff] %vm440, %v2942
        %2975 = vst.msk [vmem:[%s1599 + $0x90] sm:$0xff] %vm440, %v2943
        %2976 = vst.msk [vmem:[%s1599 + $0x98] sm:$0xff] %vm440, %v2944
        %2977 = vst.msk [vmem:[%s1599 + $0xa0] sm:$0xff] %vm440, %v2945
        %2978 = vst.msk [vmem:[%s1599 + $0xa8] sm:$0xff] %vm440, %v2946
        %2979 = vst.msk [vmem:[%s1599 + $0xb0] sm:$0xff] %vm440, %v2947
        %2980 = vst.msk [vmem:[%s1599 + $0xb8] sm:$0xff] %vm440, %v2948
        %2981 = vst.msk [vmem:[%s1599 + $0xc0] sm:$0xff] %vm440, %v2949
        %2982 = vst.msk [vmem:[%s1599 + $0xc8] sm:$0xff] %vm440, %v2950
        %2983 = vst.msk [vmem:[%s1599 + $0xd0] sm:$0xff] %vm440, %v2951
        %2984 = vst.msk [vmem:[%s1599 + $0xd8] sm:$0xff] %vm440, %v2952
        %2985 = vst.msk [vmem:[%s1599 + $0xe0] sm:$0xff] %vm440, %v2953
        %2986 = vst.msk [vmem:[%s1599 + $0xe8] sm:$0xff] %vm440, %v2954
        %2987 = vst.msk [vmem:[%s1599 + $0xf0] sm:$0xff] %vm440, %v2955
        %2988 = vst.msk [vmem:[%s1599 + $0xf8] sm:$0xff] %vm440, %v2956
        %s2989 = sand.u32 %s272, 1
        %s2990 = scalar_lea.sflag [#allocation4], %s2989
        %s2991 = sand.u32 %s272, 1
        %s2992 = smul.addr %s2991, 256
        %s2993 = scalar_lea.vmem [#allocation5], %s2992
        // Predicated region
        $region69: #{a_call__.1} parent=63 // pred_check
          %p2994 = pneg %p282
        $region70: #{a_call__.1} parent=63 // pred_check_branch
          %2996 = sbr.rel (%p2994) target = $region72
        $region71: #{a_call__.1} parent=63 // pred_region
          %s2998 = ssub.s32 4096, 4096
          %2999 = vsyncadd %s2990, %s2998
          %s3000 = smul.addr %s28, 32
          %s3001 = smul.addr %s3000, 128
          %s3002 = scalar_lea.hbm %s11, %s3001
          %s3003 = sshll.u32 %s2993, 4
          %s3004 = int_to_ptr.vmem [resolvable:$true] %s3003
          %3009 = dma.vmem_to_hbm [thread:$0]  %s3004, 4096, %s3002, %s2990, 128, 128, 8
        $region72: #{a_call__.1} parent=63 // pred_fallthru
          _
      $region64: #{a_call__.1} parent=5 // pred_fallthru
        _
      %p3010 = scmp.le.s32.totalorder 2, %s23
      // Predicated region
      $region73: #{a_call__.1} parent=5 // pred_check
        %p3011 = pneg %p3010
      $region74: #{a_call__.1} parent=5 // pred_check_branch
        %3013 = sbr.rel (%p3011) target = $region76
      $region75: #{a_call__.1} parent=5 // pred_region
        %s3014 = ssub.s32 %s23, 2
        // Predicated region
        $region77: #{a_call__.1} parent=75 // pred_check
          %p3015 = pneg %p288
        $region78: #{a_call__.1} parent=75 // pred_check_branch
          %3017 = sbr.rel (%p3015) target = $region80
        $region79: #{a_call__.1} parent=75 // pred_region
          %s3018 = sand.u32 %s273, 1
          %s3019 = scalar_lea.sflag [#allocation4], %s3018
          %s3020 = sand.u32 %s273, 1
          %s3021 = smul.addr %s3020, 256
          %s3022 = scalar_lea.vmem [#allocation5], %s3021
          %3023 = dma.done %s3019, 4096
        $region80: #{a_call__.1} parent=75 // pred_fallthru
          _
      $region76: #{a_call__.1} parent=5 // pred_fallthru
        _
    $region6: #{a_call__.1} parent=1 // loop_footer
      %s27 = sadd.s32 1, %s23
    $region7: #{a_call__.1} parent=1 // loop_footer_branch
      %22 = sbr.rel target = $region3
    $region8: #{a_call__.1} parent=1 // loop_exit
      _
    %3024 = vsyncpa [#allocation3], 1
    %s3025 = scalar_lea.sflag [#allocation3], 1
    %3026 = vsyncpa %s3025, 1
    %3027 = vsyncpa [#allocation4], 1
    %s3028 = scalar_lea.sflag [#allocation4], 1
    %3029 = vsyncpa %s3028, 1

</llo_original>
